<compile_context>
chip_gen: v6e
topology: v6e:2x2x1
jax: 0.10.0
libtpu: 0.0.40
codegen_flags: <defaults>
</compile_context>

<pallas_src>
import functools

import jax
import jax.numpy as jnp
from jax import lax
from jax.experimental import pallas as pl
from jax.experimental.pallas import tpu as pltpu

EPS = 1e-5      # nn.LayerNorm default eps
LANE = 128      # TPU lane width; last dims are padded to a multiple of this


def _round_up(n, m):
    return (n + m - 1) // m * m


def _lane_mask(c_real, c_pad):
    """(1, c_pad) f32 mask of valid lanes, or None when no padding exists."""
    if c_real == c_pad:
        return None
    return (lax.broadcasted_iota(jnp.int32, (1, c_pad), 1) < c_real
            ).astype(jnp.float32)


def _layernorm(x, g, b, *, n_valid, mask=None):
    """LayerNorm over the last dim.  When the lane dim is zero-padded past
    `n_valid`, `x` must already be 0 in padded lanes and `mask` marks valid
    lanes; g/b are zero in padded lanes, so the output padding stays zero."""
    inv_n = 1.0 / float(n_valid)
    mu = jnp.sum(x, axis=-1, keepdims=True) * inv_n
    xc = x - mu
    if mask is not None:
        xc = xc * mask
    var = jnp.sum(xc * xc, axis=-1, keepdims=True) * inv_n
    return xc * lax.rsqrt(var + EPS) * g + b


def _gelu_tanh(x):
    # tanh-form GELU: jnp.tanh lowers to the EUP (its own bundle slot) instead
    # of an erf polynomial + divide on the VPU.  |gelu_tanh - gelu_erf| <~ 5e-4.
    c = 0.7978845608028654  # sqrt(2/pi)
    return 0.5 * x * (1.0 + jnp.tanh(c * (x + 0.044715 * x * x * x)))


# --------------------------------------------------------------------------
# Kernel 1: LayerNorm1 + Q/K/V projections (fully parallel over (B, S-tiles))
# --------------------------------------------------------------------------
def _ln1_qkv_kernel(x_ref, g1_ref, b1_ref,
                    wq_ref, bq_ref, wk_ref, bk_ref, wv_ref, bv_ref,
                    x1_ref, q_ref, k_ref, v_ref, *, c_real):
    cp = x_ref.shape[-1]
    mask = _lane_mask(c_real, cp)

    x = x_ref[0].astype(jnp.float32)                      # (ts, Cp), 0 in padded lanes
    x1 = _layernorm(x, g1_ref[...], b1_ref[...], n_valid=c_real, mask=mask)
    x1_ref[0] = x1                                        # f32, kept for the residual

    x1b = x1.astype(jnp.bfloat16)
    # wq/bq already carry the folded 1/sqrt(head_dim) attention scale.
    q_ref[0] = (jnp.dot(x1b, wq_ref[...], preferred_element_type=jnp.float32)
                + bq_ref[...]).astype(jnp.bfloat16)
    k_ref[0] = (jnp.dot(x1b, wk_ref[...], preferred_element_type=jnp.float32)
                + bk_ref[...]).astype(jnp.bfloat16)
    v_ref[0] = (jnp.dot(x1b, wv_ref[...], preferred_element_type=jnp.float32)
                + bv_ref[...]).astype(jnp.bfloat16)


# --------------------------------------------------------------------------
# Kernel 2: per-query-tile attention + output projection + LN2 + MLP
# --------------------------------------------------------------------------
def _attn_mlp_kernel(x1_ref, q_ref, k_ref, v_ref,
                     wo_ref, bo_ref, g2_ref, b2_ref,
                     w1_ref, fb1_ref, w2_ref, fb2_ref,
                     o_ref, ho_scr, *, num_heads, c_real):
    cp = q_ref.shape[-1]
    hd = c_real // num_heads
    mask = _lane_mask(c_real, cp)

    if c_real < cp:
        # Padded lanes of the head-output buffer are never written by the head
        # loop; zero them once so stale VMEM cannot leak into the Wo matmul.
        ho_scr[...] = jnp.zeros_like(ho_scr)

    # Per-head attention.  Head outputs go into a head-major (tq, Cp) bf16
    # buffer; the output projection is ONE full-K matmul after the loop (full
    # MXU occupancy, no per-head f32 (tq, C) accumulator RMW).  Q/K/V are
    # sliced at the Ref level so only the (S, hd) strips are live, and nothing
    # is carried across iterations, keeping vreg pressure per-head.
    for h in range(num_heads):
        sl = slice(h * hd, (h + 1) * hd)
        s = lax.dot_general(q_ref[0, :, sl], k_ref[0, :, sl],
                            (((1,), (1,)), ((), ())),
                            preferred_element_type=jnp.float32)      # (tq, S)
        s = s - jnp.max(s, axis=-1, keepdims=True)
        p = jnp.exp(s)
        p = p * pl.reciprocal(jnp.sum(p, axis=-1, keepdims=True), approx=True)
        ho = jnp.dot(p.astype(jnp.bfloat16), v_ref[0, :, sl],
                     preferred_element_type=jnp.float32)             # (tq, hd)
        ho_scr[:, sl] = ho.astype(jnp.bfloat16)

    attn = jnp.dot(ho_scr[...], wo_ref[...],
                   preferred_element_type=jnp.float32) + bo_ref[...]

    # Residuals exactly as the PyTorch forward:
    #   x2 = norm1(x) + attn ; out = norm2(x2) + mlp(norm2(x2))
    x2 = x1_ref[0] + attn
    x3 = _layernorm(x2, g2_ref[...], b2_ref[...], n_valid=c_real, mask=mask)
    x3b = x3.astype(jnp.bfloat16)
    h1 = _gelu_tanh(jnp.dot(x3b, w1_ref[...], preferred_element_type=jnp.float32)
                    + fb1_ref[...])
    mlp = jnp.dot(h1.astype(jnp.bfloat16), w2_ref[...],
                  preferred_element_type=jnp.float32) + fb2_ref[...]
    o_ref[0] = (x3 + mlp).astype(o_ref.dtype)


# --------------------------------------------------------------------------
# Host-side wrapper
# --------------------------------------------------------------------------
def _prepare_params(params, num_heads):
    """One-time host-side prep: split QKV, pre-transpose, fold the 1/sqrt(hd)
    attention scale into the Q projection, zero-pad lane dims to a multiple of
    128 (lane-dense layout) and cast MXU operands to bf16."""
    C = params["wo"].shape[0]
    hidden = params["w1"].shape[0]
    cp = _round_up(C, LANE)
    hp = _round_up(hidden, LANE)
    hd = C // num_heads
    scale = float(hd) ** -0.5
    wqkv, bqkv = params["wqkv"], params["bqkv"]
    bf16 = jnp.bfloat16

    def pad2(a, rows, cols):
        return jnp.pad(a, ((0, rows - a.shape[0]), (0, cols - a.shape[1])))

    return dict(
        ln1_g=pad2(params["ln1_g"], 1, cp), ln1_b=pad2(params["ln1_b"], 1, cp),
        wq=pad2(wqkv[0 * C:1 * C].T * scale, cp, cp).astype(bf16),
        bq=pad2(bqkv[:, 0 * C:1 * C] * scale, 1, cp),
        wk=pad2(wqkv[1 * C:2 * C].T, cp, cp).astype(bf16),
        bk=pad2(bqkv[:, 1 * C:2 * C], 1, cp),
        wv=pad2(wqkv[2 * C:3 * C].T, cp, cp).astype(bf16),
        bv=pad2(bqkv[:, 2 * C:3 * C], 1, cp),
        wo=pad2(params["wo"].T, cp, cp).astype(bf16),
        bo=pad2(params["bo"], 1, cp),
        ln2_g=pad2(params["ln2_g"], 1, cp), ln2_b=pad2(params["ln2_b"], 1, cp),
        w1=pad2(params["w1"].T, cp, hp).astype(bf16),
        b1=pad2(params["b1"], 1, hp),
        w2=pad2(params["w2"].T, hp, cp).astype(bf16),
        b2=pad2(params["b2"], 1, cp),
    )


def _tpu_vmem_capacity():
    try:
        return int(pltpu.get_tpu_info().vmem_capacity_bytes)
    except Exception:
        return 64 << 20     # conservative default: v7x per-TensorCore VMEM


def _vmem_limit(required):
    """Mosaic VMEM limit = actual requirement + headroom, capped at 75% of the
    physical per-core VMEM so Mosaic keeps room for its internal scratch."""
    cap = _tpu_vmem_capacity()
    want = int(required * 1.3) + (2 << 20)
    return max(32 << 20, min(want, (cap * 3) // 4))


def _pick_tq(S):
    """Query-tile rows per grid step: largest aligned divisor of S up to a
    per-generation target (512 on 128-MiB-VMEM chips, 256 on v7x).  If no
    aligned divisor exists, fall back to the target with a cdiv grid and a
    Pallas-masked tail tile (never tq = S, which would materialize (S, S))."""
    target = 512 if _tpu_vmem_capacity() >= (96 << 20) else 256
    if S <= target:
        return S
    for t in range(target, 7, -1):
        if S % t == 0 and t % 8 == 0:
            return t
    return target


def _swin_block_impl(x_bhwc, params, num_heads, *, tq, single_buffer_weights):
    B, H, W, C = x_bhwc.shape
    assert C % num_heads == 0
    S = H * W
    p = _prepare_params(params, num_heads)
    cp = p["wo"].shape[0]
    hp = p["w1"].shape[1]

    x = x_bhwc.reshape(B, S, C).astype(jnp.float32)
    if cp != C:
        x = jnp.pad(x, ((0, 0), (0, 0), (0, cp - C)))    # lane-dense padding

    if tq is None:
        tq = _pick_tq(S)
    nq = pl.cdiv(S, tq)

    def wspec(shape):
        # Constant-index weights/biases: single-buffer them (their block index
        # never changes, so double-buffering only doubles resident VMEM).
        if single_buffer_weights:
            return pl.BlockSpec(shape, lambda b, i: (0, 0),
                                pipeline_mode=pl.Buffered(1))
        return pl.BlockSpec(shape, lambda b, i: (0, 0))

    def tile_spec():
        return pl.BlockSpec((1, tq, cp), lambda b, i: (b, i, 0))

    f32b, bf16b = 4, 2
    wbuf = 1 if single_buffer_weights else 2
    req1 = (wbuf * 3 * cp * cp * bf16b            # Wq/Wk/Wv (bf16)
            + 2 * tq * cp * f32b                  # x tile (double-buffered)
            + 2 * tq * cp * (f32b + 3 * bf16b)    # x1/q/k/v output tiles
            + 4 * tq * cp * f32b)                 # elementwise temporaries
    req2 = (wbuf * (cp * cp + 2 * cp * hp) * bf16b  # Wo/W1/W2 (bf16)
            + 2 * tq * cp * (f32b + bf16b)          # x1 + q tiles
            + 4 * S * cp * bf16b                    # K + V (double-buffered)
            + 2 * tq * cp * f32b                    # output tile
            + tq * cp * bf16b                       # head-output scratch
            + 3 * tq * S * f32b                     # scores / softmax temps
            + 2 * tq * hp * f32b)                   # MLP hidden temporaries

    # ---- kernel 1: LN1 + Q/K/V projections ----
    x1, q, k, v = pl.pallas_call(
        functools.partial(_ln1_qkv_kernel, c_real=C),
        out_shape=(jax.ShapeDtypeStruct((B, S, cp), jnp.float32),
                   jax.ShapeDtypeStruct((B, S, cp), jnp.bfloat16),
                   jax.ShapeDtypeStruct((B, S, cp), jnp.bfloat16),
                   jax.ShapeDtypeStruct((B, S, cp), jnp.bfloat16)),
        grid=(B, nq),
        in_specs=[tile_spec(),
                  wspec((1, cp)), wspec((1, cp)),
                  wspec((cp, cp)), wspec((1, cp)),
                  wspec((cp, cp)), wspec((1, cp)),
                  wspec((cp, cp)), wspec((1, cp))],
        out_specs=(tile_spec(), tile_spec(), tile_spec(), tile_spec()),
        compiler_params=pltpu.CompilerParams(
            dimension_semantics=("parallel", "parallel"),
            vmem_limit_bytes=_vmem_limit(req1)),
    )(x, p["ln1_g"], p["ln1_b"], p["wq"], p["bq"], p["wk"], p["bk"],
      p["wv"], p["bv"])

    # ---- kernel 2: attention + LN2 + MLP per query tile ----
    def kv_spec():
        return pl.BlockSpec((1, S, cp), lambda b, i: (b, 0, 0))

    out = pl.pallas_call(
        functools.partial(_attn_mlp_kernel, num_heads=num_heads, c_real=C),
        out_shape=jax.ShapeDtypeStruct((B, S, cp), jnp.float32),
        grid=(B, nq),
        in_specs=[tile_spec(),            # x1 (residual)
                  tile_spec(),            # Q tile (scaled)
                  kv_spec(),              # K (per batch; re-fetched only when b changes)
                  kv_spec(),              # V
                  wspec((cp, cp)), wspec((1, cp)),   # Wo^T, bo
                  wspec((1, cp)), wspec((1, cp)),    # ln2 gamma / beta
                  wspec((cp, hp)), wspec((1, hp)),   # W1^T, b1
                  wspec((hp, cp)), wspec((1, cp))],  # W2^T, b2
        out_specs=tile_spec(),
        scratch_shapes=[pltpu.VMEM((tq, cp), jnp.bfloat16)],   # head-major attn out
        compiler_params=pltpu.CompilerParams(
            dimension_semantics=("parallel", "parallel"),
            vmem_limit_bytes=_vmem_limit(req2)),
    )(x1, q, k, v, p["wo"], p["bo"], p["ln2_g"], p["ln2_b"],
      p["w1"], p["b1"], p["w2"], p["b2"])

    out = out[..., :C].astype(x_bhwc.dtype)
    return out.reshape(B, H, W, C)


def swin_block(x_bhwc, params, num_heads, *, tq=None, single_buffer_weights=True):
    if single_buffer_weights:
        try:
            return _swin_block_impl(x_bhwc, params, num_heads, tq=tq,
                                    single_buffer_weights=True)
        except Exception:
            # Graceful fallback for JAX/Mosaic versions that reject
            # BlockSpec(pipeline_mode=pl.Buffered(1)); everything else is
            # identical (a genuine error re-raises on the second attempt).
            pass
    return _swin_block_impl(x_bhwc, params, num_heads, tq=tq,
                            single_buffer_weights=False)


# --------------------------------------------------------------------------
# Parameter init + pure-JAX reference (mirrors the PyTorch forward)
# --------------------------------------------------------------------------
def init_params(key, dim, num_heads, mlp_ratio=4.0):
    hidden = int(dim * mlp_ratio)
    ks = jax.random.split(key, 8)
    std = 0.02
    return {
        "ln1_g": jnp.ones((1, dim), jnp.float32),
        "ln1_b": jnp.zeros((1, dim), jnp.float32),
        "wqkv": std * jax.random.normal(ks[0], (3 * dim, dim), jnp.float32),
        "bqkv": std * jax.random.normal(ks[1], (1, 3 * dim), jnp.float32),
        "wo": std * jax.random.normal(ks[2], (dim, dim), jnp.float32),
        "bo": std * jax.random.normal(ks[3], (1, dim), jnp.float32),
        "ln2_g": jnp.ones((1, dim), jnp.float32),
        "ln2_b": jnp.zeros((1, dim), jnp.float32),
        "w1": std * jax.random.normal(ks[4], (hidden, dim), jnp.float32),
        "b1": std * jax.random.normal(ks[5], (1, hidden), jnp.float32),
        "w2": std * jax.random.normal(ks[6], (dim, hidden), jnp.float32),
        "b2": std * jax.random.normal(ks[7], (1, dim), jnp.float32),
    }


def _ln_ref(x, g, b):
    mu = jnp.mean(x, axis=-1, keepdims=True)
    var = jnp.mean((x - mu) ** 2, axis=-1, keepdims=True)
    return (x - mu) * lax.rsqrt(var + EPS) * g + b


def swin_block_ref(x_bhwc, params, num_heads):
    # f32 reference, exact (erf) GELU as in PyTorch's default nn.GELU.
    B, H, W, C = x_bhwc.shape
    S = H * W
    hd = C // num_heads
    x = x_bhwc.reshape(B, S, C)
    x1 = _ln_ref(x, params["ln1_g"], params["ln1_b"])
    qkv = x1 @ params["wqkv"].T + params["bqkv"]
    q, k, v = qkv[..., :C], qkv[..., C:2 * C], qkv[..., 2 * C:]
    q = q.reshape(B, S, num_heads, hd).transpose(0, 2, 1, 3) * (hd ** -0.5)
    k = k.reshape(B, S, num_heads, hd).transpose(0, 2, 1, 3)
    v = v.reshape(B, S, num_heads, hd).transpose(0, 2, 1, 3)
    p = jax.nn.softmax(q @ k.transpose(0, 1, 3, 2), axis=-1)
    attn = (p @ v).transpose(0, 2, 1, 3).reshape(B, S, C)
    attn = attn @ params["wo"].T + params["bo"]
    x2 = x1 + attn
    x3 = _ln_ref(x2, params["ln2_g"], params["ln2_b"])
    h1 = jax.nn.gelu(x3 @ params["w1"].T + params["b1"], approximate=False)
    mlp = h1 @ params["w2"].T + params["b2"]
    return (x3 + mlp).reshape(B, H, W, C)


if __name__ == "__main__":
    B, H, W, C = 2, 8, 8, 32
    num_heads = 4

    key = jax.random.PRNGKey(0)
    kx, kp = jax.random.split(key)
    x = jax.random.normal(kx, (B, H, W, C), jnp.float32)
    params = init_params(kp, C, num_heads)

    out = jax.block_until_ready(swin_block(x, params, num_heads))

    ref = swin_block_ref(x, params, num_heads)
    assert out.shape == (B, H, W, C)
    # bf16 MXU operands (f32 accumulation) + approx softmax reciprocal +
    # tanh-form GELU vs the exact-erf reference -> slightly loosened tolerance.
    assert jnp.allclose(out, ref, atol=5e-3, rtol=5e-3), "mismatch vs JAX reference"

    print("KERNEL_OK")
</pallas_src>

<mosaic_0001>
module attributes {stable_mosaic.version = 11 : i64} {
  func.func @_ln1_qkv_kernel(%arg0: i32, %arg1: i32, %arg2: memref<1x64x128xf32, #tpu.memory_space<vmem>>, %arg3: memref<1x128xf32, #tpu.memory_space<vmem>>, %arg4: memref<1x128xf32, #tpu.memory_space<vmem>>, %arg5: memref<128x128xbf16, #tpu.memory_space<vmem>>, %arg6: memref<1x128xf32, #tpu.memory_space<vmem>>, %arg7: memref<128x128xbf16, #tpu.memory_space<vmem>>, %arg8: memref<1x128xf32, #tpu.memory_space<vmem>>, %arg9: memref<128x128xbf16, #tpu.memory_space<vmem>>, %arg10: memref<1x128xf32, #tpu.memory_space<vmem>>, %arg11: memref<1x64x128xf32, #tpu.memory_space<vmem>>, %arg12: memref<1x64x128xbf16, #tpu.memory_space<vmem>>, %arg13: memref<1x64x128xbf16, #tpu.memory_space<vmem>>, %arg14: memref<1x64x128xbf16, #tpu.memory_space<vmem>>) attributes {dimension_semantics = [#tpu.dimension_semantics<parallel>, #tpu.dimension_semantics<parallel>], iteration_bounds = array<i64: 2, 1>, scalar_prefetch = 0 : i64, scratch_operands = 0 : i64, tpu.core_type = #tpu.core_type<tc>, window_params = [{transform_indices = @transform_0, window_bounds = array<i64: 1, 64, 128>}, {pipeline_mode = #tpu.pipeline_mode<synchronous>, transform_indices = @transform_1, window_bounds = array<i64: 1, 128>}, {pipeline_mode = #tpu.pipeline_mode<synchronous>, transform_indices = @transform_2, window_bounds = array<i64: 1, 128>}, {pipeline_mode = #tpu.pipeline_mode<synchronous>, transform_indices = @transform_3, window_bounds = array<i64: 128, 128>}, {pipeline_mode = #tpu.pipeline_mode<synchronous>, transform_indices = @transform_4, window_bounds = array<i64: 1, 128>}, {pipeline_mode = #tpu.pipeline_mode<synchronous>, transform_indices = @transform_5, window_bounds = array<i64: 128, 128>}, {pipeline_mode = #tpu.pipeline_mode<synchronous>, transform_indices = @transform_6, window_bounds = array<i64: 1, 128>}, {pipeline_mode = #tpu.pipeline_mode<synchronous>, transform_indices = @transform_7, window_bounds = array<i64: 128, 128>}, {pipeline_mode = #tpu.pipeline_mode<synchronous>, transform_indices = @transform_8, window_bounds = array<i64: 1, 128>}, {transform_indices = @transform_9, window_bounds = array<i64: 1, 64, 128>}, {transform_indices = @transform_10, window_bounds = array<i64: 1, 64, 128>}, {transform_indices = @transform_11, window_bounds = array<i64: 1, 64, 128>}, {transform_indices = @transform_12, window_bounds = array<i64: 1, 64, 128>}]} {
    %0 = tpu.iota {dimensions = array<i32: 1>} : vector<1x128xi32>
    %c32_i32 = arith.constant 32 : i32
    %1 = vector.broadcast %c32_i32 : i32 to vector<1x128xi32>
    %2 = arith.cmpi slt, %0, %1 : vector<1x128xi32>
    %3 = arith.extui %2 : vector<1x128xi1> to vector<1x128xi32>
    %4 = arith.sitofp %3 : vector<1x128xi32> to vector<1x128xf32>
    %c0 = arith.constant 0 : index
    %c0_0 = arith.constant 0 : index
    %c0_1 = arith.constant 0 : index
    %5 = vector.load %arg2[%c0, %c0_0, %c0_1] : memref<1x64x128xf32, #tpu.memory_space<vmem>>, vector<1x64x128xf32>
    %6 = vector.shape_cast %5 : vector<1x64x128xf32> to vector<64x128xf32>
    %c0_2 = arith.constant 0 : index
    %c0_3 = arith.constant 0 : index
    %7 = vector.load %arg3[%c0_2, %c0_3] : memref<1x128xf32, #tpu.memory_space<vmem>>, vector<1x128xf32>
    %c0_4 = arith.constant 0 : index
    %c0_5 = arith.constant 0 : index
    %8 = vector.load %arg4[%c0_4, %c0_5] : memref<1x128xf32, #tpu.memory_space<vmem>>, vector<1x128xf32>
    %cst = arith.constant dense<0.000000e+00> : vector<64xf32>
    %9 = vector.multi_reduction <add>, %6, %cst [1] : vector<64x128xf32> to vector<64xf32>
    %10 = vector.shape_cast %9 : vector<64xf32> to vector<64x1xf32>
    %cst_6 = arith.constant 3.125000e-02 : f32
    %11 = vector.broadcast %cst_6 : f32 to vector<64x1xf32>
    %12 = arith.mulf %10, %11 : vector<64x1xf32>
    %13 = vector.broadcast %12 : vector<64x1xf32> to vector<64x128xf32>
    %14 = arith.subf %6, %13 : vector<64x128xf32>
    %15 = vector.broadcast %4 : vector<1x128xf32> to vector<64x128xf32>
    %16 = arith.mulf %14, %15 : vector<64x128xf32>
    %17 = arith.mulf %16, %16 : vector<64x128xf32>
    %cst_7 = arith.constant dense<0.000000e+00> : vector<64xf32>
    %18 = vector.multi_reduction <add>, %17, %cst_7 [1] : vector<64x128xf32> to vector<64xf32>
    %19 = vector.shape_cast %18 : vector<64xf32> to vector<64x1xf32>
    %cst_8 = arith.constant 3.125000e-02 : f32
    %20 = vector.broadcast %cst_8 : f32 to vector<64x1xf32>
    %21 = arith.mulf %19, %20 : vector<64x1xf32>
    %cst_9 = arith.constant 9.99999974E-6 : f32
    %22 = vector.broadcast %cst_9 : f32 to vector<64x1xf32>
    %23 = arith.addf %21, %22 : vector<64x1xf32>
    %24 = math.rsqrt %23 : vector<64x1xf32>
    %25 = vector.broadcast %24 : vector<64x1xf32> to vector<64x128xf32>
    %26 = arith.mulf %16, %25 : vector<64x128xf32>
    %27 = vector.broadcast %7 : vector<1x128xf32> to vector<64x128xf32>
    %28 = arith.mulf %26, %27 : vector<64x128xf32>
    %29 = vector.broadcast %8 : vector<1x128xf32> to vector<64x128xf32>
    %30 = arith.addf %28, %29 : vector<64x128xf32>
    %c0_10 = arith.constant 0 : index
    %c0_11 = arith.constant 0 : index
    %c0_12 = arith.constant 0 : index
    %31 = vector.load %arg11[%c0_10, %c0_11, %c0_12] : memref<1x64x128xf32, #tpu.memory_space<vmem>>, vector<1x64x128xf32>
    %32 = vector.shape_cast %31 : vector<1x64x128xf32> to vector<64x128xf32>
    %33 = vector.shape_cast %30 : vector<64x128xf32> to vector<1x64x128xf32>
    tpu.vector_store %arg11[%c0_10, %c0_11, %c0_12], %33 {strides = array<i32>} : memref<1x64x128xf32, #tpu.memory_space<vmem>>, vector<1x64x128xf32>,
    %34 = arith.truncf %30 : vector<64x128xf32> to vector<64x128xbf16>
    %c0_13 = arith.constant 0 : index
    %c0_14 = arith.constant 0 : index
    %35 = vector.load %arg5[%c0_13, %c0_14] : memref<128x128xbf16, #tpu.memory_space<vmem>>, vector<128x128xbf16>
    %cst_15 = arith.constant dense<0.000000e+00> : vector<64x128xf32>
    %36 = tpu.matmul %34, %35, %cst_15 {dimension_numbers = #tpu.dot_dimension_numbers<[1], [0], [0], [1], [0, 0, 1, 1], [], []>} : vector<64x128xbf16>, vector<128x128xbf16>, vector<64x128xf32> -> vector<64x128xf32>
    %c0_16 = arith.constant 0 : index
    %c0_17 = arith.constant 0 : index
    %37 = vector.load %arg6[%c0_16, %c0_17] : memref<1x128xf32, #tpu.memory_space<vmem>>, vector<1x128xf32>
    %38 = vector.broadcast %37 : vector<1x128xf32> to vector<64x128xf32>
    %39 = arith.addf %36, %38 : vector<64x128xf32>
    %40 = arith.truncf %39 : vector<64x128xf32> to vector<64x128xbf16>
    %c0_18 = arith.constant 0 : index
    %c0_19 = arith.constant 0 : index
    %c0_20 = arith.constant 0 : index
    %41 = vector.load %arg12[%c0_18, %c0_19, %c0_20] : memref<1x64x128xbf16, #tpu.memory_space<vmem>>, vector<1x64x128xbf16>
    %42 = vector.shape_cast %41 : vector<1x64x128xbf16> to vector<64x128xbf16>
    %43 = vector.shape_cast %40 : vector<64x128xbf16> to vector<1x64x128xbf16>
    tpu.vector_store %arg12[%c0_18, %c0_19, %c0_20], %43 {strides = array<i32>} : memref<1x64x128xbf16, #tpu.memory_space<vmem>>, vector<1x64x128xbf16>,
    %c0_21 = arith.constant 0 : index
    %c0_22 = arith.constant 0 : index
    %44 = vector.load %arg7[%c0_21, %c0_22] : memref<128x128xbf16, #tpu.memory_space<vmem>>, vector<128x128xbf16>
    %cst_23 = arith.constant dense<0.000000e+00> : vector<64x128xf32>
    %45 = tpu.matmul %34, %44, %cst_23 {dimension_numbers = #tpu.dot_dimension_numbers<[1], [0], [0], [1], [0, 0, 1, 1], [], []>} : vector<64x128xbf16>, vector<128x128xbf16>, vector<64x128xf32> -> vector<64x128xf32>
    %c0_24 = arith.constant 0 : index
    %c0_25 = arith.constant 0 : index
    %46 = vector.load %arg8[%c0_24, %c0_25] : memref<1x128xf32, #tpu.memory_space<vmem>>, vector<1x128xf32>
    %47 = vector.broadcast %46 : vector<1x128xf32> to vector<64x128xf32>
    %48 = arith.addf %45, %47 : vector<64x128xf32>
    %49 = arith.truncf %48 : vector<64x128xf32> to vector<64x128xbf16>
    %c0_26 = arith.constant 0 : index
    %c0_27 = arith.constant 0 : index
    %c0_28 = arith.constant 0 : index
    %50 = vector.load %arg13[%c0_26, %c0_27, %c0_28] : memref<1x64x128xbf16, #tpu.memory_space<vmem>>, vector<1x64x128xbf16>
    %51 = vector.shape_cast %50 : vector<1x64x128xbf16> to vector<64x128xbf16>
    %52 = vector.shape_cast %49 : vector<64x128xbf16> to vector<1x64x128xbf16>
    tpu.vector_store %arg13[%c0_26, %c0_27, %c0_28], %52 {strides = array<i32>} : memref<1x64x128xbf16, #tpu.memory_space<vmem>>, vector<1x64x128xbf16>,
    %c0_29 = arith.constant 0 : index
    %c0_30 = arith.constant 0 : index
    %53 = vector.load %arg9[%c0_29, %c0_30] : memref<128x128xbf16, #tpu.memory_space<vmem>>, vector<128x128xbf16>
    %cst_31 = arith.constant dense<0.000000e+00> : vector<64x128xf32>
    %54 = tpu.matmul %34, %53, %cst_31 {dimension_numbers = #tpu.dot_dimension_numbers<[1], [0], [0], [1], [0, 0, 1, 1], [], []>} : vector<64x128xbf16>, vector<128x128xbf16>, vector<64x128xf32> -> vector<64x128xf32>
    %c0_32 = arith.constant 0 : index
    %c0_33 = arith.constant 0 : index
    %55 = vector.load %arg10[%c0_32, %c0_33] : memref<1x128xf32, #tpu.memory_space<vmem>>, vector<1x128xf32>
    %56 = vector.broadcast %55 : vector<1x128xf32> to vector<64x128xf32>
    %57 = arith.addf %54, %56 : vector<64x128xf32>
    %58 = arith.truncf %57 : vector<64x128xf32> to vector<64x128xbf16>
    %c0_34 = arith.constant 0 : index
    %c0_35 = arith.constant 0 : index
    %c0_36 = arith.constant 0 : index
    %59 = vector.load %arg14[%c0_34, %c0_35, %c0_36] : memref<1x64x128xbf16, #tpu.memory_space<vmem>>, vector<1x64x128xbf16>
    %60 = vector.shape_cast %59 : vector<1x64x128xbf16> to vector<64x128xbf16>
    %61 = vector.shape_cast %58 : vector<64x128xbf16> to vector<1x64x128xbf16>
    tpu.vector_store %arg14[%c0_34, %c0_35, %c0_36], %61 {strides = array<i32>} : memref<1x64x128xbf16, #tpu.memory_space<vmem>>, vector<1x64x128xbf16>,
    return
  }
  func.func @transform_0(%arg0: i32, %arg1: i32) -> (i32, i32, i32) {
    %c0_i32 = arith.constant 0 : i32
    %c0_i32_0 = arith.constant 0 : i32
    return %arg0, %arg1, %c0_i32 : i32, i32, i32
  }
  func.func @transform_1(%arg0: i32, %arg1: i32) -> (i32, i32) {
    %c0_i32 = arith.constant 0 : i32
    %c0_i32_0 = arith.constant 0 : i32
    %c0_i32_1 = arith.constant 0 : i32
    return %c0_i32, %c0_i32_0 : i32, i32
  }
  func.func @transform_2(%arg0: i32, %arg1: i32) -> (i32, i32) {
    %c0_i32 = arith.constant 0 : i32
    %c0_i32_0 = arith.constant 0 : i32
    %c0_i32_1 = arith.constant 0 : i32
    return %c0_i32, %c0_i32_0 : i32, i32
  }
  func.func @transform_3(%arg0: i32, %arg1: i32) -> (i32, i32) {
    %c0_i32 = arith.constant 0 : i32
    %c0_i32_0 = arith.constant 0 : i32
    %c0_i32_1 = arith.constant 0 : i32
    return %c0_i32, %c0_i32_0 : i32, i32
  }
  func.func @transform_4(%arg0: i32, %arg1: i32) -> (i32, i32) {
    %c0_i32 = arith.constant 0 : i32
    %c0_i32_0 = arith.constant 0 : i32
    %c0_i32_1 = arith.constant 0 : i32
    return %c0_i32, %c0_i32_0 : i32, i32
  }
  func.func @transform_5(%arg0: i32, %arg1: i32) -> (i32, i32) {
    %c0_i32 = arith.constant 0 : i32
    %c0_i32_0 = arith.constant 0 : i32
    %c0_i32_1 = arith.constant 0 : i32
    return %c0_i32, %c0_i32_0 : i32, i32
  }
  func.func @transform_6(%arg0: i32, %arg1: i32) -> (i32, i32) {
    %c0_i32 = arith.constant 0 : i32
    %c0_i32_0 = arith.constant 0 : i32
    %c0_i32_1 = arith.constant 0 : i32
    return %c0_i32, %c0_i32_0 : i32, i32
  }
  func.func @transform_7(%arg0: i32, %arg1: i32) -> (i32, i32) {
    %c0_i32 = arith.constant 0 : i32
    %c0_i32_0 = arith.constant 0 : i32
    %c0_i32_1 = arith.constant 0 : i32
    return %c0_i32, %c0_i32_0 : i32, i32
  }
  func.func @transform_8(%arg0: i32, %arg1: i32) -> (i32, i32) {
    %c0_i32 = arith.constant 0 : i32
    %c0_i32_0 = arith.constant 0 : i32
    %c0_i32_1 = arith.constant 0 : i32
    return %c0_i32, %c0_i32_0 : i32, i32
  }
  func.func @transform_9(%arg0: i32, %arg1: i32) -> (i32, i32, i32) {
    %c0_i32 = arith.constant 0 : i32
    %c0_i32_0 = arith.constant 0 : i32
    return %arg0, %arg1, %c0_i32 : i32, i32, i32
  }
  func.func @transform_10(%arg0: i32, %arg1: i32) -> (i32, i32, i32) {
    %c0_i32 = arith.constant 0 : i32
    %c0_i32_0 = arith.constant 0 : i32
    return %arg0, %arg1, %c0_i32 : i32, i32, i32
  }
  func.func @transform_11(%arg0: i32, %arg1: i32) -> (i32, i32, i32) {
    %c0_i32 = arith.constant 0 : i32
    %c0_i32_0 = arith.constant 0 : i32
    return %arg0, %arg1, %c0_i32 : i32, i32, i32
  }
  func.func @transform_12(%arg0: i32, %arg1: i32) -> (i32, i32, i32) {
    %c0_i32 = arith.constant 0 : i32
    %c0_i32_0 = arith.constant 0 : i32
    return %arg0, %arg1, %c0_i32 : i32, i32, i32
  }
}

module attributes {stable_mosaic.version = 11 : i64} {
  func.func @_ln1_qkv_kernel(%arg0: i32, %arg1: i32, %arg2: memref<1x64x128xf32, #tpu.memory_space<vmem>>, %arg3: memref<1x128xf32, #tpu.memory_space<vmem>>, %arg4: memref<1x128xf32, #tpu.memory_space<vmem>>, %arg5: memref<128x128xbf16, #tpu.memory_space<vmem>>, %arg6: memref<1x128xf32, #tpu.memory_space<vmem>>, %arg7: memref<128x128xbf16, #tpu.memory_space<vmem>>, %arg8: memref<1x128xf32, #tpu.memory_space<vmem>>, %arg9: memref<128x128xbf16, #tpu.memory_space<vmem>>, %arg10: memref<1x128xf32, #tpu.memory_space<vmem>>, %arg11: memref<1x64x128xf32, #tpu.memory_space<vmem>>, %arg12: memref<1x64x128xbf16, #tpu.memory_space<vmem>>, %arg13: memref<1x64x128xbf16, #tpu.memory_space<vmem>>, %arg14: memref<1x64x128xbf16, #tpu.memory_space<vmem>>) attributes {dimension_semantics = [#tpu.dimension_semantics<parallel>, #tpu.dimension_semantics<parallel>], iteration_bounds = array<i64: 2, 1>, scalar_prefetch = 0 : i64, scratch_operands = 0 : i64, tpu.core_type = #tpu.core_type<tc>, window_params = [{transform_indices = @transform_0, window_bounds = array<i64: 1, 64, 128>}, {pipeline_mode = #tpu.pipeline_mode<synchronous>, transform_indices = @transform_1, window_bounds = array<i64: 1, 128>}, {pipeline_mode = #tpu.pipeline_mode<synchronous>, transform_indices = @transform_2, window_bounds = array<i64: 1, 128>}, {pipeline_mode = #tpu.pipeline_mode<synchronous>, transform_indices = @transform_3, window_bounds = array<i64: 128, 128>}, {pipeline_mode = #tpu.pipeline_mode<synchronous>, transform_indices = @transform_4, window_bounds = array<i64: 1, 128>}, {pipeline_mode = #tpu.pipeline_mode<synchronous>, transform_indices = @transform_5, window_bounds = array<i64: 128, 128>}, {pipeline_mode = #tpu.pipeline_mode<synchronous>, transform_indices = @transform_6, window_bounds = array<i64: 1, 128>}, {pipeline_mode = #tpu.pipeline_mode<synchronous>, transform_indices = @transform_7, window_bounds = array<i64: 128, 128>}, {pipeline_mode = #tpu.pipeline_mode<synchronous>, transform_indices = @transform_8, window_bounds = array<i64: 1, 128>}, {transform_indices = @transform_9, window_bounds = array<i64: 1, 64, 128>}, {transform_indices = @transform_10, window_bounds = array<i64: 1, 64, 128>}, {transform_indices = @transform_11, window_bounds = array<i64: 1, 64, 128>}, {transform_indices = @transform_12, window_bounds = array<i64: 1, 64, 128>}]} {
    %0 = tpu.iota {dimensions = array<i32: 1>} : vector<1x128xi32>
    %c32_i32 = arith.constant 32 : i32
    %1 = vector.broadcast %c32_i32 : i32 to vector<1x128xi32>
    %2 = arith.cmpi slt, %0, %1 : vector<1x128xi32>
    %3 = arith.extui %2 : vector<1x128xi1> to vector<1x128xi32>
    %4 = arith.sitofp %3 : vector<1x128xi32> to vector<1x128xf32>
    %c0 = arith.constant 0 : index
    %c0_0 = arith.constant 0 : index
    %c0_1 = arith.constant 0 : index
    %5 = vector.load %arg2[%c0, %c0_0, %c0_1] : memref<1x64x128xf32, #tpu.memory_space<vmem>>, vector<1x64x128xf32>
    %6 = vector.shape_cast %5 : vector<1x64x128xf32> to vector<64x128xf32>
    %c0_2 = arith.constant 0 : index
    %c0_3 = arith.constant 0 : index
    %7 = vector.load %arg3[%c0_2, %c0_3] : memref<1x128xf32, #tpu.memory_space<vmem>>, vector<1x128xf32>
    %c0_4 = arith.constant 0 : index
    %c0_5 = arith.constant 0 : index
    %8 = vector.load %arg4[%c0_4, %c0_5] : memref<1x128xf32, #tpu.memory_space<vmem>>, vector<1x128xf32>
    %cst = arith.constant dense<0.000000e+00> : vector<64xf32>
    %9 = vector.multi_reduction <add>, %6, %cst [1] : vector<64x128xf32> to vector<64xf32>
    %10 = vector.shape_cast %9 : vector<64xf32> to vector<64x1xf32>
    %cst_6 = arith.constant 3.125000e-02 : f32
    %11 = vector.broadcast %cst_6 : f32 to vector<64x1xf32>
    %12 = arith.mulf %10, %11 : vector<64x1xf32>
    %13 = vector.broadcast %12 : vector<64x1xf32> to vector<64x128xf32>
    %14 = arith.subf %6, %13 : vector<64x128xf32>
    %15 = vector.broadcast %4 : vector<1x128xf32> to vector<64x128xf32>
    %16 = arith.mulf %14, %15 : vector<64x128xf32>
    %17 = arith.mulf %16, %16 : vector<64x128xf32>
    %cst_7 = arith.constant dense<0.000000e+00> : vector<64xf32>
    %18 = vector.multi_reduction <add>, %17, %cst_7 [1] : vector<64x128xf32> to vector<64xf32>
    %19 = vector.shape_cast %18 : vector<64xf32> to vector<64x1xf32>
    %cst_8 = arith.constant 3.125000e-02 : f32
    %20 = vector.broadcast %cst_8 : f32 to vector<64x1xf32>
    %21 = arith.mulf %19, %20 : vector<64x1xf32>
    %cst_9 = arith.constant 9.99999974E-6 : f32
    %22 = vector.broadcast %cst_9 : f32 to vector<64x1xf32>
    %23 = arith.addf %21, %22 : vector<64x1xf32>
    %24 = math.rsqrt %23 : vector<64x1xf32>
    %25 = vector.broadcast %24 : vector<64x1xf32> to vector<64x128xf32>
    %26 = arith.mulf %16, %25 : vector<64x128xf32>
    %27 = vector.broadcast %7 : vector<1x128xf32> to vector<64x128xf32>
    %28 = arith.mulf %26, %27 : vector<64x128xf32>
    %29 = vector.broadcast %8 : vector<1x128xf32> to vector<64x128xf32>
    %30 = arith.addf %28, %29 : vector<64x128xf32>
    %c0_10 = arith.constant 0 : index
    %c0_11 = arith.constant 0 : index
    %c0_12 = arith.constant 0 : index
    %31 = vector.load %arg11[%c0_10, %c0_11, %c0_12] : memref<1x64x128xf32, #tpu.memory_space<vmem>>, vector<1x64x128xf32>
    %32 = vector.shape_cast %31 : vector<1x64x128xf32> to vector<64x128xf32>
    %33 = vector.shape_cast %30 : vector<64x128xf32> to vector<1x64x128xf32>
    tpu.vector_store %arg11[%c0_10, %c0_11, %c0_12], %33 {strides = array<i32>} : memref<1x64x128xf32, #tpu.memory_space<vmem>>, vector<1x64x128xf32>,
    %34 = arith.truncf %30 : vector<64x128xf32> to vector<64x128xbf16>
    %c0_13 = arith.constant 0 : index
    %c0_14 = arith.constant 0 : index
    %35 = vector.load %arg5[%c0_13, %c0_14] : memref<128x128xbf16, #tpu.memory_space<vmem>>, vector<128x128xbf16>
    %cst_15 = arith.constant dense<0.000000e+00> : vector<64x128xf32>
    %36 = tpu.matmul %34, %35, %cst_15 {dimension_numbers = #tpu.dot_dimension_numbers<[1], [0], [0], [1], [0, 0, 1, 1], [], []>} : vector<64x128xbf16>, vector<128x128xbf16>, vector<64x128xf32> -> vector<64x128xf32>
    %c0_16 = arith.constant 0 : index
    %c0_17 = arith.constant 0 : index
    %37 = vector.load %arg6[%c0_16, %c0_17] : memref<1x128xf32, #tpu.memory_space<vmem>>, vector<1x128xf32>
    %38 = vector.broadcast %37 : vector<1x128xf32> to vector<64x128xf32>
    %39 = arith.addf %36, %38 : vector<64x128xf32>
    %40 = arith.truncf %39 : vector<64x128xf32> to vector<64x128xbf16>
    %c0_18 = arith.constant 0 : index
    %c0_19 = arith.constant 0 : index
    %c0_20 = arith.constant 0 : index
    %41 = vector.load %arg12[%c0_18, %c0_19, %c0_20] : memref<1x64x128xbf16, #tpu.memory_space<vmem>>, vector<1x64x128xbf16>
    %42 = vector.shape_cast %41 : vector<1x64x128xbf16> to vector<64x128xbf16>
    %43 = vector.shape_cast %40 : vector<64x128xbf16> to vector<1x64x128xbf16>
    tpu.vector_store %arg12[%c0_18, %c0_19, %c0_20], %43 {strides = array<i32>} : memref<1x64x128xbf16, #tpu.memory_space<vmem>>, vector<1x64x128xbf16>,
    %c0_21 = arith.constant 0 : index
    %c0_22 = arith.constant 0 : index
    %44 = vector.load %arg7[%c0_21, %c0_22] : memref<128x128xbf16, #tpu.memory_space<vmem>>, vector<128x128xbf16>
    %cst_23 = arith.constant dense<0.000000e+00> : vector<64x128xf32>
    %45 = tpu.matmul %34, %44, %cst_23 {dimension_numbers = #tpu.dot_dimension_numbers<[1], [0], [0], [1], [0, 0, 1, 1], [], []>} : vector<64x128xbf16>, vector<128x128xbf16>, vector<64x128xf32> -> vector<64x128xf32>
    %c0_24 = arith.constant 0 : index
    %c0_25 = arith.constant 0 : index
    %46 = vector.load %arg8[%c0_24, %c0_25] : memref<1x128xf32, #tpu.memory_space<vmem>>, vector<1x128xf32>
    %47 = vector.broadcast %46 : vector<1x128xf32> to vector<64x128xf32>
    %48 = arith.addf %45, %47 : vector<64x128xf32>
    %49 = arith.truncf %48 : vector<64x128xf32> to vector<64x128xbf16>
    %c0_26 = arith.constant 0 : index
    %c0_27 = arith.constant 0 : index
    %c0_28 = arith.constant 0 : index
    %50 = vector.load %arg13[%c0_26, %c0_27, %c0_28] : memref<1x64x128xbf16, #tpu.memory_space<vmem>>, vector<1x64x128xbf16>
    %51 = vector.shape_cast %50 : vector<1x64x128xbf16> to vector<64x128xbf16>
    %52 = vector.shape_cast %49 : vector<64x128xbf16> to vector<1x64x128xbf16>
    tpu.vector_store %arg13[%c0_26, %c0_27, %c0_28], %52 {strides = array<i32>} : memref<1x64x128xbf16, #tpu.memory_space<vmem>>, vector<1x64x128xbf16>,
    %c0_29 = arith.constant 0 : index
    %c0_30 = arith.constant 0 : index
    %53 = vector.load %arg9[%c0_29, %c0_30] : memref<128x128xbf16, #tpu.memory_space<vmem>>, vector<128x128xbf16>
    %cst_31 = arith.constant dense<0.000000e+00> : vector<64x128xf32>
    %54 = tpu.matmul %34, %53, %cst_31 {dimension_numbers = #tpu.dot_dimension_numbers<[1], [0], [0], [1], [0, 0, 1, 1], [], []>} : vector<64x128xbf16>, vector<128x128xbf16>, vector<64x128xf32> -> vector<64x128xf32>
    %c0_32 = arith.constant 0 : index
    %c0_33 = arith.constant 0 : index
    %55 = vector.load %arg10[%c0_32, %c0_33] : memref<1x128xf32, #tpu.memory_space<vmem>>, vector<1x128xf32>
    %56 = vector.broadcast %55 : vector<1x128xf32> to vector<64x128xf32>
    %57 = arith.addf %54, %56 : vector<64x128xf32>
    %58 = arith.truncf %57 : vector<64x128xf32> to vector<64x128xbf16>
    %c0_34 = arith.constant 0 : index
    %c0_35 = arith.constant 0 : index
    %c0_36 = arith.constant 0 : index
    %59 = vector.load %arg14[%c0_34, %c0_35, %c0_36] : memref<1x64x128xbf16, #tpu.memory_space<vmem>>, vector<1x64x128xbf16>
    %60 = vector.shape_cast %59 : vector<1x64x128xbf16> to vector<64x128xbf16>
    %61 = vector.shape_cast %58 : vector<64x128xbf16> to vector<1x64x128xbf16>
    tpu.vector_store %arg14[%c0_34, %c0_35, %c0_36], %61 {strides = array<i32>} : memref<1x64x128xbf16, #tpu.memory_space<vmem>>, vector<1x64x128xbf16>,
    return
  }
  func.func @transform_0(%arg0: i32, %arg1: i32) -> (i32, i32, i32) {
    %c0_i32 = arith.constant 0 : i32
    %c0_i32_0 = arith.constant 0 : i32
    return %arg0, %arg1, %c0_i32 : i32, i32, i32
  }
  func.func @transform_1(%arg0: i32, %arg1: i32) -> (i32, i32) {
    %c0_i32 = arith.constant 0 : i32
    %c0_i32_0 = arith.constant 0 : i32
    %c0_i32_1 = arith.constant 0 : i32
    return %c0_i32, %c0_i32_0 : i32, i32
  }
  func.func @transform_2(%arg0: i32, %arg1: i32) -> (i32, i32) {
    %c0_i32 = arith.constant 0 : i32
    %c0_i32_0 = arith.constant 0 : i32
    %c0_i32_1 = arith.constant 0 : i32
    return %c0_i32, %c0_i32_0 : i32, i32
  }
  func.func @transform_3(%arg0: i32, %arg1: i32) -> (i32, i32) {
    %c0_i32 = arith.constant 0 : i32
    %c0_i32_0 = arith.constant 0 : i32
    %c0_i32_1 = arith.constant 0 : i32
    return %c0_i32, %c0_i32_0 : i32, i32
  }
  func.func @transform_4(%arg0: i32, %arg1: i32) -> (i32, i32) {
    %c0_i32 = arith.constant 0 : i32
    %c0_i32_0 = arith.constant 0 : i32
    %c0_i32_1 = arith.constant 0 : i32
    return %c0_i32, %c0_i32_0 : i32, i32
  }
  func.func @transform_5(%arg0: i32, %arg1: i32) -> (i32, i32) {
    %c0_i32 = arith.constant 0 : i32
    %c0_i32_0 = arith.constant 0 : i32
    %c0_i32_1 = arith.constant 0 : i32
    return %c0_i32, %c0_i32_0 : i32, i32
  }
  func.func @transform_6(%arg0: i32, %arg1: i32) -> (i32, i32) {
    %c0_i32 = arith.constant 0 : i32
    %c0_i32_0 = arith.constant 0 : i32
    %c0_i32_1 = arith.constant 0 : i32
    return %c0_i32, %c0_i32_0 : i32, i32
  }
  func.func @transform_7(%arg0: i32, %arg1: i32) -> (i32, i32) {
    %c0_i32 = arith.constant 0 : i32
    %c0_i32_0 = arith.constant 0 : i32
    %c0_i32_1 = arith.constant 0 : i32
    return %c0_i32, %c0_i32_0 : i32, i32
  }
  func.func @transform_8(%arg0: i32, %arg1: i32) -> (i32, i32) {
    %c0_i32 = arith.constant 0 : i32
    %c0_i32_0 = arith.constant 0 : i32
    %c0_i32_1 = arith.constant 0 : i32
    return %c0_i32, %c0_i32_0 : i32, i32
  }
  func.func @transform_9(%arg0: i32, %arg1: i32) -> (i32, i32, i32) {
    %c0_i32 = arith.constant 0 : i32
    %c0_i32_0 = arith.constant 0 : i32
    return %arg0, %arg1, %c0_i32 : i32, i32, i32
  }
  func.func @transform_10(%arg0: i32, %arg1: i32) -> (i32, i32, i32) {
    %c0_i32 = arith.constant 0 : i32
    %c0_i32_0 = arith.constant 0 : i32
    return %arg0, %arg1, %c0_i32 : i32, i32, i32
  }
  func.func @transform_11(%arg0: i32, %arg1: i32) -> (i32, i32, i32) {
    %c0_i32 = arith.constant 0 : i32
    %c0_i32_0 = arith.constant 0 : i32
    return %arg0, %arg1, %c0_i32 : i32, i32, i32
  }
  func.func @transform_12(%arg0: i32, %arg1: i32) -> (i32, i32, i32) {
    %c0_i32 = arith.constant 0 : i32
    %c0_i32_0 = arith.constant 0 : i32
    return %arg0, %arg1, %c0_i32 : i32, i32, i32
  }
}

</mosaic_0001>

<llo_original>
// kernel: tpu_custom_call.1
$region0: #{tpu_custom_call.1}
  #allocation0 [shape = 'u32[]', space=smem, size = 0x4, offset = 0x4, fixed_abs, tag = 'smem constant byte address 0x4 - core index']
  #allocation1 [shape = 'u32[144,128]{1,0:T(1,128)}', space=vmem, size = 0x12000, scoped, tag = 'internal scratch']
  %s0 = inlined_call_operand.hbm [shape: f32[2,64,128], index: 0, kind: input, shape index: {}]
  %s1 = inlined_call_operand.vmem [shape: f32[1,128], index: 1, kind: input, shape index: {}]
  %s2 = inlined_call_operand.vmem [shape: f32[1,128], index: 2, kind: input, shape index: {}]
  %s3 = inlined_call_operand.hbm [shape: bf16[128,128], index: 3, kind: input, shape index: {}]
  %s4 = inlined_call_operand.vmem [shape: f32[1,128], index: 4, kind: input, shape index: {}]
  %s5 = inlined_call_operand.hbm [shape: bf16[128,128], index: 5, kind: input, shape index: {}]
  %s6 = inlined_call_operand.vmem [shape: f32[1,128], index: 6, kind: input, shape index: {}]
  %s7 = inlined_call_operand.hbm [shape: bf16[128,128], index: 7, kind: input, shape index: {}]
  %s8 = inlined_call_operand.vmem [shape: f32[1,128], index: 8, kind: input, shape index: {}]
  %s9 = inlined_call_operand.hbm [shape: f32[2,64,128], index: 9, kind: output, shape index: {0}]
  %s10 = inlined_call_operand.hbm [shape: bf16[2,64,128], index: 10, kind: output, shape index: {1}]
  %s11 = inlined_call_operand.hbm [shape: bf16[2,64,128], index: 11, kind: output, shape index: {2}]
  %s12 = inlined_call_operand.hbm [shape: bf16[2,64,128], index: 12, kind: output, shape index: {3}]
  %13 = xla_tuple %s9, %s10, %s11, %s12
  %s14 = sld [smem:[#allocation0]]
  $region109: #{tpu_custom_call.1} parent=0
    _
  %s16 = ssub.s32 1, %s14
  %s17 = scalar_select 0, %s16, %s14
  $region1: #{tpu_custom_call.1} parent=0
    #allocation2 [shape = 'u8[65536]{0}', space=vmem, size = 0x10000, scoped, tag = 'input window, operand 0']
    #allocation3 [shape = 's32[2]{0}', space=sflag, size = 0x8, scoped, tag = 'scoped memory for tpu_custom_call.1']
    #allocation4 [shape = 's32[2]{0}', space=sflag, size = 0x8, scoped, tag = 'scoped memory for tpu_custom_call.1']
    #allocation5 [shape = 'u8[32768]{0}', space=vmem, size = 0x8000, scoped, tag = 'input window, operand 3, single buffered']
    #allocation6 [shape = 's32[1]{0}', space=sflag, size = 0x4, scoped, tag = 'scoped memory for tpu_custom_call.1']
    #allocation7 [shape = 'u8[32768]{0}', space=vmem, size = 0x8000, scoped, tag = 'input window, operand 5, single buffered']
    #allocation8 [shape = 'u8[32768]{0}', space=vmem, size = 0x8000, scoped, tag = 'input window, operand 7, single buffered']
    #allocation9 [shape = 's32[1]{0}', space=sflag, size = 0x4, scoped, tag = 'scoped memory for tpu_custom_call.1']
    #allocation10 [shape = 'u8[65536]{0}', space=vmem, size = 0x10000, scoped, tag = 'output window, operand 0']
    #allocation11 [shape = 'u8[32768]{0}', space=vmem, size = 0x8000, scoped, tag = 'output window, operand 1']
    #allocation12 [shape = 's32[2]{0}', space=sflag, size = 0x8, scoped, tag = 'scoped memory for tpu_custom_call.1']
    #allocation13 [shape = 'u8[32768]{0}', space=vmem, size = 0x8000, scoped, tag = 'output window, operand 2']
    #allocation14 [shape = 'u8[32768]{0}', space=vmem, size = 0x8000, scoped, tag = 'output window, operand 3']
    #allocation15 [shape = 's32[2]{0}', space=sflag, size = 0x8, scoped, tag = 'scoped memory for tpu_custom_call.1']
    %18 = vsyncpa [#allocation3], 0
    %s19 = scalar_lea.sflag [#allocation3], 1
    %20 = vsyncpa %s19, 0
    %21 = vsyncpa [#allocation6], 0
    %22 = vsyncpa [#allocation9], 0
    %23 = vsyncpa [#allocation4], 0
    %s24 = scalar_lea.sflag [#allocation4], 1
    %25 = vsyncpa %s24, 0
    %26 = vsyncpa [#allocation12], 0
    %s27 = scalar_lea.sflag [#allocation12], 1
    %28 = vsyncpa %s27, 0
    %29 = vsyncpa [#allocation15], 0
    %s30 = scalar_lea.sflag [#allocation15], 1
    %31 = vsyncpa %s30, 0
    loop: start=0, step=1, limit=4
    $region2: #{tpu_custom_call.1} parent=1 // loop_pre_header
      _
    $region3: #{tpu_custom_call.1} parent=1 // loop_header
      %s33 = sphi 0, %s37
      %p34 = scmp.ge.s32.totalorder %s33, 4
      %s40 = sphi 0, %s52
      %s41 = sphi 0, %s48
      %s42 = sphi 0, %s40
      %s43 = sphi 0, %s41
      %s44 = sphi 0, %s42
      %s45 = sphi 0, %s43
      %s57 = sphi 0, %s59
      %s60 = sphi 0, %s57
      %s61 = sphi 0, %s60
      %s77 = sphi 0, %s61
      %s81 = sphi 0, %s81
      %s83 = sphi 0, %s81
      %s84 = sphi 0, %s83
      %s98 = sphi 0, %s84
      %s102 = sphi 0, %s102
      %s104 = sphi 0, %s102
      %s105 = sphi 0, %s104
      %s119 = sphi 0, %s105
      %s123 = sphi 0, %s123
      %s125 = sphi 0, %s123
      %s126 = sphi 0, %s125
      %s140 = sphi 0, %s126
      %s144 = sphi 0, %s144
      %s146 = sphi 0, %s144
      %s147 = sphi 0, %s146
      %s161 = sphi 0, %s147
      %s165 = sphi 0, %s165
      %s167 = sphi 0, %s165
      %s168 = sphi 0, %s167
      %s182 = sphi 0, %s168
      %s186 = sphi 0, %s186
      %s188 = sphi 0, %s186
      %s189 = sphi 0, %s188
      %s203 = sphi 0, %s189
      %s207 = sphi 0, %s207
      %s209 = sphi 0, %s207
      %s210 = sphi 0, %s209
      %s224 = sphi 0, %s210
      %s228 = sphi 0, %s228
      %s230 = sphi 0, %s228
      %s231 = sphi 0, %s230
      %s245 = sphi 0, %s231
      %s253 = sphi 0, %s255
      %s256 = sphi 0, %s253
      %s257 = sphi 0, %s256
      %s273 = sphi 0, %s257
      %s281 = sphi 0, %s283
      %s284 = sphi 0, %s281
      %s285 = sphi 0, %s284
      %s301 = sphi 0, %s285
      %s309 = sphi 0, %s311
      %s312 = sphi 0, %s309
      %s313 = sphi 0, %s312
      %s329 = sphi 0, %s313
      %s337 = sphi 0, %s339
      %s340 = sphi 0, %s337
      %s341 = sphi 0, %s340
      %s357 = sphi 0, %s341
    $region4: #{tpu_custom_call.1} parent=1 // loop_header_branch
      %36 = sbr.rel (%p34) target = $region8
    $region5: #{tpu_custom_call.1} parent=1 // loop_body
      %s38 = ssub.s32 %s33, 1
      %s39 = ssub.s32 %s33, 2
      %s46 = sadd.s32 1, %s41
      %p47 = scmp.ge.s32.totalorder %s46, 1
      %s48 = scalar_select %p47, 0, %s46
      %s49 = sadd.s32 1, %s40
      %s50 = scalar_select %p47, %s49, %s40
      %p51 = scmp.ge.s32.totalorder %s50, 2
      %s52 = scalar_select %p51, 0, %s50
      %s53 = ssub.s32 %s40, %s52
      %s54 = ssub.s32 %s41, %s48
      %s55 = sor.u32 %s53, %s54
      %p56 = scmp.eq.s32.totalorder %s55, 0
      %s58 = sadd.s32 %s57, 1
      %s59 = scalar_select %p56, %s57, %s58
      %p62 = pneg %p56
      %p63 = scmp.eq.s32.totalorder %s33, 1
      %p64 = por %p62, %p63
      %p65 = scmp.ne.s32.totalorder %s57, %s60
      %p66 = scmp.eq.s32.totalorder %s33, 0
      %p67 = por %p65, %p66
      %p68 = scmp.ne.s32.totalorder %s57, %s60
      %p69 = scmp.eq.s32.totalorder %s38, 1
      %p70 = por %p68, %p69
      %p71 = scmp.ne.s32.totalorder %s60, %s61
      %p72 = scmp.eq.s32.totalorder %s38, 0
      %p73 = por %p71, %p72
      %p74 = scmp.ne.s32.totalorder %s60, %s61
      %p75 = scmp.eq.s32.totalorder %s39, 1
      %p76 = por %p74, %p75
      %p78 = scmp.ne.s32.totalorder %s61, %s77
      %p79 = scmp.eq.s32.totalorder %s39, 0
      %p80 = por %p78, %p79
      %s82 = sadd.s32 %s81, 1
      %p85 = scmp.eq.s32.totalorder %s33, 1
      %p86 = scmp.ne.s32.totalorder %s81, %s83
      %p87 = scmp.eq.s32.totalorder %s33, 0
      %p88 = por %p86, %p87
      %p89 = scmp.ne.s32.totalorder %s81, %s83
      %p90 = scmp.eq.s32.totalorder %s38, 1
      %p91 = por %p89, %p90
      %p92 = scmp.ne.s32.totalorder %s83, %s84
      %p93 = scmp.eq.s32.totalorder %s38, 0
      %p94 = por %p92, %p93
      %p95 = scmp.ne.s32.totalorder %s83, %s84
      %p96 = scmp.eq.s32.totalorder %s39, 1
      %p97 = por %p95, %p96
      %p99 = scmp.ne.s32.totalorder %s84, %s98
      %p100 = scmp.eq.s32.totalorder %s39, 0
      %p101 = por %p99, %p100
      %s103 = sadd.s32 %s102, 1
      %p106 = scmp.eq.s32.totalorder %s33, 1
      %p107 = scmp.ne.s32.totalorder %s102, %s104
      %p108 = scmp.eq.s32.totalorder %s33, 0
      %p109 = por %p107, %p108
      %p110 = scmp.ne.s32.totalorder %s102, %s104
      %p111 = scmp.eq.s32.totalorder %s38, 1
      %p112 = por %p110, %p111
      %p113 = scmp.ne.s32.totalorder %s104, %s105
      %p114 = scmp.eq.s32.totalorder %s38, 0
      %p115 = por %p113, %p114
      %p116 = scmp.ne.s32.totalorder %s104, %s105
      %p117 = scmp.eq.s32.totalorder %s39, 1
      %p118 = por %p116, %p117
      %p120 = scmp.ne.s32.totalorder %s105, %s119
      %p121 = scmp.eq.s32.totalorder %s39, 0
      %p122 = por %p120, %p121
      %s124 = sadd.s32 %s123, 1
      %p127 = scmp.eq.s32.totalorder %s33, 1
      %p128 = scmp.ne.s32.totalorder %s123, %s125
      %p129 = scmp.eq.s32.totalorder %s33, 0
      %p130 = por %p128, %p129
      %p131 = scmp.ne.s32.totalorder %s123, %s125
      %p132 = scmp.eq.s32.totalorder %s38, 1
      %p133 = por %p131, %p132
      %p134 = scmp.ne.s32.totalorder %s125, %s126
      %p135 = scmp.eq.s32.totalorder %s38, 0
      %p136 = por %p134, %p135
      %p137 = scmp.ne.s32.totalorder %s125, %s126
      %p138 = scmp.eq.s32.totalorder %s39, 1
      %p139 = por %p137, %p138
      %p141 = scmp.ne.s32.totalorder %s126, %s140
      %p142 = scmp.eq.s32.totalorder %s39, 0
      %p143 = por %p141, %p142
      %s145 = sadd.s32 %s144, 1
      %p148 = scmp.eq.s32.totalorder %s33, 1
      %p149 = scmp.ne.s32.totalorder %s144, %s146
      %p150 = scmp.eq.s32.totalorder %s33, 0
      %p151 = por %p149, %p150
      %p152 = scmp.ne.s32.totalorder %s144, %s146
      %p153 = scmp.eq.s32.totalorder %s38, 1
      %p154 = por %p152, %p153
      %p155 = scmp.ne.s32.totalorder %s146, %s147
      %p156 = scmp.eq.s32.totalorder %s38, 0
      %p157 = por %p155, %p156
      %p158 = scmp.ne.s32.totalorder %s146, %s147
      %p159 = scmp.eq.s32.totalorder %s39, 1
      %p160 = por %p158, %p159
      %p162 = scmp.ne.s32.totalorder %s147, %s161
      %p163 = scmp.eq.s32.totalorder %s39, 0
      %p164 = por %p162, %p163
      %s166 = sadd.s32 %s165, 1
      %p169 = scmp.eq.s32.totalorder %s33, 1
      %p170 = scmp.ne.s32.totalorder %s165, %s167
      %p171 = scmp.eq.s32.totalorder %s33, 0
      %p172 = por %p170, %p171
      %p173 = scmp.ne.s32.totalorder %s165, %s167
      %p174 = scmp.eq.s32.totalorder %s38, 1
      %p175 = por %p173, %p174
      %p176 = scmp.ne.s32.totalorder %s167, %s168
      %p177 = scmp.eq.s32.totalorder %s38, 0
      %p178 = por %p176, %p177
      %p179 = scmp.ne.s32.totalorder %s167, %s168
      %p180 = scmp.eq.s32.totalorder %s39, 1
      %p181 = por %p179, %p180
      %p183 = scmp.ne.s32.totalorder %s168, %s182
      %p184 = scmp.eq.s32.totalorder %s39, 0
      %p185 = por %p183, %p184
      %s187 = sadd.s32 %s186, 1
      %p190 = scmp.eq.s32.totalorder %s33, 1
      %p191 = scmp.ne.s32.totalorder %s186, %s188
      %p192 = scmp.eq.s32.totalorder %s33, 0
      %p193 = por %p191, %p192
      %p194 = scmp.ne.s32.totalorder %s186, %s188
      %p195 = scmp.eq.s32.totalorder %s38, 1
      %p196 = por %p194, %p195
      %p197 = scmp.ne.s32.totalorder %s188, %s189
      %p198 = scmp.eq.s32.totalorder %s38, 0
      %p199 = por %p197, %p198
      %p200 = scmp.ne.s32.totalorder %s188, %s189
      %p201 = scmp.eq.s32.totalorder %s39, 1
      %p202 = por %p200, %p201
      %p204 = scmp.ne.s32.totalorder %s189, %s203
      %p205 = scmp.eq.s32.totalorder %s39, 0
      %p206 = por %p204, %p205
      %s208 = sadd.s32 %s207, 1
      %p211 = scmp.eq.s32.totalorder %s33, 1
      %p212 = scmp.ne.s32.totalorder %s207, %s209
      %p213 = scmp.eq.s32.totalorder %s33, 0
      %p214 = por %p212, %p213
      %p215 = scmp.ne.s32.totalorder %s207, %s209
      %p216 = scmp.eq.s32.totalorder %s38, 1
      %p217 = por %p215, %p216
      %p218 = scmp.ne.s32.totalorder %s209, %s210
      %p219 = scmp.eq.s32.totalorder %s38, 0
      %p220 = por %p218, %p219
      %p221 = scmp.ne.s32.totalorder %s209, %s210
      %p222 = scmp.eq.s32.totalorder %s39, 1
      %p223 = por %p221, %p222
      %p225 = scmp.ne.s32.totalorder %s210, %s224
      %p226 = scmp.eq.s32.totalorder %s39, 0
      %p227 = por %p225, %p226
      %s229 = sadd.s32 %s228, 1
      %p232 = scmp.eq.s32.totalorder %s33, 1
      %p233 = scmp.ne.s32.totalorder %s228, %s230
      %p234 = scmp.eq.s32.totalorder %s33, 0
      %p235 = por %p233, %p234
      %p236 = scmp.ne.s32.totalorder %s228, %s230
      %p237 = scmp.eq.s32.totalorder %s38, 1
      %p238 = por %p236, %p237
      %p239 = scmp.ne.s32.totalorder %s230, %s231
      %p240 = scmp.eq.s32.totalorder %s38, 0
      %p241 = por %p239, %p240
      %p242 = scmp.ne.s32.totalorder %s230, %s231
      %p243 = scmp.eq.s32.totalorder %s39, 1
      %p244 = por %p242, %p243
      %p246 = scmp.ne.s32.totalorder %s231, %s245
      %p247 = scmp.eq.s32.totalorder %s39, 0
      %p248 = por %p246, %p247
      %s249 = ssub.s32 %s40, %s52
      %s250 = ssub.s32 %s41, %s48
      %s251 = sor.u32 %s249, %s250
      %p252 = scmp.eq.s32.totalorder %s251, 0
      %s254 = sadd.s32 %s253, 1
      %s255 = scalar_select %p252, %s253, %s254
      %p258 = pneg %p252
      %p259 = scmp.eq.s32.totalorder %s33, 1
      %p260 = por %p258, %p259
      %p261 = scmp.ne.s32.totalorder %s253, %s256
      %p262 = scmp.eq.s32.totalorder %s33, 0
      %p263 = por %p261, %p262
      %p264 = scmp.ne.s32.totalorder %s253, %s256
      %p265 = scmp.eq.s32.totalorder %s38, 1
      %p266 = por %p264, %p265
      %p267 = scmp.ne.s32.totalorder %s256, %s257
      %p268 = scmp.eq.s32.totalorder %s38, 0
      %p269 = por %p267, %p268
      %p270 = scmp.ne.s32.totalorder %s256, %s257
      %p271 = scmp.eq.s32.totalorder %s39, 1
      %p272 = por %p270, %p271
      %p274 = scmp.ne.s32.totalorder %s257, %s273
      %p275 = scmp.eq.s32.totalorder %s39, 0
      %p276 = por %p274, %p275
      %s277 = ssub.s32 %s40, %s52
      %s278 = ssub.s32 %s41, %s48
      %s279 = sor.u32 %s277, %s278
      %p280 = scmp.eq.s32.totalorder %s279, 0
      %s282 = sadd.s32 %s281, 1
      %s283 = scalar_select %p280, %s281, %s282
      %p286 = pneg %p280
      %p287 = scmp.eq.s32.totalorder %s33, 1
      %p288 = por %p286, %p287
      %p289 = scmp.ne.s32.totalorder %s281, %s284
      %p290 = scmp.eq.s32.totalorder %s33, 0
      %p291 = por %p289, %p290
      %p292 = scmp.ne.s32.totalorder %s281, %s284
      %p293 = scmp.eq.s32.totalorder %s38, 1
      %p294 = por %p292, %p293
      %p295 = scmp.ne.s32.totalorder %s284, %s285
      %p296 = scmp.eq.s32.totalorder %s38, 0
      %p297 = por %p295, %p296
      %p298 = scmp.ne.s32.totalorder %s284, %s285
      %p299 = scmp.eq.s32.totalorder %s39, 1
      %p300 = por %p298, %p299
      %p302 = scmp.ne.s32.totalorder %s285, %s301
      %p303 = scmp.eq.s32.totalorder %s39, 0
      %p304 = por %p302, %p303
      %s305 = ssub.s32 %s40, %s52
      %s306 = ssub.s32 %s41, %s48
      %s307 = sor.u32 %s305, %s306
      %p308 = scmp.eq.s32.totalorder %s307, 0
      %s310 = sadd.s32 %s309, 1
      %s311 = scalar_select %p308, %s309, %s310
      %p314 = pneg %p308
      %p315 = scmp.eq.s32.totalorder %s33, 1
      %p316 = por %p314, %p315
      %p317 = scmp.ne.s32.totalorder %s309, %s312
      %p318 = scmp.eq.s32.totalorder %s33, 0
      %p319 = por %p317, %p318
      %p320 = scmp.ne.s32.totalorder %s309, %s312
      %p321 = scmp.eq.s32.totalorder %s38, 1
      %p322 = por %p320, %p321
      %p323 = scmp.ne.s32.totalorder %s312, %s313
      %p324 = scmp.eq.s32.totalorder %s38, 0
      %p325 = por %p323, %p324
      %p326 = scmp.ne.s32.totalorder %s312, %s313
      %p327 = scmp.eq.s32.totalorder %s39, 1
      %p328 = por %p326, %p327
      %p330 = scmp.ne.s32.totalorder %s313, %s329
      %p331 = scmp.eq.s32.totalorder %s39, 0
      %p332 = por %p330, %p331
      %s333 = ssub.s32 %s40, %s52
      %s334 = ssub.s32 %s41, %s48
      %s335 = sor.u32 %s333, %s334
      %p336 = scmp.eq.s32.totalorder %s335, 0
      %s338 = sadd.s32 %s337, 1
      %s339 = scalar_select %p336, %s337, %s338
      %p342 = pneg %p336
      %p343 = scmp.eq.s32.totalorder %s33, 1
      %p344 = por %p342, %p343
      %p345 = scmp.ne.s32.totalorder %s337, %s340
      %p346 = scmp.eq.s32.totalorder %s33, 0
      %p347 = por %p345, %p346
      %p348 = scmp.ne.s32.totalorder %s337, %s340
      %p349 = scmp.eq.s32.totalorder %s38, 1
      %p350 = por %p348, %p349
      %p351 = scmp.ne.s32.totalorder %s340, %s341
      %p352 = scmp.eq.s32.totalorder %s38, 0
      %p353 = por %p351, %p352
      %p354 = scmp.ne.s32.totalorder %s340, %s341
      %p355 = scmp.eq.s32.totalorder %s39, 1
      %p356 = por %p354, %p355
      %p358 = scmp.ne.s32.totalorder %s341, %s357
      %p359 = scmp.eq.s32.totalorder %s39, 0
      %p360 = por %p358, %p359
      %p361 = scmp.le.s32.totalorder 1, %s33
      %p362 = scmp.lt.s32.totalorder %s33, 3
      %p363 = pnand %p361, %p362
      %p364 = pneg %p363
      // Predicated region
      $region9: #{tpu_custom_call.1} parent=5 // pred_check
        _
      $region10: #{tpu_custom_call.1} parent=5 // pred_check_branch
        %366 = sbr.rel (%p363) target = $region12
      $region11: #{tpu_custom_call.1} parent=5 // pred_region
        %s367 = ssub.s32 %s33, 1
        // Predicated region
        $region13: #{tpu_custom_call.1} parent=11 // pred_check
          %p368 = pneg %p94
        $region14: #{tpu_custom_call.1} parent=11 // pred_check_branch
          %370 = sbr.rel (%p368) target = $region16
        $region15: #{tpu_custom_call.1} parent=11 // pred_region
          _
        $region16: #{tpu_custom_call.1} parent=11 // pred_fallthru
          _
        // Predicated region
        $region17: #{tpu_custom_call.1} parent=11 // pred_check
          %p371 = pneg %p115
        $region18: #{tpu_custom_call.1} parent=11 // pred_check_branch
          %373 = sbr.rel (%p371) target = $region20
        $region19: #{tpu_custom_call.1} parent=11 // pred_region
          _
        $region20: #{tpu_custom_call.1} parent=11 // pred_fallthru
          _
        // Predicated region
        $region21: #{tpu_custom_call.1} parent=11 // pred_check
          %p374 = pneg %p136
        $region22: #{tpu_custom_call.1} parent=11 // pred_check_branch
          %376 = sbr.rel (%p374) target = $region24
        $region23: #{tpu_custom_call.1} parent=11 // pred_region
          %s378 = ssub.s32 1024, 1024
          %379 = vsyncadd [#allocation6], %s378
          %s380 = sshll.u32 [#allocation5], 4
          %s381 = int_to_ptr.vmem [resolvable:$true] %s380
          %386 = dma.hbm_to_vmem [thread:$0]  %s3, 1024, %s381, [#allocation6], 64, 64, 4
        $region24: #{tpu_custom_call.1} parent=11 // pred_fallthru
          _
        // Predicated region
        $region25: #{tpu_custom_call.1} parent=11 // pred_check
          %p387 = pneg %p157
        $region26: #{tpu_custom_call.1} parent=11 // pred_check_branch
          %389 = sbr.rel (%p387) target = $region28
        $region27: #{tpu_custom_call.1} parent=11 // pred_region
          _
        $region28: #{tpu_custom_call.1} parent=11 // pred_fallthru
          _
        // Predicated region
        $region29: #{tpu_custom_call.1} parent=11 // pred_check
          %p390 = pneg %p178
        $region30: #{tpu_custom_call.1} parent=11 // pred_check_branch
          %392 = sbr.rel (%p390) target = $region32
        $region31: #{tpu_custom_call.1} parent=11 // pred_region
          %s394 = ssub.s32 1024, 1024
          %395 = vsyncadd [#allocation6], %s394
          %s396 = sshll.u32 [#allocation7], 4
          %s397 = int_to_ptr.vmem [resolvable:$true] %s396
          %402 = dma.hbm_to_vmem [thread:$0]  %s5, 1024, %s397, [#allocation6], 64, 64, 4
        $region32: #{tpu_custom_call.1} parent=11 // pred_fallthru
          _
        // Predicated region
        $region33: #{tpu_custom_call.1} parent=11 // pred_check
          %p403 = pneg %p199
        $region34: #{tpu_custom_call.1} parent=11 // pred_check_branch
          %405 = sbr.rel (%p403) target = $region36
        $region35: #{tpu_custom_call.1} parent=11 // pred_region
          _
        $region36: #{tpu_custom_call.1} parent=11 // pred_fallthru
          _
        // Predicated region
        $region37: #{tpu_custom_call.1} parent=11 // pred_check
          %p406 = pneg %p220
        $region38: #{tpu_custom_call.1} parent=11 // pred_check_branch
          %408 = sbr.rel (%p406) target = $region40
        $region39: #{tpu_custom_call.1} parent=11 // pred_region
          %s410 = ssub.s32 1024, 1024
          %411 = vsyncadd [#allocation9], %s410
          %s412 = sshll.u32 [#allocation8], 4
          %s413 = int_to_ptr.vmem [resolvable:$true] %s412
          %418 = dma.hbm_to_vmem [thread:$0]  %s7, 1024, %s413, [#allocation9], 64, 64, 4
        $region40: #{tpu_custom_call.1} parent=11 // pred_fallthru
          _
        // Predicated region
        $region41: #{tpu_custom_call.1} parent=11 // pred_check
          %p419 = pneg %p241
        $region42: #{tpu_custom_call.1} parent=11 // pred_check_branch
          %421 = sbr.rel (%p419) target = $region44
        $region43: #{tpu_custom_call.1} parent=11 // pred_region
          _
        $region44: #{tpu_custom_call.1} parent=11 // pred_fallthru
          _
      $region12: #{tpu_custom_call.1} parent=5 // pred_fallthru
        _
      %p422 = scmp.lt.s32.totalorder %s33, 2
      // Predicated region
      $region45: #{tpu_custom_call.1} parent=5 // pred_check
        %p423 = pneg %p422
      $region46: #{tpu_custom_call.1} parent=5 // pred_check_branch
        %425 = sbr.rel (%p423) target = $region48
      $region47: #{tpu_custom_call.1} parent=5 // pred_region
        // Predicated region
        $region49: #{tpu_custom_call.1} parent=47 // pred_check
          %p426 = pneg %p67
        $region50: #{tpu_custom_call.1} parent=47 // pred_check_branch
          %428 = sbr.rel (%p426) target = $region52
        $region51: #{tpu_custom_call.1} parent=47 // pred_region
          %s429 = sand.u32 %s57, 1
          %s430 = scalar_lea.sflag [#allocation3], %s429
          %s431 = sand.u32 %s57, 1
          %s432 = smul.addr %s431, 64
          %s433 = scalar_lea.vmem [#allocation2], %s432
          %s434 = smul.u32 8, %s41
          %s436 = ssub.s32 1024, 1024
          %437 = vsyncadd %s430, %s436
          %s438 = smul.addr %s40, 8
          %s439 = sadd.s32 %s434, %s438
          %s440 = smul.addr %s439, 128
          %s441 = scalar_lea.hbm %s0, %s440
          %s442 = sshll.u32 %s433, 4
          %s443 = int_to_ptr.vmem [resolvable:$true] %s442
          %448 = dma.hbm_to_vmem [thread:$0]  %s441, 1024, %s443, %s430, 128, 128, 8
        $region52: #{tpu_custom_call.1} parent=47 // pred_fallthru
          _
      $region48: #{tpu_custom_call.1} parent=5 // pred_fallthru
        _
      %p449 = scmp.le.s32.totalorder 1, %s33
      %p450 = scmp.lt.s32.totalorder %s33, 3
      %p451 = pnand %p449, %p450
      %p452 = pneg %p451
      // Predicated region
      $region53: #{tpu_custom_call.1} parent=5 // pred_check
        _
      $region54: #{tpu_custom_call.1} parent=5 // pred_check_branch
        %454 = sbr.rel (%p451) target = $region56
      $region55: #{tpu_custom_call.1} parent=5 // pred_region
        %s455 = ssub.s32 %s33, 1
        %s456 = sand.u32 %s60, 1
        %s457 = scalar_lea.sflag [#allocation3], %s456
        %s458 = sand.u32 %s60, 1
        %s459 = smul.addr %s458, 64
        %s460 = scalar_lea.vmem [#allocation2], %s459
        // Predicated region
        $region57: #{tpu_custom_call.1} parent=55 // pred_check
          %p461 = pneg %p73
        $region58: #{tpu_custom_call.1} parent=55 // pred_check_branch
          %463 = sbr.rel (%p461) target = $region60
        $region59: #{tpu_custom_call.1} parent=55 // pred_region
          %464 = dma.done %s457, 1024
        $region60: #{tpu_custom_call.1} parent=55 // pred_fallthru
          _
        // Predicated region
        $region61: #{tpu_custom_call.1} parent=55 // pred_check
          %p465 = pneg %p136
        $region62: #{tpu_custom_call.1} parent=55 // pred_check_branch
          %467 = sbr.rel (%p465) target = $region64
        $region63: #{tpu_custom_call.1} parent=55 // pred_region
          %468 = dma.done [#allocation6], 1024
        $region64: #{tpu_custom_call.1} parent=55 // pred_fallthru
          _
        // Predicated region
        $region65: #{tpu_custom_call.1} parent=55 // pred_check
          %p469 = pneg %p178
        $region66: #{tpu_custom_call.1} parent=55 // pred_check_branch
          %471 = sbr.rel (%p469) target = $region68
        $region67: #{tpu_custom_call.1} parent=55 // pred_region
          %472 = dma.done [#allocation6], 1024
        $region68: #{tpu_custom_call.1} parent=55 // pred_fallthru
          _
        // Predicated region
        $region69: #{tpu_custom_call.1} parent=55 // pred_check
          %p473 = pneg %p220
        $region70: #{tpu_custom_call.1} parent=55 // pred_check_branch
          %475 = sbr.rel (%p473) target = $region72
        $region71: #{tpu_custom_call.1} parent=55 // pred_region
          %476 = dma.done [#allocation9], 1024
        $region72: #{tpu_custom_call.1} parent=55 // pred_fallthru
          _
        %s477 = sand.u32 %s60, 1
        %s478 = scalar_lea.sflag [#allocation3], %s477
        %s479 = sand.u32 %s60, 1
        %s480 = smul.addr %s479, 64
        %s481 = scalar_lea.vmem [#allocation2], %s480
        %p482 = pneg %p73
        %p483 = pneg %p70
        %p484 = pneg %p94
        %p485 = pneg %p91
        %p486 = pneg %p115
        %p487 = pneg %p112
        %p488 = pneg %p136
        %p489 = pneg %p133
        %p490 = pneg %p157
        %p491 = pneg %p154
        %p492 = pneg %p178
        %p493 = pneg %p175
        %p494 = pneg %p199
        %p495 = pneg %p196
        %p496 = pneg %p220
        %p497 = pneg %p217
        %p498 = pneg %p241
        %p499 = pneg %p238
        %p500 = pneg %p269
        %p501 = pneg %p266
        %s502 = sand.u32 %s256, 1
        %s503 = scalar_lea.sflag [#allocation4], %s502
        %s504 = sand.u32 %s256, 1
        %s505 = smul.addr %s504, 64
        %s506 = scalar_lea.vmem [#allocation10], %s505
        %p507 = pneg %p297
        %p508 = pneg %p294
        %s509 = sand.u32 %s38, 1
        %s510 = scalar_lea.sflag [#allocation12], %s509
        %s511 = sand.u32 %s284, 1
        %s512 = smul.addr %s511, 32
        %s513 = scalar_lea.vmem [#allocation11], %s512
        %p514 = pneg %p325
        %p515 = pneg %p322
        %s516 = sand.u32 %s38, 1
        %s517 = scalar_lea.sflag [#allocation12], %s516
        %s518 = sand.u32 %s312, 1
        %s519 = smul.addr %s518, 32
        %s520 = scalar_lea.vmem [#allocation13], %s519
        %p521 = pneg %p353
        %p522 = pneg %p350
        %s523 = sand.u32 %s340, 1
        %s524 = scalar_lea.sflag [#allocation15], %s523
        %s525 = sand.u32 %s340, 1
        %s526 = smul.addr %s525, 32
        %s527 = scalar_lea.vmem [#allocation14], %s526
        %s528 = smul.u32 8, %s43
        %s529 = smul.u32 8, %s43
        %s530 = smul.u32 8, %s43
        %s531 = smul.u32 8, %s43
        %s532 = smul.u32 8, %s43
        %v534 = vlaneseq
        %v535 = vand.u32 %v534, 127
        %vm536 = vcmp.lt.s32.totalorder %v535, 32
        %v537 = vsel %vm536, 1, 0
        %v538 = vcvt.s32.f32 %v537
        %v539 = vld [vmem:[%s460] sm:$0xff]
        %v540 = vld [vmem:[%s460 + $0x8] sm:$0xff]
        %v541 = vld [vmem:[%s460 + $0x10] sm:$0xff]
        %v542 = vld [vmem:[%s460 + $0x18] sm:$0xff]
        %v543 = vld [vmem:[%s460 + $0x20] sm:$0xff]
        %v544 = vld [vmem:[%s460 + $0x28] sm:$0xff]
        %v545 = vld [vmem:[%s460 + $0x30] sm:$0xff]
        %v546 = vld [vmem:[%s460 + $0x38] sm:$0xff]
        %v547 = vld [vmem:[%s1] sm:$0x1]
        %v548 = vld [vmem:[%s2] sm:$0x1]
        %549 = vadd.xlane.f32.xlu0 %v539
        %v550 = vpop.xlane.xlu0 %549
        %551 = vadd.xlane.f32.xlu0 %v540
        %v552 = vpop.xlane.xlu0 %551
        %553 = vadd.xlane.f32.xlu0 %v541
        %v554 = vpop.xlane.xlu0 %553
        %555 = vadd.xlane.f32.xlu0 %v542
        %v556 = vpop.xlane.xlu0 %555
        %557 = vadd.xlane.f32.xlu0 %v543
        %v558 = vpop.xlane.xlu0 %557
        %559 = vadd.xlane.f32.xlu0 %v544
        %v560 = vpop.xlane.xlu0 %559
        %561 = vadd.xlane.f32.xlu0 %v545
        %v562 = vpop.xlane.xlu0 %561
        %563 = vadd.xlane.f32.xlu0 %v546
        %v564 = vpop.xlane.xlu0 %563
        %v565 = vmul.f32 %v550, 0.03125
        %v566 = vmul.f32 %v552, 0.03125
        %v567 = vmul.f32 %v554, 0.03125
        %v568 = vmul.f32 %v556, 0.03125
        %v569 = vmul.f32 %v558, 0.03125
        %v570 = vmul.f32 %v560, 0.03125
        %v571 = vmul.f32 %v562, 0.03125
        %v572 = vmul.f32 %v564, 0.03125
        %v573 = vsub.f32 %v539, %v565
        %v574 = vsub.f32 %v540, %v566
        %v575 = vsub.f32 %v541, %v567
        %v576 = vsub.f32 %v542, %v568
        %v577 = vsub.f32 %v543, %v569
        %v578 = vsub.f32 %v544, %v570
        %v579 = vsub.f32 %v545, %v571
        %v580 = vsub.f32 %v546, %v572
        %v581 = vmul.f32 %v573, %v538
        %v582 = vmul.f32 %v574, %v538
        %v583 = vmul.f32 %v575, %v538
        %v584 = vmul.f32 %v576, %v538
        %v585 = vmul.f32 %v577, %v538
        %v586 = vmul.f32 %v578, %v538
        %v587 = vmul.f32 %v579, %v538
        %v588 = vmul.f32 %v580, %v538
        %v589 = vmul.f32 %v581, %v581
        %v590 = vmul.f32 %v582, %v582
        %v591 = vmul.f32 %v583, %v583
        %v592 = vmul.f32 %v584, %v584
        %v593 = vmul.f32 %v585, %v585
        %v594 = vmul.f32 %v586, %v586
        %v595 = vmul.f32 %v587, %v587
        %v596 = vmul.f32 %v588, %v588
        %597 = vadd.xlane.f32.xlu0 %v589
        %v598 = vpop.xlane.xlu0 %597
        %599 = vadd.xlane.f32.xlu0 %v590
        %v600 = vpop.xlane.xlu0 %599
        %601 = vadd.xlane.f32.xlu0 %v591
        %v602 = vpop.xlane.xlu0 %601
        %603 = vadd.xlane.f32.xlu0 %v592
        %v604 = vpop.xlane.xlu0 %603
        %605 = vadd.xlane.f32.xlu0 %v593
        %v606 = vpop.xlane.xlu0 %605
        %607 = vadd.xlane.f32.xlu0 %v594
        %v608 = vpop.xlane.xlu0 %607
        %609 = vadd.xlane.f32.xlu0 %v595
        %v610 = vpop.xlane.xlu0 %609
        %611 = vadd.xlane.f32.xlu0 %v596
        %v612 = vpop.xlane.xlu0 %611
        %v613 = vmul.f32 %v598, 0.03125
        %v614 = vmul.f32 %v600, 0.03125
        %v615 = vmul.f32 %v602, 0.03125
        %v616 = vmul.f32 %v604, 0.03125
        %v617 = vmul.f32 %v606, 0.03125
        %v618 = vmul.f32 %v608, 0.03125
        %v619 = vmul.f32 %v610, 0.03125
        %v620 = vmul.f32 %v612, 0.03125
        %v621 = vadd.f32 %v613, 1e-05
        %v622 = vadd.f32 %v614, 1e-05
        %v623 = vadd.f32 %v615, 1e-05
        %v624 = vadd.f32 %v616, 1e-05
        %v625 = vadd.f32 %v617, 1e-05
        %v626 = vadd.f32 %v618, 1e-05
        %v627 = vadd.f32 %v619, 1e-05
        %v628 = vadd.f32 %v620, 1e-05
        %v629 = vrsqrt.pop %v621
        %v630 = vrsqrt.pop %v622
        %v631 = vrsqrt.pop %v623
        %v632 = vrsqrt.pop %v624
        %v633 = vrsqrt.pop %v625
        %v634 = vrsqrt.pop %v626
        %v635 = vrsqrt.pop %v627
        %v636 = vrsqrt.pop %v628
        %v637 = vmul.f32 %v581, %v629
        %v638 = vmul.f32 %v582, %v630
        %v639 = vmul.f32 %v583, %v631
        %v640 = vmul.f32 %v584, %v632
        %v641 = vmul.f32 %v585, %v633
        %v642 = vmul.f32 %v586, %v634
        %v643 = vmul.f32 %v587, %v635
        %v644 = vmul.f32 %v588, %v636
        %v646 = vlaneseq
        %v647 = vshrl.u32 %v646, 7
        %v648 = vsub.s32 0, %v647
        %v649 = vrot.slane %v547, %v648
        %v651 = vmul.f32 %v637, %v649
        %v652 = vmul.f32 %v638, %v649
        %v653 = vmul.f32 %v639, %v649
        %v654 = vmul.f32 %v640, %v649
        %v655 = vmul.f32 %v641, %v649
        %v656 = vmul.f32 %v642, %v649
        %v657 = vmul.f32 %v643, %v649
        %v658 = vmul.f32 %v644, %v649
        %v660 = vlaneseq
        %v661 = vshrl.u32 %v660, 7
        %v662 = vsub.s32 0, %v661
        %v663 = vrot.slane %v548, %v662
        %v665 = vadd.f32 %v651, %v663
        %v666 = vadd.f32 %v652, %v663
        %v667 = vadd.f32 %v653, %v663
        %v668 = vadd.f32 %v654, %v663
        %v669 = vadd.f32 %v655, %v663
        %v670 = vadd.f32 %v656, %v663
        %v671 = vadd.f32 %v657, %v663
        %v672 = vadd.f32 %v658, %v663
        %673 = vst [vmem:[%s506] sm:$0xff] %v665
        %674 = vst [vmem:[%s506 + $0x8] sm:$0xff] %v666
        %675 = vst [vmem:[%s506 + $0x10] sm:$0xff] %v667
        %676 = vst [vmem:[%s506 + $0x18] sm:$0xff] %v668
        %677 = vst [vmem:[%s506 + $0x20] sm:$0xff] %v669
        %678 = vst [vmem:[%s506 + $0x28] sm:$0xff] %v670
        %679 = vst [vmem:[%s506 + $0x30] sm:$0xff] %v671
        %680 = vst [vmem:[%s506 + $0x38] sm:$0xff] %v672
        %v681 = vpack.c.bf16 %v666, %v665
        %v682 = vpack.c.bf16 %v668, %v667
        %v683 = vpack.c.bf16 %v670, %v669
        %v684 = vpack.c.bf16 %v672, %v671
        %v685 = vld [vmem:[#allocation5] sm:$0xf]
        %v686 = vld [vmem:[#allocation5 + $0x4] sm:$0xf]
        %v687 = vld [vmem:[#allocation5 + $0x8] sm:$0xf]
        %v688 = vld [vmem:[#allocation5 + $0xc] sm:$0xf]
        %v689 = vld [vmem:[#allocation5 + $0x10] sm:$0xf]
        %v690 = vld [vmem:[#allocation5 + $0x14] sm:$0xf]
        %v691 = vld [vmem:[#allocation5 + $0x18] sm:$0xf]
        %v692 = vld [vmem:[#allocation5 + $0x1c] sm:$0xf]
        %v693 = vld [vmem:[#allocation5 + $0x20] sm:$0xf]
        %v694 = vld [vmem:[#allocation5 + $0x24] sm:$0xf]
        %v695 = vld [vmem:[#allocation5 + $0x28] sm:$0xf]
        %v696 = vld [vmem:[#allocation5 + $0x2c] sm:$0xf]
        %v697 = vld [vmem:[#allocation5 + $0x30] sm:$0xf]
        %v698 = vld [vmem:[#allocation5 + $0x34] sm:$0xf]
        %v699 = vld [vmem:[#allocation5 + $0x38] sm:$0xf]
        %v700 = vld [vmem:[#allocation5 + $0x3c] sm:$0xf]
        %v701 = vld [vmem:[%s4] sm:$0x1]
        %v703 = vlaneseq
        %v704 = vshrl.u32 %v703, 7
        %v705 = vsub.s32 0, %v704
        %v706 = vrot.slane %v701, %v705
        %v724 = vunpack.c.l.b16 %v685
        %v725 = vunpack.c.l.b16 %v686
        %v726 = vunpack.c.l.b16 %v687
        %v727 = vunpack.c.l.b16 %v688
        %v728 = vunpack.c.l.b16 %v689
        %v729 = vunpack.c.l.b16 %v690
        %v730 = vunpack.c.l.b16 %v691
        %v731 = vunpack.c.l.b16 %v692
        %v732 = vunpack.c.l.b16 %v693
        %v733 = vunpack.c.l.b16 %v694
        %v734 = vunpack.c.l.b16 %v695
        %v735 = vunpack.c.l.b16 %v696
        %v736 = vunpack.c.l.b16 %v697
        %v737 = vunpack.c.l.b16 %v698
        %v738 = vunpack.c.l.b16 %v699
        %v739 = vunpack.c.l.b16 %v700
        %v740 = vpack.c.b16 %v725, %v724
        %v741 = vpack.c.b16 %v727, %v726
        %v742 = vpack.c.b16 %v729, %v728
        %v743 = vpack.c.b16 %v731, %v730
        %v744 = vpack.c.b16 %v733, %v732
        %v745 = vpack.c.b16 %v735, %v734
        %v746 = vpack.c.b16 %v737, %v736
        %v747 = vpack.c.b16 %v739, %v738
        %756 = vmatprep.subr.bf16.mxu0 0
        %757 = vmatpush1.bf16.msra.mxu0 %v747
        %758 = vmatprep.subr.bf16.mxu0 0
        %759 = vmatpush1.bf16.msra.mxu0 %v746
        %760 = vmatprep.subr.bf16.mxu0 0
        %761 = vmatpush1.bf16.msra.mxu0 %v745
        %762 = vmatprep.subr.bf16.mxu0 0
        %763 = vmatpush1.bf16.msra.mxu0 %v744
        %764 = vmatprep.subr.bf16.mxu0 0
        %765 = vmatpush1.bf16.msra.mxu0 %v743
        %766 = vmatprep.subr.bf16.mxu0 0
        %767 = vmatpush1.bf16.msra.mxu0 %v742
        %768 = vmatprep.subr.bf16.mxu0 0
        %769 = vmatpush1.bf16.msra.mxu0 %v741
        %770 = vmatprep.subr.bf16.mxu0 0
        %771 = vmatpush1.bf16.msra.mxu0 %v740
        %772 = vmatprep.subr.bf16.mxu0 0
        %773 = vmatpush2.bf16.msra.mxu0 0
        %774 = vmatprep.subr.bf16.mxu0 0
        %775 = vmatpush2.bf16.msra.mxu0 0
        %776 = vmatprep.subr.bf16.mxu0 0
        %777 = vmatpush2.bf16.msra.mxu0 0
        %778 = vmatprep.subr.bf16.mxu0 0
        %779 = vmatpush2.bf16.msra.mxu0 0
        %780 = vmatprep.subr.bf16.mxu0 0
        %781 = vmatpush2.bf16.msra.mxu0 0
        %782 = vmatprep.subr.bf16.mxu0 0
        %783 = vmatpush2.bf16.msra.mxu0 0
        %784 = vmatprep.subr.bf16.mxu0 0
        %785 = vmatpush2.bf16.msra.mxu0 0
        %786 = vmatprep.subr.bf16.mxu0 0
        %787 = vmatpush2.bf16.msra.mxu0 0
        %788 = vmatprep.mubr.bf16.mxu0 0
        %789 = vmatmul.mubr.bf16.gmra.mxu0 %v681
        %v790 = vpop.f32.mrf.mxu0
        %v791 = vadd.f32 %v706, %v790
        %v792 = vpop.f32.mrf.mxu0
        %v793 = vpop.f32.mrf.mxu0
        %v794 = vadd.f32 %v706, %v793
        %v795 = vpop.f32.mrf.mxu0
        %796 = vmatprep.mubr.bf16.mxu0 0
        %797 = vmatmul.mubr.bf16.gmra.mxu0 %v682
        %v798 = vpop.f32.mrf.mxu0
        %v799 = vadd.f32 %v706, %v798
        %v800 = vpop.f32.mrf.mxu0
        %v801 = vpop.f32.mrf.mxu0
        %v802 = vadd.f32 %v706, %v801
        %v803 = vpop.f32.mrf.mxu0
        %804 = vmatprep.mubr.bf16.mxu0 0
        %805 = vmatmul.mubr.bf16.gmra.mxu0 %v683
        %v806 = vpop.f32.mrf.mxu0
        %v807 = vadd.f32 %v706, %v806
        %v808 = vpop.f32.mrf.mxu0
        %v809 = vpop.f32.mrf.mxu0
        %v810 = vadd.f32 %v706, %v809
        %v811 = vpop.f32.mrf.mxu0
        %812 = vmatprep.mubr.bf16.mxu0 0
        %813 = vmatmul.mubr.bf16.gmra.mxu0 %v684
        %v814 = vpop.f32.mrf.mxu0
        %v815 = vadd.f32 %v706, %v814
        %v816 = vpop.f32.mrf.mxu0
        %v817 = vpop.f32.mrf.mxu0
        %v818 = vadd.f32 %v706, %v817
        %v819 = vpop.f32.mrf.mxu0
        %820 = vdwg.mxu0
        %v821 = vpack.c.bf16 %v794, %v791
        %v822 = vpack.c.bf16 %v802, %v799
        %v823 = vpack.c.bf16 %v810, %v807
        %v824 = vpack.c.bf16 %v818, %v815
        %v829 = vunpack.c.l.b16 %v821
        %v830 = vunpack.c.h.b16 %v821
        %v831 = vunpack.c.l.b16 %v822
        %v832 = vunpack.c.h.b16 %v822
        %v833 = vunpack.c.l.b16 %v823
        %v834 = vunpack.c.h.b16 %v823
        %v835 = vunpack.c.l.b16 %v824
        %v836 = vunpack.c.h.b16 %v824
        %v837 = vpack.c.b16 %v829, %v829
        %v838 = vpack.c.b16 %v830, %v830
        %v839 = vpack.c.b16 %v831, %v831
        %v840 = vpack.c.b16 %v832, %v832
        %v841 = vpack.c.b16 %v833, %v833
        %v842 = vpack.c.b16 %v834, %v834
        %v843 = vpack.c.b16 %v835, %v835
        %v844 = vpack.c.b16 %v836, %v836
        %853 = vst [vmem:[%s513] sm:$0xf] %v837
        %854 = vst [vmem:[%s513 + $0x4] sm:$0xf] %v838
        %855 = vst [vmem:[%s513 + $0x8] sm:$0xf] %v839
        %856 = vst [vmem:[%s513 + $0xc] sm:$0xf] %v840
        %857 = vst [vmem:[%s513 + $0x10] sm:$0xf] %v841
        %858 = vst [vmem:[%s513 + $0x14] sm:$0xf] %v842
        %859 = vst [vmem:[%s513 + $0x18] sm:$0xf] %v843
        %860 = vst [vmem:[%s513 + $0x1c] sm:$0xf] %v844
        %v861 = vld [vmem:[#allocation7] sm:$0xf]
        %v862 = vld [vmem:[#allocation7 + $0x4] sm:$0xf]
        %v863 = vld [vmem:[#allocation7 + $0x8] sm:$0xf]
        %v864 = vld [vmem:[#allocation7 + $0xc] sm:$0xf]
        %v865 = vld [vmem:[#allocation7 + $0x10] sm:$0xf]
        %v866 = vld [vmem:[#allocation7 + $0x14] sm:$0xf]
        %v867 = vld [vmem:[#allocation7 + $0x18] sm:$0xf]
        %v868 = vld [vmem:[#allocation7 + $0x1c] sm:$0xf]
        %v869 = vld [vmem:[#allocation7 + $0x20] sm:$0xf]
        %v870 = vld [vmem:[#allocation7 + $0x24] sm:$0xf]
        %v871 = vld [vmem:[#allocation7 + $0x28] sm:$0xf]
        %v872 = vld [vmem:[#allocation7 + $0x2c] sm:$0xf]
        %v873 = vld [vmem:[#allocation7 + $0x30] sm:$0xf]
        %v874 = vld [vmem:[#allocation7 + $0x34] sm:$0xf]
        %v875 = vld [vmem:[#allocation7 + $0x38] sm:$0xf]
        %v876 = vld [vmem:[#allocation7 + $0x3c] sm:$0xf]
        %v877 = vld [vmem:[%s6] sm:$0x1]
        %v879 = vlaneseq
        %v880 = vshrl.u32 %v879, 7
        %v881 = vsub.s32 0, %v880
        %v882 = vrot.slane %v877, %v881
        %v900 = vunpack.c.l.b16 %v861
        %v901 = vunpack.c.l.b16 %v862
        %v902 = vunpack.c.l.b16 %v863
        %v903 = vunpack.c.l.b16 %v864
        %v904 = vunpack.c.l.b16 %v865
        %v905 = vunpack.c.l.b16 %v866
        %v906 = vunpack.c.l.b16 %v867
        %v907 = vunpack.c.l.b16 %v868
        %v908 = vunpack.c.l.b16 %v869
        %v909 = vunpack.c.l.b16 %v870
        %v910 = vunpack.c.l.b16 %v871
        %v911 = vunpack.c.l.b16 %v872
        %v912 = vunpack.c.l.b16 %v873
        %v913 = vunpack.c.l.b16 %v874
        %v914 = vunpack.c.l.b16 %v875
        %v915 = vunpack.c.l.b16 %v876
        %v916 = vpack.c.b16 %v901, %v900
        %v917 = vpack.c.b16 %v903, %v902
        %v918 = vpack.c.b16 %v905, %v904
        %v919 = vpack.c.b16 %v907, %v906
        %v920 = vpack.c.b16 %v909, %v908
        %v921 = vpack.c.b16 %v911, %v910
        %v922 = vpack.c.b16 %v913, %v912
        %v923 = vpack.c.b16 %v915, %v914
        %932 = vmatprep.subr.bf16.mxu0 0
        %933 = vmatpush1.bf16.msra.mxu0 %v923
        %934 = vmatprep.subr.bf16.mxu0 0
        %935 = vmatpush1.bf16.msra.mxu0 %v922
        %936 = vmatprep.subr.bf16.mxu0 0
        %937 = vmatpush1.bf16.msra.mxu0 %v921
        %938 = vmatprep.subr.bf16.mxu0 0
        %939 = vmatpush1.bf16.msra.mxu0 %v920
        %940 = vmatprep.subr.bf16.mxu0 0
        %941 = vmatpush1.bf16.msra.mxu0 %v919
        %942 = vmatprep.subr.bf16.mxu0 0
        %943 = vmatpush1.bf16.msra.mxu0 %v918
        %944 = vmatprep.subr.bf16.mxu0 0
        %945 = vmatpush1.bf16.msra.mxu0 %v917
        %946 = vmatprep.subr.bf16.mxu0 0
        %947 = vmatpush1.bf16.msra.mxu0 %v916
        %948 = vmatprep.subr.bf16.mxu0 0
        %949 = vmatpush2.bf16.msra.mxu0 0
        %950 = vmatprep.subr.bf16.mxu0 0
        %951 = vmatpush2.bf16.msra.mxu0 0
        %952 = vmatprep.subr.bf16.mxu0 0
        %953 = vmatpush2.bf16.msra.mxu0 0
        %954 = vmatprep.subr.bf16.mxu0 0
        %955 = vmatpush2.bf16.msra.mxu0 0
        %956 = vmatprep.subr.bf16.mxu0 0
        %957 = vmatpush2.bf16.msra.mxu0 0
        %958 = vmatprep.subr.bf16.mxu0 0
        %959 = vmatpush2.bf16.msra.mxu0 0
        %960 = vmatprep.subr.bf16.mxu0 0
        %961 = vmatpush2.bf16.msra.mxu0 0
        %962 = vmatprep.subr.bf16.mxu0 0
        %963 = vmatpush2.bf16.msra.mxu0 0
        %964 = vmatprep.mubr.bf16.mxu0 0
        %965 = vmatmul.mubr.bf16.gmra.mxu0 %v681
        %v966 = vpop.f32.mrf.mxu0
        %v967 = vadd.f32 %v882, %v966
        %v968 = vpop.f32.mrf.mxu0
        %v969 = vpop.f32.mrf.mxu0
        %v970 = vadd.f32 %v882, %v969
        %v971 = vpop.f32.mrf.mxu0
        %972 = vmatprep.mubr.bf16.mxu0 0
        %973 = vmatmul.mubr.bf16.gmra.mxu0 %v682
        %v974 = vpop.f32.mrf.mxu0
        %v975 = vadd.f32 %v882, %v974
        %v976 = vpop.f32.mrf.mxu0
        %v977 = vpop.f32.mrf.mxu0
        %v978 = vadd.f32 %v882, %v977
        %v979 = vpop.f32.mrf.mxu0
        %980 = vmatprep.mubr.bf16.mxu0 0
        %981 = vmatmul.mubr.bf16.gmra.mxu0 %v683
        %v982 = vpop.f32.mrf.mxu0
        %v983 = vadd.f32 %v882, %v982
        %v984 = vpop.f32.mrf.mxu0
        %v985 = vpop.f32.mrf.mxu0
        %v986 = vadd.f32 %v882, %v985
        %v987 = vpop.f32.mrf.mxu0
        %988 = vmatprep.mubr.bf16.mxu0 0
        %989 = vmatmul.mubr.bf16.gmra.mxu0 %v684
        %v990 = vpop.f32.mrf.mxu0
        %v991 = vadd.f32 %v882, %v990
        %v992 = vpop.f32.mrf.mxu0
        %v993 = vpop.f32.mrf.mxu0
        %v994 = vadd.f32 %v882, %v993
        %v995 = vpop.f32.mrf.mxu0
        %996 = vdwg.mxu0
        %v997 = vpack.c.bf16 %v970, %v967
        %v998 = vpack.c.bf16 %v978, %v975
        %v999 = vpack.c.bf16 %v986, %v983
        %v1000 = vpack.c.bf16 %v994, %v991
        %v1005 = vunpack.c.l.b16 %v997
        %v1006 = vunpack.c.h.b16 %v997
        %v1007 = vunpack.c.l.b16 %v998
        %v1008 = vunpack.c.h.b16 %v998
        %v1009 = vunpack.c.l.b16 %v999
        %v1010 = vunpack.c.h.b16 %v999
        %v1011 = vunpack.c.l.b16 %v1000
        %v1012 = vunpack.c.h.b16 %v1000
        %v1013 = vpack.c.b16 %v1005, %v1005
        %v1014 = vpack.c.b16 %v1006, %v1006
        %v1015 = vpack.c.b16 %v1007, %v1007
        %v1016 = vpack.c.b16 %v1008, %v1008
        %v1017 = vpack.c.b16 %v1009, %v1009
        %v1018 = vpack.c.b16 %v1010, %v1010
        %v1019 = vpack.c.b16 %v1011, %v1011
        %v1020 = vpack.c.b16 %v1012, %v1012
        %1029 = vst [vmem:[%s520] sm:$0xf] %v1013
        %1030 = vst [vmem:[%s520 + $0x4] sm:$0xf] %v1014
        %1031 = vst [vmem:[%s520 + $0x8] sm:$0xf] %v1015
        %1032 = vst [vmem:[%s520 + $0xc] sm:$0xf] %v1016
        %1033 = vst [vmem:[%s520 + $0x10] sm:$0xf] %v1017
        %1034 = vst [vmem:[%s520 + $0x14] sm:$0xf] %v1018
        %1035 = vst [vmem:[%s520 + $0x18] sm:$0xf] %v1019
        %1036 = vst [vmem:[%s520 + $0x1c] sm:$0xf] %v1020
        %v1037 = vld [vmem:[#allocation8] sm:$0xf]
        %v1038 = vld [vmem:[#allocation8 + $0x4] sm:$0xf]
        %v1039 = vld [vmem:[#allocation8 + $0x8] sm:$0xf]
        %v1040 = vld [vmem:[#allocation8 + $0xc] sm:$0xf]
        %v1041 = vld [vmem:[#allocation8 + $0x10] sm:$0xf]
        %v1042 = vld [vmem:[#allocation8 + $0x14] sm:$0xf]
        %v1043 = vld [vmem:[#allocation8 + $0x18] sm:$0xf]
        %v1044 = vld [vmem:[#allocation8 + $0x1c] sm:$0xf]
        %v1045 = vld [vmem:[#allocation8 + $0x20] sm:$0xf]
        %v1046 = vld [vmem:[#allocation8 + $0x24] sm:$0xf]
        %v1047 = vld [vmem:[#allocation8 + $0x28] sm:$0xf]
        %v1048 = vld [vmem:[#allocation8 + $0x2c] sm:$0xf]
        %v1049 = vld [vmem:[#allocation8 + $0x30] sm:$0xf]
        %v1050 = vld [vmem:[#allocation8 + $0x34] sm:$0xf]
        %v1051 = vld [vmem:[#allocation8 + $0x38] sm:$0xf]
        %v1052 = vld [vmem:[#allocation8 + $0x3c] sm:$0xf]
        %v1053 = vld [vmem:[%s8] sm:$0x1]
        %v1055 = vlaneseq
        %v1056 = vshrl.u32 %v1055, 7
        %v1057 = vsub.s32 0, %v1056
        %v1058 = vrot.slane %v1053, %v1057
        %v1076 = vunpack.c.l.b16 %v1037
        %v1077 = vunpack.c.l.b16 %v1038
        %v1078 = vunpack.c.l.b16 %v1039
        %v1079 = vunpack.c.l.b16 %v1040
        %v1080 = vunpack.c.l.b16 %v1041
        %v1081 = vunpack.c.l.b16 %v1042
        %v1082 = vunpack.c.l.b16 %v1043
        %v1083 = vunpack.c.l.b16 %v1044
        %v1084 = vunpack.c.l.b16 %v1045
        %v1085 = vunpack.c.l.b16 %v1046
        %v1086 = vunpack.c.l.b16 %v1047
        %v1087 = vunpack.c.l.b16 %v1048
        %v1088 = vunpack.c.l.b16 %v1049
        %v1089 = vunpack.c.l.b16 %v1050
        %v1090 = vunpack.c.l.b16 %v1051
        %v1091 = vunpack.c.l.b16 %v1052
        %v1092 = vpack.c.b16 %v1077, %v1076
        %v1093 = vpack.c.b16 %v1079, %v1078
        %v1094 = vpack.c.b16 %v1081, %v1080
        %v1095 = vpack.c.b16 %v1083, %v1082
        %v1096 = vpack.c.b16 %v1085, %v1084
        %v1097 = vpack.c.b16 %v1087, %v1086
        %v1098 = vpack.c.b16 %v1089, %v1088
        %v1099 = vpack.c.b16 %v1091, %v1090
        %1108 = vmatprep.subr.bf16.mxu0 0
        %1109 = vmatpush1.bf16.msra.mxu0 %v1099
        %1110 = vmatprep.subr.bf16.mxu0 0
        %1111 = vmatpush1.bf16.msra.mxu0 %v1098
        %1112 = vmatprep.subr.bf16.mxu0 0
        %1113 = vmatpush1.bf16.msra.mxu0 %v1097
        %1114 = vmatprep.subr.bf16.mxu0 0
        %1115 = vmatpush1.bf16.msra.mxu0 %v1096
        %1116 = vmatprep.subr.bf16.mxu0 0
        %1117 = vmatpush1.bf16.msra.mxu0 %v1095
        %1118 = vmatprep.subr.bf16.mxu0 0
        %1119 = vmatpush1.bf16.msra.mxu0 %v1094
        %1120 = vmatprep.subr.bf16.mxu0 0
        %1121 = vmatpush1.bf16.msra.mxu0 %v1093
        %1122 = vmatprep.subr.bf16.mxu0 0
        %1123 = vmatpush1.bf16.msra.mxu0 %v1092
        %1124 = vmatprep.subr.bf16.mxu0 0
        %1125 = vmatpush2.bf16.msra.mxu0 0
        %1126 = vmatprep.subr.bf16.mxu0 0
        %1127 = vmatpush2.bf16.msra.mxu0 0
        %1128 = vmatprep.subr.bf16.mxu0 0
        %1129 = vmatpush2.bf16.msra.mxu0 0
        %1130 = vmatprep.subr.bf16.mxu0 0
        %1131 = vmatpush2.bf16.msra.mxu0 0
        %1132 = vmatprep.subr.bf16.mxu0 0
        %1133 = vmatpush2.bf16.msra.mxu0 0
        %1134 = vmatprep.subr.bf16.mxu0 0
        %1135 = vmatpush2.bf16.msra.mxu0 0
        %1136 = vmatprep.subr.bf16.mxu0 0
        %1137 = vmatpush2.bf16.msra.mxu0 0
        %1138 = vmatprep.subr.bf16.mxu0 0
        %1139 = vmatpush2.bf16.msra.mxu0 0
        %1140 = vmatprep.mubr.bf16.mxu0 0
        %1141 = vmatmul.mubr.bf16.gmra.mxu0 %v681
        %v1142 = vpop.f32.mrf.mxu0
        %v1143 = vadd.f32 %v1058, %v1142
        %v1144 = vpop.f32.mrf.mxu0
        %v1145 = vpop.f32.mrf.mxu0
        %v1146 = vadd.f32 %v1058, %v1145
        %v1147 = vpop.f32.mrf.mxu0
        %1148 = vmatprep.mubr.bf16.mxu0 0
        %1149 = vmatmul.mubr.bf16.gmra.mxu0 %v682
        %v1150 = vpop.f32.mrf.mxu0
        %v1151 = vadd.f32 %v1058, %v1150
        %v1152 = vpop.f32.mrf.mxu0
        %v1153 = vpop.f32.mrf.mxu0
        %v1154 = vadd.f32 %v1058, %v1153
        %v1155 = vpop.f32.mrf.mxu0
        %1156 = vmatprep.mubr.bf16.mxu0 0
        %1157 = vmatmul.mubr.bf16.gmra.mxu0 %v683
        %v1158 = vpop.f32.mrf.mxu0
        %v1159 = vadd.f32 %v1058, %v1158
        %v1160 = vpop.f32.mrf.mxu0
        %v1161 = vpop.f32.mrf.mxu0
        %v1162 = vadd.f32 %v1058, %v1161
        %v1163 = vpop.f32.mrf.mxu0
        %1164 = vmatprep.mubr.bf16.mxu0 0
        %1165 = vmatmul.mubr.bf16.gmra.mxu0 %v684
        %v1166 = vpop.f32.mrf.mxu0
        %v1167 = vadd.f32 %v1058, %v1166
        %v1168 = vpop.f32.mrf.mxu0
        %v1169 = vpop.f32.mrf.mxu0
        %v1170 = vadd.f32 %v1058, %v1169
        %v1171 = vpop.f32.mrf.mxu0
        %1172 = vdwg.mxu0
        %v1173 = vpack.c.bf16 %v1146, %v1143
        %v1174 = vpack.c.bf16 %v1154, %v1151
        %v1175 = vpack.c.bf16 %v1162, %v1159
        %v1176 = vpack.c.bf16 %v1170, %v1167
        %v1181 = vunpack.c.l.b16 %v1173
        %v1182 = vunpack.c.h.b16 %v1173
        %v1183 = vunpack.c.l.b16 %v1174
        %v1184 = vunpack.c.h.b16 %v1174
        %v1185 = vunpack.c.l.b16 %v1175
        %v1186 = vunpack.c.h.b16 %v1175
        %v1187 = vunpack.c.l.b16 %v1176
        %v1188 = vunpack.c.h.b16 %v1176
        %v1189 = vpack.c.b16 %v1181, %v1181
        %v1190 = vpack.c.b16 %v1182, %v1182
        %v1191 = vpack.c.b16 %v1183, %v1183
        %v1192 = vpack.c.b16 %v1184, %v1184
        %v1193 = vpack.c.b16 %v1185, %v1185
        %v1194 = vpack.c.b16 %v1186, %v1186
        %v1195 = vpack.c.b16 %v1187, %v1187
        %v1196 = vpack.c.b16 %v1188, %v1188
        %1205 = vst [vmem:[%s527] sm:$0xf] %v1189
        %1206 = vst [vmem:[%s527 + $0x4] sm:$0xf] %v1190
        %1207 = vst [vmem:[%s527 + $0x8] sm:$0xf] %v1191
        %1208 = vst [vmem:[%s527 + $0xc] sm:$0xf] %v1192
        %1209 = vst [vmem:[%s527 + $0x10] sm:$0xf] %v1193
        %1210 = vst [vmem:[%s527 + $0x14] sm:$0xf] %v1194
        %1211 = vst [vmem:[%s527 + $0x18] sm:$0xf] %v1195
        %1212 = vst [vmem:[%s527 + $0x1c] sm:$0xf] %v1196
        %s1213 = sand.u32 %s256, 1
        %s1214 = scalar_lea.sflag [#allocation4], %s1213
        %s1215 = sand.u32 %s256, 1
        %s1216 = smul.addr %s1215, 64
        %s1217 = scalar_lea.vmem [#allocation10], %s1216
        %s1218 = sand.u32 %s38, 1
        %s1219 = scalar_lea.sflag [#allocation12], %s1218
        %s1220 = sand.u32 %s284, 1
        %s1221 = smul.addr %s1220, 32
        %s1222 = scalar_lea.vmem [#allocation11], %s1221
        %s1223 = sand.u32 %s38, 1
        %s1224 = scalar_lea.sflag [#allocation12], %s1223
        %s1225 = sand.u32 %s312, 1
        %s1226 = smul.addr %s1225, 32
        %s1227 = scalar_lea.vmem [#allocation13], %s1226
        %s1228 = sand.u32 %s340, 1
        %s1229 = scalar_lea.sflag [#allocation15], %s1228
        %s1230 = sand.u32 %s340, 1
        %s1231 = smul.addr %s1230, 32
        %s1232 = scalar_lea.vmem [#allocation14], %s1231
        // Predicated region
        $region73: #{tpu_custom_call.1} parent=55 // pred_check
          %p1233 = pneg %p266
        $region74: #{tpu_custom_call.1} parent=55 // pred_check_branch
          %1235 = sbr.rel (%p1233) target = $region76
        $region75: #{tpu_custom_call.1} parent=55 // pred_region
          %s1236 = smul.u32 8, %s43
          %s1238 = ssub.s32 1024, 1024
          %1239 = vsyncadd %s1214, %s1238
          %s1240 = smul.addr %s42, 8
          %s1241 = sadd.s32 %s1236, %s1240
          %s1242 = smul.addr %s1241, 128
          %s1243 = scalar_lea.hbm %s9, %s1242
          %s1244 = sshll.u32 %s1217, 4
          %s1245 = int_to_ptr.vmem [resolvable:$true] %s1244
          %1250 = dma.vmem_to_hbm [thread:$0]  %s1245, 1024, %s1243, %s1214, 128, 128, 8
        $region76: #{tpu_custom_call.1} parent=55 // pred_fallthru
          _
        // Predicated region
        $region77: #{tpu_custom_call.1} parent=55 // pred_check
          %p1251 = pneg %p294
        $region78: #{tpu_custom_call.1} parent=55 // pred_check_branch
          %1253 = sbr.rel (%p1251) target = $region80
        $region79: #{tpu_custom_call.1} parent=55 // pred_region
          %s1254 = smul.u32 8, %s43
          %s1256 = ssub.s32 512, 512
          %1257 = vsyncadd %s1219, %s1256
          %s1258 = smul.addr %s42, 8
          %s1259 = sadd.s32 %s1254, %s1258
          %s1260 = smul.addr %s1259, 64
          %s1261 = scalar_lea.hbm %s10, %s1260
          %s1262 = sshll.u32 %s1222, 4
          %s1263 = int_to_ptr.vmem [resolvable:$true] %s1262
          %1268 = dma.vmem_to_hbm [thread:$0]  %s1263, 512, %s1261, %s1219, 64, 64, 4
        $region80: #{tpu_custom_call.1} parent=55 // pred_fallthru
          _
        // Predicated region
        $region81: #{tpu_custom_call.1} parent=55 // pred_check
          %p1269 = pneg %p322
        $region82: #{tpu_custom_call.1} parent=55 // pred_check_branch
          %1271 = sbr.rel (%p1269) target = $region84
        $region83: #{tpu_custom_call.1} parent=55 // pred_region
          %s1272 = smul.u32 8, %s43
          %s1274 = ssub.s32 512, 512
          %1275 = vsyncadd %s1224, %s1274
          %s1276 = smul.addr %s42, 8
          %s1277 = sadd.s32 %s1272, %s1276
          %s1278 = smul.addr %s1277, 64
          %s1279 = scalar_lea.hbm %s11, %s1278
          %s1280 = sshll.u32 %s1227, 4
          %s1281 = int_to_ptr.vmem [resolvable:$true] %s1280
          %1286 = dma.vmem_to_hbm [thread:$0]  %s1281, 512, %s1279, %s1224, 64, 64, 4
        $region84: #{tpu_custom_call.1} parent=55 // pred_fallthru
          _
        // Predicated region
        $region85: #{tpu_custom_call.1} parent=55 // pred_check
          %p1287 = pneg %p350
        $region86: #{tpu_custom_call.1} parent=55 // pred_check_branch
          %1289 = sbr.rel (%p1287) target = $region88
        $region87: #{tpu_custom_call.1} parent=55 // pred_region
          %s1290 = smul.u32 8, %s43
          %s1292 = ssub.s32 512, 512
          %1293 = vsyncadd %s1229, %s1292
          %s1294 = smul.addr %s42, 8
          %s1295 = sadd.s32 %s1290, %s1294
          %s1296 = smul.addr %s1295, 64
          %s1297 = scalar_lea.hbm %s12, %s1296
          %s1298 = sshll.u32 %s1232, 4
          %s1299 = int_to_ptr.vmem [resolvable:$true] %s1298
          %1304 = dma.vmem_to_hbm [thread:$0]  %s1299, 512, %s1297, %s1229, 64, 64, 4
        $region88: #{tpu_custom_call.1} parent=55 // pred_fallthru
          _
      $region56: #{tpu_custom_call.1} parent=5 // pred_fallthru
        _
      %p1305 = scmp.le.s32.totalorder 2, %s33
      // Predicated region
      $region89: #{tpu_custom_call.1} parent=5 // pred_check
        %p1306 = pneg %p1305
      $region90: #{tpu_custom_call.1} parent=5 // pred_check_branch
        %1308 = sbr.rel (%p1306) target = $region92
      $region91: #{tpu_custom_call.1} parent=5 // pred_region
        %s1309 = ssub.s32 %s33, 2
        // Predicated region
        $region93: #{tpu_custom_call.1} parent=91 // pred_check
          %p1310 = pneg %p272
        $region94: #{tpu_custom_call.1} parent=91 // pred_check_branch
          %1312 = sbr.rel (%p1310) target = $region96
        $region95: #{tpu_custom_call.1} parent=91 // pred_region
          %s1313 = sand.u32 %s257, 1
          %s1314 = scalar_lea.sflag [#allocation4], %s1313
          %s1315 = sand.u32 %s257, 1
          %s1316 = smul.addr %s1315, 64
          %s1317 = scalar_lea.vmem [#allocation10], %s1316
          %1318 = dma.done %s1314, 1024
        $region96: #{tpu_custom_call.1} parent=91 // pred_fallthru
          _
        // Predicated region
        $region97: #{tpu_custom_call.1} parent=91 // pred_check
          %p1319 = pneg %p300
        $region98: #{tpu_custom_call.1} parent=91 // pred_check_branch
          %1321 = sbr.rel (%p1319) target = $region100
        $region99: #{tpu_custom_call.1} parent=91 // pred_region
          %s1322 = sand.u32 %s39, 1
          %s1323 = scalar_lea.sflag [#allocation12], %s1322
          %s1324 = sand.u32 %s285, 1
          %s1325 = smul.addr %s1324, 32
          %s1326 = scalar_lea.vmem [#allocation11], %s1325
          %1327 = dma.done %s1323, 512
        $region100: #{tpu_custom_call.1} parent=91 // pred_fallthru
          _
        // Predicated region
        $region101: #{tpu_custom_call.1} parent=91 // pred_check
          %p1328 = pneg %p328
        $region102: #{tpu_custom_call.1} parent=91 // pred_check_branch
          %1330 = sbr.rel (%p1328) target = $region104
        $region103: #{tpu_custom_call.1} parent=91 // pred_region
          %s1331 = sand.u32 %s39, 1
          %s1332 = scalar_lea.sflag [#allocation12], %s1331
          %s1333 = sand.u32 %s313, 1
          %s1334 = smul.addr %s1333, 32
          %s1335 = scalar_lea.vmem [#allocation13], %s1334
          %1336 = dma.done %s1332, 512
        $region104: #{tpu_custom_call.1} parent=91 // pred_fallthru
          _
        // Predicated region
        $region105: #{tpu_custom_call.1} parent=91 // pred_check
          %p1337 = pneg %p356
        $region106: #{tpu_custom_call.1} parent=91 // pred_check_branch
          %1339 = sbr.rel (%p1337) target = $region108
        $region107: #{tpu_custom_call.1} parent=91 // pred_region
          %s1340 = sand.u32 %s341, 1
          %s1341 = scalar_lea.sflag [#allocation15], %s1340
          %s1342 = sand.u32 %s341, 1
          %s1343 = smul.addr %s1342, 32
          %s1344 = scalar_lea.vmem [#allocation14], %s1343
          %1345 = dma.done %s1341, 512
        $region108: #{tpu_custom_call.1} parent=91 // pred_fallthru
          _
      $region92: #{tpu_custom_call.1} parent=5 // pred_fallthru
        _
    $region6: #{tpu_custom_call.1} parent=1 // loop_footer
      %s37 = sadd.s32 1, %s33
    $region7: #{tpu_custom_call.1} parent=1 // loop_footer_branch
      %32 = sbr.rel target = $region3
    $region8: #{tpu_custom_call.1} parent=1 // loop_exit
      _
    %1346 = vsyncpa [#allocation3], 1
    %s1347 = scalar_lea.sflag [#allocation3], 1
    %1348 = vsyncpa %s1347, 1
    %1349 = vsyncpa [#allocation6], 1
    %1350 = vsyncpa [#allocation9], 1
    %1351 = vsyncpa [#allocation4], 1
    %s1352 = scalar_lea.sflag [#allocation4], 1
    %1353 = vsyncpa %s1352, 1
    %1354 = vsyncpa [#allocation12], 1
    %s1355 = scalar_lea.sflag [#allocation12], 1
    %1356 = vsyncpa %s1355, 1
    %1357 = vsyncpa [#allocation15], 1
    %s1358 = scalar_lea.sflag [#allocation15], 1
    %1359 = vsyncpa %s1358, 1

// kernel: tpu_custom_call.1
$region0: #{tpu_custom_call.1}
  #allocation0 [shape = 'u32[]', space=smem, size = 0x4, offset = 0x4, fixed_abs, tag = 'smem constant byte address 0x4 - core index']
  #allocation1 [shape = 'u32[144,128]{1,0:T(1,128)}', space=vmem, size = 0x12000, scoped, tag = 'internal scratch']
  %s0 = inlined_call_operand.hbm [shape: f32[2,64,128], index: 0, kind: input, shape index: {}]
  %s1 = inlined_call_operand.vmem [shape: f32[1,128], index: 1, kind: input, shape index: {}]
  %s2 = inlined_call_operand.vmem [shape: f32[1,128], index: 2, kind: input, shape index: {}]
  %s3 = inlined_call_operand.hbm [shape: bf16[128,128], index: 3, kind: input, shape index: {}]
  %s4 = inlined_call_operand.vmem [shape: f32[1,128], index: 4, kind: input, shape index: {}]
  %s5 = inlined_call_operand.hbm [shape: bf16[128,128], index: 5, kind: input, shape index: {}]
  %s6 = inlined_call_operand.vmem [shape: f32[1,128], index: 6, kind: input, shape index: {}]
  %s7 = inlined_call_operand.hbm [shape: bf16[128,128], index: 7, kind: input, shape index: {}]
  %s8 = inlined_call_operand.vmem [shape: f32[1,128], index: 8, kind: input, shape index: {}]
  %s9 = inlined_call_operand.hbm [shape: f32[2,64,128], index: 9, kind: output, shape index: {0}]
  %s10 = inlined_call_operand.hbm [shape: bf16[2,64,128], index: 10, kind: output, shape index: {1}]
  %s11 = inlined_call_operand.hbm [shape: bf16[2,64,128], index: 11, kind: output, shape index: {2}]
  %s12 = inlined_call_operand.hbm [shape: bf16[2,64,128], index: 12, kind: output, shape index: {3}]
  %13 = xla_tuple %s9, %s10, %s11, %s12
  %s14 = sld [smem:[#allocation0]]
  $region109: #{tpu_custom_call.1} parent=0
    _
  %s16 = ssub.s32 1, %s14
  %s17 = scalar_select 0, %s16, %s14
  $region1: #{tpu_custom_call.1} parent=0
    #allocation2 [shape = 'u8[65536]{0}', space=vmem, size = 0x10000, scoped, tag = 'input window, operand 0']
    #allocation3 [shape = 's32[2]{0}', space=sflag, size = 0x8, scoped, tag = 'scoped memory for tpu_custom_call.1']
    #allocation4 [shape = 's32[2]{0}', space=sflag, size = 0x8, scoped, tag = 'scoped memory for tpu_custom_call.1']
    #allocation5 [shape = 'u8[32768]{0}', space=vmem, size = 0x8000, scoped, tag = 'input window, operand 3, single buffered']
    #allocation6 [shape = 's32[1]{0}', space=sflag, size = 0x4, scoped, tag = 'scoped memory for tpu_custom_call.1']
    #allocation7 [shape = 'u8[32768]{0}', space=vmem, size = 0x8000, scoped, tag = 'input window, operand 5, single buffered']
    #allocation8 [shape = 'u8[32768]{0}', space=vmem, size = 0x8000, scoped, tag = 'input window, operand 7, single buffered']
    #allocation9 [shape = 's32[1]{0}', space=sflag, size = 0x4, scoped, tag = 'scoped memory for tpu_custom_call.1']
    #allocation10 [shape = 'u8[65536]{0}', space=vmem, size = 0x10000, scoped, tag = 'output window, operand 0']
    #allocation11 [shape = 'u8[32768]{0}', space=vmem, size = 0x8000, scoped, tag = 'output window, operand 1']
    #allocation12 [shape = 's32[2]{0}', space=sflag, size = 0x8, scoped, tag = 'scoped memory for tpu_custom_call.1']
    #allocation13 [shape = 'u8[32768]{0}', space=vmem, size = 0x8000, scoped, tag = 'output window, operand 2']
    #allocation14 [shape = 'u8[32768]{0}', space=vmem, size = 0x8000, scoped, tag = 'output window, operand 3']
    #allocation15 [shape = 's32[2]{0}', space=sflag, size = 0x8, scoped, tag = 'scoped memory for tpu_custom_call.1']
    %18 = vsyncpa [#allocation3], 0
    %s19 = scalar_lea.sflag [#allocation3], 1
    %20 = vsyncpa %s19, 0
    %21 = vsyncpa [#allocation6], 0
    %22 = vsyncpa [#allocation9], 0
    %23 = vsyncpa [#allocation4], 0
    %s24 = scalar_lea.sflag [#allocation4], 1
    %25 = vsyncpa %s24, 0
    %26 = vsyncpa [#allocation12], 0
    %s27 = scalar_lea.sflag [#allocation12], 1
    %28 = vsyncpa %s27, 0
    %29 = vsyncpa [#allocation15], 0
    %s30 = scalar_lea.sflag [#allocation15], 1
    %31 = vsyncpa %s30, 0
    loop: start=0, step=1, limit=4
    $region2: #{tpu_custom_call.1} parent=1 // loop_pre_header
      _
    $region3: #{tpu_custom_call.1} parent=1 // loop_header
      %s33 = sphi 0, %s37
      %p34 = scmp.ge.s32.totalorder %s33, 4
      %s40 = sphi 0, %s52
      %s41 = sphi 0, %s48
      %s42 = sphi 0, %s40
      %s43 = sphi 0, %s41
      %s44 = sphi 0, %s42
      %s45 = sphi 0, %s43
      %s57 = sphi 0, %s59
      %s60 = sphi 0, %s57
      %s61 = sphi 0, %s60
      %s77 = sphi 0, %s61
      %s81 = sphi 0, %s81
      %s83 = sphi 0, %s81
      %s84 = sphi 0, %s83
      %s98 = sphi 0, %s84
      %s102 = sphi 0, %s102
      %s104 = sphi 0, %s102
      %s105 = sphi 0, %s104
      %s119 = sphi 0, %s105
      %s123 = sphi 0, %s123
      %s125 = sphi 0, %s123
      %s126 = sphi 0, %s125
      %s140 = sphi 0, %s126
      %s144 = sphi 0, %s144
      %s146 = sphi 0, %s144
      %s147 = sphi 0, %s146
      %s161 = sphi 0, %s147
      %s165 = sphi 0, %s165
      %s167 = sphi 0, %s165
      %s168 = sphi 0, %s167
      %s182 = sphi 0, %s168
      %s186 = sphi 0, %s186
      %s188 = sphi 0, %s186
      %s189 = sphi 0, %s188
      %s203 = sphi 0, %s189
      %s207 = sphi 0, %s207
      %s209 = sphi 0, %s207
      %s210 = sphi 0, %s209
      %s224 = sphi 0, %s210
      %s228 = sphi 0, %s228
      %s230 = sphi 0, %s228
      %s231 = sphi 0, %s230
      %s245 = sphi 0, %s231
      %s253 = sphi 0, %s255
      %s256 = sphi 0, %s253
      %s257 = sphi 0, %s256
      %s273 = sphi 0, %s257
      %s281 = sphi 0, %s283
      %s284 = sphi 0, %s281
      %s285 = sphi 0, %s284
      %s301 = sphi 0, %s285
      %s309 = sphi 0, %s311
      %s312 = sphi 0, %s309
      %s313 = sphi 0, %s312
      %s329 = sphi 0, %s313
      %s337 = sphi 0, %s339
      %s340 = sphi 0, %s337
      %s341 = sphi 0, %s340
      %s357 = sphi 0, %s341
    $region4: #{tpu_custom_call.1} parent=1 // loop_header_branch
      %36 = sbr.rel (%p34) target = $region8
    $region5: #{tpu_custom_call.1} parent=1 // loop_body
      %s38 = ssub.s32 %s33, 1
      %s39 = ssub.s32 %s33, 2
      %s46 = sadd.s32 1, %s41
      %p47 = scmp.ge.s32.totalorder %s46, 1
      %s48 = scalar_select %p47, 0, %s46
      %s49 = sadd.s32 1, %s40
      %s50 = scalar_select %p47, %s49, %s40
      %p51 = scmp.ge.s32.totalorder %s50, 2
      %s52 = scalar_select %p51, 0, %s50
      %s53 = ssub.s32 %s40, %s52
      %s54 = ssub.s32 %s41, %s48
      %s55 = sor.u32 %s53, %s54
      %p56 = scmp.eq.s32.totalorder %s55, 0
      %s58 = sadd.s32 %s57, 1
      %s59 = scalar_select %p56, %s57, %s58
      %p62 = pneg %p56
      %p63 = scmp.eq.s32.totalorder %s33, 1
      %p64 = por %p62, %p63
      %p65 = scmp.ne.s32.totalorder %s57, %s60
      %p66 = scmp.eq.s32.totalorder %s33, 0
      %p67 = por %p65, %p66
      %p68 = scmp.ne.s32.totalorder %s57, %s60
      %p69 = scmp.eq.s32.totalorder %s38, 1
      %p70 = por %p68, %p69
      %p71 = scmp.ne.s32.totalorder %s60, %s61
      %p72 = scmp.eq.s32.totalorder %s38, 0
      %p73 = por %p71, %p72
      %p74 = scmp.ne.s32.totalorder %s60, %s61
      %p75 = scmp.eq.s32.totalorder %s39, 1
      %p76 = por %p74, %p75
      %p78 = scmp.ne.s32.totalorder %s61, %s77
      %p79 = scmp.eq.s32.totalorder %s39, 0
      %p80 = por %p78, %p79
      %s82 = sadd.s32 %s81, 1
      %p85 = scmp.eq.s32.totalorder %s33, 1
      %p86 = scmp.ne.s32.totalorder %s81, %s83
      %p87 = scmp.eq.s32.totalorder %s33, 0
      %p88 = por %p86, %p87
      %p89 = scmp.ne.s32.totalorder %s81, %s83
      %p90 = scmp.eq.s32.totalorder %s38, 1
      %p91 = por %p89, %p90
      %p92 = scmp.ne.s32.totalorder %s83, %s84
      %p93 = scmp.eq.s32.totalorder %s38, 0
      %p94 = por %p92, %p93
      %p95 = scmp.ne.s32.totalorder %s83, %s84
      %p96 = scmp.eq.s32.totalorder %s39, 1
      %p97 = por %p95, %p96
      %p99 = scmp.ne.s32.totalorder %s84, %s98
      %p100 = scmp.eq.s32.totalorder %s39, 0
      %p101 = por %p99, %p100
      %s103 = sadd.s32 %s102, 1
      %p106 = scmp.eq.s32.totalorder %s33, 1
      %p107 = scmp.ne.s32.totalorder %s102, %s104
      %p108 = scmp.eq.s32.totalorder %s33, 0
      %p109 = por %p107, %p108
      %p110 = scmp.ne.s32.totalorder %s102, %s104
      %p111 = scmp.eq.s32.totalorder %s38, 1
      %p112 = por %p110, %p111
      %p113 = scmp.ne.s32.totalorder %s104, %s105
      %p114 = scmp.eq.s32.totalorder %s38, 0
      %p115 = por %p113, %p114
      %p116 = scmp.ne.s32.totalorder %s104, %s105
      %p117 = scmp.eq.s32.totalorder %s39, 1
      %p118 = por %p116, %p117
      %p120 = scmp.ne.s32.totalorder %s105, %s119
      %p121 = scmp.eq.s32.totalorder %s39, 0
      %p122 = por %p120, %p121
      %s124 = sadd.s32 %s123, 1
      %p127 = scmp.eq.s32.totalorder %s33, 1
      %p128 = scmp.ne.s32.totalorder %s123, %s125
      %p129 = scmp.eq.s32.totalorder %s33, 0
      %p130 = por %p128, %p129
      %p131 = scmp.ne.s32.totalorder %s123, %s125
      %p132 = scmp.eq.s32.totalorder %s38, 1
      %p133 = por %p131, %p132
      %p134 = scmp.ne.s32.totalorder %s125, %s126
      %p135 = scmp.eq.s32.totalorder %s38, 0
      %p136 = por %p134, %p135
      %p137 = scmp.ne.s32.totalorder %s125, %s126
      %p138 = scmp.eq.s32.totalorder %s39, 1
      %p139 = por %p137, %p138
      %p141 = scmp.ne.s32.totalorder %s126, %s140
      %p142 = scmp.eq.s32.totalorder %s39, 0
      %p143 = por %p141, %p142
      %s145 = sadd.s32 %s144, 1
      %p148 = scmp.eq.s32.totalorder %s33, 1
      %p149 = scmp.ne.s32.totalorder %s144, %s146
      %p150 = scmp.eq.s32.totalorder %s33, 0
      %p151 = por %p149, %p150
      %p152 = scmp.ne.s32.totalorder %s144, %s146
      %p153 = scmp.eq.s32.totalorder %s38, 1
      %p154 = por %p152, %p153
      %p155 = scmp.ne.s32.totalorder %s146, %s147
      %p156 = scmp.eq.s32.totalorder %s38, 0
      %p157 = por %p155, %p156
      %p158 = scmp.ne.s32.totalorder %s146, %s147
      %p159 = scmp.eq.s32.totalorder %s39, 1
      %p160 = por %p158, %p159
      %p162 = scmp.ne.s32.totalorder %s147, %s161
      %p163 = scmp.eq.s32.totalorder %s39, 0
      %p164 = por %p162, %p163
      %s166 = sadd.s32 %s165, 1
      %p169 = scmp.eq.s32.totalorder %s33, 1
      %p170 = scmp.ne.s32.totalorder %s165, %s167
      %p171 = scmp.eq.s32.totalorder %s33, 0
      %p172 = por %p170, %p171
      %p173 = scmp.ne.s32.totalorder %s165, %s167
      %p174 = scmp.eq.s32.totalorder %s38, 1
      %p175 = por %p173, %p174
      %p176 = scmp.ne.s32.totalorder %s167, %s168
      %p177 = scmp.eq.s32.totalorder %s38, 0
      %p178 = por %p176, %p177
      %p179 = scmp.ne.s32.totalorder %s167, %s168
      %p180 = scmp.eq.s32.totalorder %s39, 1
      %p181 = por %p179, %p180
      %p183 = scmp.ne.s32.totalorder %s168, %s182
      %p184 = scmp.eq.s32.totalorder %s39, 0
      %p185 = por %p183, %p184
      %s187 = sadd.s32 %s186, 1
      %p190 = scmp.eq.s32.totalorder %s33, 1
      %p191 = scmp.ne.s32.totalorder %s186, %s188
      %p192 = scmp.eq.s32.totalorder %s33, 0
      %p193 = por %p191, %p192
      %p194 = scmp.ne.s32.totalorder %s186, %s188
      %p195 = scmp.eq.s32.totalorder %s38, 1
      %p196 = por %p194, %p195
      %p197 = scmp.ne.s32.totalorder %s188, %s189
      %p198 = scmp.eq.s32.totalorder %s38, 0
      %p199 = por %p197, %p198
      %p200 = scmp.ne.s32.totalorder %s188, %s189
      %p201 = scmp.eq.s32.totalorder %s39, 1
      %p202 = por %p200, %p201
      %p204 = scmp.ne.s32.totalorder %s189, %s203
      %p205 = scmp.eq.s32.totalorder %s39, 0
      %p206 = por %p204, %p205
      %s208 = sadd.s32 %s207, 1
      %p211 = scmp.eq.s32.totalorder %s33, 1
      %p212 = scmp.ne.s32.totalorder %s207, %s209
      %p213 = scmp.eq.s32.totalorder %s33, 0
      %p214 = por %p212, %p213
      %p215 = scmp.ne.s32.totalorder %s207, %s209
      %p216 = scmp.eq.s32.totalorder %s38, 1
      %p217 = por %p215, %p216
      %p218 = scmp.ne.s32.totalorder %s209, %s210
      %p219 = scmp.eq.s32.totalorder %s38, 0
      %p220 = por %p218, %p219
      %p221 = scmp.ne.s32.totalorder %s209, %s210
      %p222 = scmp.eq.s32.totalorder %s39, 1
      %p223 = por %p221, %p222
      %p225 = scmp.ne.s32.totalorder %s210, %s224
      %p226 = scmp.eq.s32.totalorder %s39, 0
      %p227 = por %p225, %p226
      %s229 = sadd.s32 %s228, 1
      %p232 = scmp.eq.s32.totalorder %s33, 1
      %p233 = scmp.ne.s32.totalorder %s228, %s230
      %p234 = scmp.eq.s32.totalorder %s33, 0
      %p235 = por %p233, %p234
      %p236 = scmp.ne.s32.totalorder %s228, %s230
      %p237 = scmp.eq.s32.totalorder %s38, 1
      %p238 = por %p236, %p237
      %p239 = scmp.ne.s32.totalorder %s230, %s231
      %p240 = scmp.eq.s32.totalorder %s38, 0
      %p241 = por %p239, %p240
      %p242 = scmp.ne.s32.totalorder %s230, %s231
      %p243 = scmp.eq.s32.totalorder %s39, 1
      %p244 = por %p242, %p243
      %p246 = scmp.ne.s32.totalorder %s231, %s245
      %p247 = scmp.eq.s32.totalorder %s39, 0
      %p248 = por %p246, %p247
      %s249 = ssub.s32 %s40, %s52
      %s250 = ssub.s32 %s41, %s48
      %s251 = sor.u32 %s249, %s250
      %p252 = scmp.eq.s32.totalorder %s251, 0
      %s254 = sadd.s32 %s253, 1
      %s255 = scalar_select %p252, %s253, %s254
      %p258 = pneg %p252
      %p259 = scmp.eq.s32.totalorder %s33, 1
      %p260 = por %p258, %p259
      %p261 = scmp.ne.s32.totalorder %s253, %s256
      %p262 = scmp.eq.s32.totalorder %s33, 0
      %p263 = por %p261, %p262
      %p264 = scmp.ne.s32.totalorder %s253, %s256
      %p265 = scmp.eq.s32.totalorder %s38, 1
      %p266 = por %p264, %p265
      %p267 = scmp.ne.s32.totalorder %s256, %s257
      %p268 = scmp.eq.s32.totalorder %s38, 0
      %p269 = por %p267, %p268
      %p270 = scmp.ne.s32.totalorder %s256, %s257
      %p271 = scmp.eq.s32.totalorder %s39, 1
      %p272 = por %p270, %p271
      %p274 = scmp.ne.s32.totalorder %s257, %s273
      %p275 = scmp.eq.s32.totalorder %s39, 0
      %p276 = por %p274, %p275
      %s277 = ssub.s32 %s40, %s52
      %s278 = ssub.s32 %s41, %s48
      %s279 = sor.u32 %s277, %s278
      %p280 = scmp.eq.s32.totalorder %s279, 0
      %s282 = sadd.s32 %s281, 1
      %s283 = scalar_select %p280, %s281, %s282
      %p286 = pneg %p280
      %p287 = scmp.eq.s32.totalorder %s33, 1
      %p288 = por %p286, %p287
      %p289 = scmp.ne.s32.totalorder %s281, %s284
      %p290 = scmp.eq.s32.totalorder %s33, 0
      %p291 = por %p289, %p290
      %p292 = scmp.ne.s32.totalorder %s281, %s284
      %p293 = scmp.eq.s32.totalorder %s38, 1
      %p294 = por %p292, %p293
      %p295 = scmp.ne.s32.totalorder %s284, %s285
      %p296 = scmp.eq.s32.totalorder %s38, 0
      %p297 = por %p295, %p296
      %p298 = scmp.ne.s32.totalorder %s284, %s285
      %p299 = scmp.eq.s32.totalorder %s39, 1
      %p300 = por %p298, %p299
      %p302 = scmp.ne.s32.totalorder %s285, %s301
      %p303 = scmp.eq.s32.totalorder %s39, 0
      %p304 = por %p302, %p303
      %s305 = ssub.s32 %s40, %s52
      %s306 = ssub.s32 %s41, %s48
      %s307 = sor.u32 %s305, %s306
      %p308 = scmp.eq.s32.totalorder %s307, 0
      %s310 = sadd.s32 %s309, 1
      %s311 = scalar_select %p308, %s309, %s310
      %p314 = pneg %p308
      %p315 = scmp.eq.s32.totalorder %s33, 1
      %p316 = por %p314, %p315
      %p317 = scmp.ne.s32.totalorder %s309, %s312
      %p318 = scmp.eq.s32.totalorder %s33, 0
      %p319 = por %p317, %p318
      %p320 = scmp.ne.s32.totalorder %s309, %s312
      %p321 = scmp.eq.s32.totalorder %s38, 1
      %p322 = por %p320, %p321
      %p323 = scmp.ne.s32.totalorder %s312, %s313
      %p324 = scmp.eq.s32.totalorder %s38, 0
      %p325 = por %p323, %p324
      %p326 = scmp.ne.s32.totalorder %s312, %s313
      %p327 = scmp.eq.s32.totalorder %s39, 1
      %p328 = por %p326, %p327
      %p330 = scmp.ne.s32.totalorder %s313, %s329
      %p331 = scmp.eq.s32.totalorder %s39, 0
      %p332 = por %p330, %p331
      %s333 = ssub.s32 %s40, %s52
      %s334 = ssub.s32 %s41, %s48
      %s335 = sor.u32 %s333, %s334
      %p336 = scmp.eq.s32.totalorder %s335, 0
      %s338 = sadd.s32 %s337, 1
      %s339 = scalar_select %p336, %s337, %s338
      %p342 = pneg %p336
      %p343 = scmp.eq.s32.totalorder %s33, 1
      %p344 = por %p342, %p343
      %p345 = scmp.ne.s32.totalorder %s337, %s340
      %p346 = scmp.eq.s32.totalorder %s33, 0
      %p347 = por %p345, %p346
      %p348 = scmp.ne.s32.totalorder %s337, %s340
      %p349 = scmp.eq.s32.totalorder %s38, 1
      %p350 = por %p348, %p349
      %p351 = scmp.ne.s32.totalorder %s340, %s341
      %p352 = scmp.eq.s32.totalorder %s38, 0
      %p353 = por %p351, %p352
      %p354 = scmp.ne.s32.totalorder %s340, %s341
      %p355 = scmp.eq.s32.totalorder %s39, 1
      %p356 = por %p354, %p355
      %p358 = scmp.ne.s32.totalorder %s341, %s357
      %p359 = scmp.eq.s32.totalorder %s39, 0
      %p360 = por %p358, %p359
      %p361 = scmp.le.s32.totalorder 1, %s33
      %p362 = scmp.lt.s32.totalorder %s33, 3
      %p363 = pnand %p361, %p362
      %p364 = pneg %p363
      // Predicated region
      $region9: #{tpu_custom_call.1} parent=5 // pred_check
        _
      $region10: #{tpu_custom_call.1} parent=5 // pred_check_branch
        %366 = sbr.rel (%p363) target = $region12
      $region11: #{tpu_custom_call.1} parent=5 // pred_region
        %s367 = ssub.s32 %s33, 1
        // Predicated region
        $region13: #{tpu_custom_call.1} parent=11 // pred_check
          %p368 = pneg %p94
        $region14: #{tpu_custom_call.1} parent=11 // pred_check_branch
          %370 = sbr.rel (%p368) target = $region16
        $region15: #{tpu_custom_call.1} parent=11 // pred_region
          _
        $region16: #{tpu_custom_call.1} parent=11 // pred_fallthru
          _
        // Predicated region
        $region17: #{tpu_custom_call.1} parent=11 // pred_check
          %p371 = pneg %p115
        $region18: #{tpu_custom_call.1} parent=11 // pred_check_branch
          %373 = sbr.rel (%p371) target = $region20
        $region19: #{tpu_custom_call.1} parent=11 // pred_region
          _
        $region20: #{tpu_custom_call.1} parent=11 // pred_fallthru
          _
        // Predicated region
        $region21: #{tpu_custom_call.1} parent=11 // pred_check
          %p374 = pneg %p136
        $region22: #{tpu_custom_call.1} parent=11 // pred_check_branch
          %376 = sbr.rel (%p374) target = $region24
        $region23: #{tpu_custom_call.1} parent=11 // pred_region
          %s378 = ssub.s32 1024, 1024
          %379 = vsyncadd [#allocation6], %s378
          %s380 = sshll.u32 [#allocation5], 4
          %s381 = int_to_ptr.vmem [resolvable:$true] %s380
          %386 = dma.hbm_to_vmem [thread:$0]  %s3, 1024, %s381, [#allocation6], 64, 64, 4
        $region24: #{tpu_custom_call.1} parent=11 // pred_fallthru
          _
        // Predicated region
        $region25: #{tpu_custom_call.1} parent=11 // pred_check
          %p387 = pneg %p157
        $region26: #{tpu_custom_call.1} parent=11 // pred_check_branch
          %389 = sbr.rel (%p387) target = $region28
        $region27: #{tpu_custom_call.1} parent=11 // pred_region
          _
        $region28: #{tpu_custom_call.1} parent=11 // pred_fallthru
          _
        // Predicated region
        $region29: #{tpu_custom_call.1} parent=11 // pred_check
          %p390 = pneg %p178
        $region30: #{tpu_custom_call.1} parent=11 // pred_check_branch
          %392 = sbr.rel (%p390) target = $region32
        $region31: #{tpu_custom_call.1} parent=11 // pred_region
          %s394 = ssub.s32 1024, 1024
          %395 = vsyncadd [#allocation6], %s394
          %s396 = sshll.u32 [#allocation7], 4
          %s397 = int_to_ptr.vmem [resolvable:$true] %s396
          %402 = dma.hbm_to_vmem [thread:$0]  %s5, 1024, %s397, [#allocation6], 64, 64, 4
        $region32: #{tpu_custom_call.1} parent=11 // pred_fallthru
          _
        // Predicated region
        $region33: #{tpu_custom_call.1} parent=11 // pred_check
          %p403 = pneg %p199
        $region34: #{tpu_custom_call.1} parent=11 // pred_check_branch
          %405 = sbr.rel (%p403) target = $region36
        $region35: #{tpu_custom_call.1} parent=11 // pred_region
          _
        $region36: #{tpu_custom_call.1} parent=11 // pred_fallthru
          _
        // Predicated region
        $region37: #{tpu_custom_call.1} parent=11 // pred_check
          %p406 = pneg %p220
        $region38: #{tpu_custom_call.1} parent=11 // pred_check_branch
          %408 = sbr.rel (%p406) target = $region40
        $region39: #{tpu_custom_call.1} parent=11 // pred_region
          %s410 = ssub.s32 1024, 1024
          %411 = vsyncadd [#allocation9], %s410
          %s412 = sshll.u32 [#allocation8], 4
          %s413 = int_to_ptr.vmem [resolvable:$true] %s412
          %418 = dma.hbm_to_vmem [thread:$0]  %s7, 1024, %s413, [#allocation9], 64, 64, 4
        $region40: #{tpu_custom_call.1} parent=11 // pred_fallthru
          _
        // Predicated region
        $region41: #{tpu_custom_call.1} parent=11 // pred_check
          %p419 = pneg %p241
        $region42: #{tpu_custom_call.1} parent=11 // pred_check_branch
          %421 = sbr.rel (%p419) target = $region44
        $region43: #{tpu_custom_call.1} parent=11 // pred_region
          _
        $region44: #{tpu_custom_call.1} parent=11 // pred_fallthru
          _
      $region12: #{tpu_custom_call.1} parent=5 // pred_fallthru
        _
      %p422 = scmp.lt.s32.totalorder %s33, 2
      // Predicated region
      $region45: #{tpu_custom_call.1} parent=5 // pred_check
        %p423 = pneg %p422
      $region46: #{tpu_custom_call.1} parent=5 // pred_check_branch
        %425 = sbr.rel (%p423) target = $region48
      $region47: #{tpu_custom_call.1} parent=5 // pred_region
        // Predicated region
        $region49: #{tpu_custom_call.1} parent=47 // pred_check
          %p426 = pneg %p67
        $region50: #{tpu_custom_call.1} parent=47 // pred_check_branch
          %428 = sbr.rel (%p426) target = $region52
        $region51: #{tpu_custom_call.1} parent=47 // pred_region
          %s429 = sand.u32 %s57, 1
          %s430 = scalar_lea.sflag [#allocation3], %s429
          %s431 = sand.u32 %s57, 1
          %s432 = smul.addr %s431, 64
          %s433 = scalar_lea.vmem [#allocation2], %s432
          %s434 = smul.u32 8, %s41
          %s436 = ssub.s32 1024, 1024
          %437 = vsyncadd %s430, %s436
          %s438 = smul.addr %s40, 8
          %s439 = sadd.s32 %s434, %s438
          %s440 = smul.addr %s439, 128
          %s441 = scalar_lea.hbm %s0, %s440
          %s442 = sshll.u32 %s433, 4
          %s443 = int_to_ptr.vmem [resolvable:$true] %s442
          %448 = dma.hbm_to_vmem [thread:$0]  %s441, 1024, %s443, %s430, 128, 128, 8
        $region52: #{tpu_custom_call.1} parent=47 // pred_fallthru
          _
      $region48: #{tpu_custom_call.1} parent=5 // pred_fallthru
        _
      %p449 = scmp.le.s32.totalorder 1, %s33
      %p450 = scmp.lt.s32.totalorder %s33, 3
      %p451 = pnand %p449, %p450
      %p452 = pneg %p451
      // Predicated region
      $region53: #{tpu_custom_call.1} parent=5 // pred_check
        _
      $region54: #{tpu_custom_call.1} parent=5 // pred_check_branch
        %454 = sbr.rel (%p451) target = $region56
      $region55: #{tpu_custom_call.1} parent=5 // pred_region
        %s455 = ssub.s32 %s33, 1
        %s456 = sand.u32 %s60, 1
        %s457 = scalar_lea.sflag [#allocation3], %s456
        %s458 = sand.u32 %s60, 1
        %s459 = smul.addr %s458, 64
        %s460 = scalar_lea.vmem [#allocation2], %s459
        // Predicated region
        $region57: #{tpu_custom_call.1} parent=55 // pred_check
          %p461 = pneg %p73
        $region58: #{tpu_custom_call.1} parent=55 // pred_check_branch
          %463 = sbr.rel (%p461) target = $region60
        $region59: #{tpu_custom_call.1} parent=55 // pred_region
          %464 = dma.done %s457, 1024
        $region60: #{tpu_custom_call.1} parent=55 // pred_fallthru
          _
        // Predicated region
        $region61: #{tpu_custom_call.1} parent=55 // pred_check
          %p465 = pneg %p136
        $region62: #{tpu_custom_call.1} parent=55 // pred_check_branch
          %467 = sbr.rel (%p465) target = $region64
        $region63: #{tpu_custom_call.1} parent=55 // pred_region
          %468 = dma.done [#allocation6], 1024
        $region64: #{tpu_custom_call.1} parent=55 // pred_fallthru
          _
        // Predicated region
        $region65: #{tpu_custom_call.1} parent=55 // pred_check
          %p469 = pneg %p178
        $region66: #{tpu_custom_call.1} parent=55 // pred_check_branch
          %471 = sbr.rel (%p469) target = $region68
        $region67: #{tpu_custom_call.1} parent=55 // pred_region
          %472 = dma.done [#allocation6], 1024
        $region68: #{tpu_custom_call.1} parent=55 // pred_fallthru
          _
        // Predicated region
        $region69: #{tpu_custom_call.1} parent=55 // pred_check
          %p473 = pneg %p220
        $region70: #{tpu_custom_call.1} parent=55 // pred_check_branch
          %475 = sbr.rel (%p473) target = $region72
        $region71: #{tpu_custom_call.1} parent=55 // pred_region
          %476 = dma.done [#allocation9], 1024
        $region72: #{tpu_custom_call.1} parent=55 // pred_fallthru
          _
        %s477 = sand.u32 %s60, 1
        %s478 = scalar_lea.sflag [#allocation3], %s477
        %s479 = sand.u32 %s60, 1
        %s480 = smul.addr %s479, 64
        %s481 = scalar_lea.vmem [#allocation2], %s480
        %p482 = pneg %p73
        %p483 = pneg %p70
        %p484 = pneg %p94
        %p485 = pneg %p91
        %p486 = pneg %p115
        %p487 = pneg %p112
        %p488 = pneg %p136
        %p489 = pneg %p133
        %p490 = pneg %p157
        %p491 = pneg %p154
        %p492 = pneg %p178
        %p493 = pneg %p175
        %p494 = pneg %p199
        %p495 = pneg %p196
        %p496 = pneg %p220
        %p497 = pneg %p217
        %p498 = pneg %p241
        %p499 = pneg %p238
        %p500 = pneg %p269
        %p501 = pneg %p266
        %s502 = sand.u32 %s256, 1
        %s503 = scalar_lea.sflag [#allocation4], %s502
        %s504 = sand.u32 %s256, 1
        %s505 = smul.addr %s504, 64
        %s506 = scalar_lea.vmem [#allocation10], %s505
        %p507 = pneg %p297
        %p508 = pneg %p294
        %s509 = sand.u32 %s38, 1
        %s510 = scalar_lea.sflag [#allocation12], %s509
        %s511 = sand.u32 %s284, 1
        %s512 = smul.addr %s511, 32
        %s513 = scalar_lea.vmem [#allocation11], %s512
        %p514 = pneg %p325
        %p515 = pneg %p322
        %s516 = sand.u32 %s38, 1
        %s517 = scalar_lea.sflag [#allocation12], %s516
        %s518 = sand.u32 %s312, 1
        %s519 = smul.addr %s518, 32
        %s520 = scalar_lea.vmem [#allocation13], %s519
        %p521 = pneg %p353
        %p522 = pneg %p350
        %s523 = sand.u32 %s340, 1
        %s524 = scalar_lea.sflag [#allocation15], %s523
        %s525 = sand.u32 %s340, 1
        %s526 = smul.addr %s525, 32
        %s527 = scalar_lea.vmem [#allocation14], %s526
        %s528 = smul.u32 8, %s43
        %s529 = smul.u32 8, %s43
        %s530 = smul.u32 8, %s43
        %s531 = smul.u32 8, %s43
        %s532 = smul.u32 8, %s43
        %v534 = vlaneseq
        %v535 = vand.u32 %v534, 127
        %vm536 = vcmp.lt.s32.totalorder %v535, 32
        %v537 = vsel %vm536, 1, 0
        %v538 = vcvt.s32.f32 %v537
        %v539 = vld [vmem:[%s460] sm:$0xff]
        %v540 = vld [vmem:[%s460 + $0x8] sm:$0xff]
        %v541 = vld [vmem:[%s460 + $0x10] sm:$0xff]
        %v542 = vld [vmem:[%s460 + $0x18] sm:$0xff]
        %v543 = vld [vmem:[%s460 + $0x20] sm:$0xff]
        %v544 = vld [vmem:[%s460 + $0x28] sm:$0xff]
        %v545 = vld [vmem:[%s460 + $0x30] sm:$0xff]
        %v546 = vld [vmem:[%s460 + $0x38] sm:$0xff]
        %v547 = vld [vmem:[%s1] sm:$0x1]
        %v548 = vld [vmem:[%s2] sm:$0x1]
        %549 = vadd.xlane.f32.xlu0 %v539
        %v550 = vpop.xlane.xlu0 %549
        %551 = vadd.xlane.f32.xlu0 %v540
        %v552 = vpop.xlane.xlu0 %551
        %553 = vadd.xlane.f32.xlu0 %v541
        %v554 = vpop.xlane.xlu0 %553
        %555 = vadd.xlane.f32.xlu0 %v542
        %v556 = vpop.xlane.xlu0 %555
        %557 = vadd.xlane.f32.xlu0 %v543
        %v558 = vpop.xlane.xlu0 %557
        %559 = vadd.xlane.f32.xlu0 %v544
        %v560 = vpop.xlane.xlu0 %559
        %561 = vadd.xlane.f32.xlu0 %v545
        %v562 = vpop.xlane.xlu0 %561
        %563 = vadd.xlane.f32.xlu0 %v546
        %v564 = vpop.xlane.xlu0 %563
        %v565 = vmul.f32 %v550, 0.03125
        %v566 = vmul.f32 %v552, 0.03125
        %v567 = vmul.f32 %v554, 0.03125
        %v568 = vmul.f32 %v556, 0.03125
        %v569 = vmul.f32 %v558, 0.03125
        %v570 = vmul.f32 %v560, 0.03125
        %v571 = vmul.f32 %v562, 0.03125
        %v572 = vmul.f32 %v564, 0.03125
        %v573 = vsub.f32 %v539, %v565
        %v574 = vsub.f32 %v540, %v566
        %v575 = vsub.f32 %v541, %v567
        %v576 = vsub.f32 %v542, %v568
        %v577 = vsub.f32 %v543, %v569
        %v578 = vsub.f32 %v544, %v570
        %v579 = vsub.f32 %v545, %v571
        %v580 = vsub.f32 %v546, %v572
        %v581 = vmul.f32 %v573, %v538
        %v582 = vmul.f32 %v574, %v538
        %v583 = vmul.f32 %v575, %v538
        %v584 = vmul.f32 %v576, %v538
        %v585 = vmul.f32 %v577, %v538
        %v586 = vmul.f32 %v578, %v538
        %v587 = vmul.f32 %v579, %v538
        %v588 = vmul.f32 %v580, %v538
        %v589 = vmul.f32 %v581, %v581
        %v590 = vmul.f32 %v582, %v582
        %v591 = vmul.f32 %v583, %v583
        %v592 = vmul.f32 %v584, %v584
        %v593 = vmul.f32 %v585, %v585
        %v594 = vmul.f32 %v586, %v586
        %v595 = vmul.f32 %v587, %v587
        %v596 = vmul.f32 %v588, %v588
        %597 = vadd.xlane.f32.xlu0 %v589
        %v598 = vpop.xlane.xlu0 %597
        %599 = vadd.xlane.f32.xlu0 %v590
        %v600 = vpop.xlane.xlu0 %599
        %601 = vadd.xlane.f32.xlu0 %v591
        %v602 = vpop.xlane.xlu0 %601
        %603 = vadd.xlane.f32.xlu0 %v592
        %v604 = vpop.xlane.xlu0 %603
        %605 = vadd.xlane.f32.xlu0 %v593
        %v606 = vpop.xlane.xlu0 %605
        %607 = vadd.xlane.f32.xlu0 %v594
        %v608 = vpop.xlane.xlu0 %607
        %609 = vadd.xlane.f32.xlu0 %v595
        %v610 = vpop.xlane.xlu0 %609
        %611 = vadd.xlane.f32.xlu0 %v596
        %v612 = vpop.xlane.xlu0 %611
        %v613 = vmul.f32 %v598, 0.03125
        %v614 = vmul.f32 %v600, 0.03125
        %v615 = vmul.f32 %v602, 0.03125
        %v616 = vmul.f32 %v604, 0.03125
        %v617 = vmul.f32 %v606, 0.03125
        %v618 = vmul.f32 %v608, 0.03125
        %v619 = vmul.f32 %v610, 0.03125
        %v620 = vmul.f32 %v612, 0.03125
        %v621 = vadd.f32 %v613, 1e-05
        %v622 = vadd.f32 %v614, 1e-05
        %v623 = vadd.f32 %v615, 1e-05
        %v624 = vadd.f32 %v616, 1e-05
        %v625 = vadd.f32 %v617, 1e-05
        %v626 = vadd.f32 %v618, 1e-05
        %v627 = vadd.f32 %v619, 1e-05
        %v628 = vadd.f32 %v620, 1e-05
        %v629 = vrsqrt.pop %v621
        %v630 = vrsqrt.pop %v622
        %v631 = vrsqrt.pop %v623
        %v632 = vrsqrt.pop %v624
        %v633 = vrsqrt.pop %v625
        %v634 = vrsqrt.pop %v626
        %v635 = vrsqrt.pop %v627
        %v636 = vrsqrt.pop %v628
        %v637 = vmul.f32 %v581, %v629
        %v638 = vmul.f32 %v582, %v630
        %v639 = vmul.f32 %v583, %v631
        %v640 = vmul.f32 %v584, %v632
        %v641 = vmul.f32 %v585, %v633
        %v642 = vmul.f32 %v586, %v634
        %v643 = vmul.f32 %v587, %v635
        %v644 = vmul.f32 %v588, %v636
        %v646 = vlaneseq
        %v647 = vshrl.u32 %v646, 7
        %v648 = vsub.s32 0, %v647
        %v649 = vrot.slane %v547, %v648
        %v651 = vmul.f32 %v637, %v649
        %v652 = vmul.f32 %v638, %v649
        %v653 = vmul.f32 %v639, %v649
        %v654 = vmul.f32 %v640, %v649
        %v655 = vmul.f32 %v641, %v649
        %v656 = vmul.f32 %v642, %v649
        %v657 = vmul.f32 %v643, %v649
        %v658 = vmul.f32 %v644, %v649
        %v660 = vlaneseq
        %v661 = vshrl.u32 %v660, 7
        %v662 = vsub.s32 0, %v661
        %v663 = vrot.slane %v548, %v662
        %v665 = vadd.f32 %v651, %v663
        %v666 = vadd.f32 %v652, %v663
        %v667 = vadd.f32 %v653, %v663
        %v668 = vadd.f32 %v654, %v663
        %v669 = vadd.f32 %v655, %v663
        %v670 = vadd.f32 %v656, %v663
        %v671 = vadd.f32 %v657, %v663
        %v672 = vadd.f32 %v658, %v663
        %673 = vst [vmem:[%s506] sm:$0xff] %v665
        %674 = vst [vmem:[%s506 + $0x8] sm:$0xff] %v666
        %675 = vst [vmem:[%s506 + $0x10] sm:$0xff] %v667
        %676 = vst [vmem:[%s506 + $0x18] sm:$0xff] %v668
        %677 = vst [vmem:[%s506 + $0x20] sm:$0xff] %v669
        %678 = vst [vmem:[%s506 + $0x28] sm:$0xff] %v670
        %679 = vst [vmem:[%s506 + $0x30] sm:$0xff] %v671
        %680 = vst [vmem:[%s506 + $0x38] sm:$0xff] %v672
        %v681 = vpack.c.bf16 %v666, %v665
        %v682 = vpack.c.bf16 %v668, %v667
        %v683 = vpack.c.bf16 %v670, %v669
        %v684 = vpack.c.bf16 %v672, %v671
        %v685 = vld [vmem:[#allocation5] sm:$0xf]
        %v686 = vld [vmem:[#allocation5 + $0x4] sm:$0xf]
        %v687 = vld [vmem:[#allocation5 + $0x8] sm:$0xf]
        %v688 = vld [vmem:[#allocation5 + $0xc] sm:$0xf]
        %v689 = vld [vmem:[#allocation5 + $0x10] sm:$0xf]
        %v690 = vld [vmem:[#allocation5 + $0x14] sm:$0xf]
        %v691 = vld [vmem:[#allocation5 + $0x18] sm:$0xf]
        %v692 = vld [vmem:[#allocation5 + $0x1c] sm:$0xf]
        %v693 = vld [vmem:[#allocation5 + $0x20] sm:$0xf]
        %v694 = vld [vmem:[#allocation5 + $0x24] sm:$0xf]
        %v695 = vld [vmem:[#allocation5 + $0x28] sm:$0xf]
        %v696 = vld [vmem:[#allocation5 + $0x2c] sm:$0xf]
        %v697 = vld [vmem:[#allocation5 + $0x30] sm:$0xf]
        %v698 = vld [vmem:[#allocation5 + $0x34] sm:$0xf]
        %v699 = vld [vmem:[#allocation5 + $0x38] sm:$0xf]
        %v700 = vld [vmem:[#allocation5 + $0x3c] sm:$0xf]
        %v701 = vld [vmem:[%s4] sm:$0x1]
        %v703 = vlaneseq
        %v704 = vshrl.u32 %v703, 7
        %v705 = vsub.s32 0, %v704
        %v706 = vrot.slane %v701, %v705
        %v724 = vunpack.c.l.b16 %v685
        %v725 = vunpack.c.l.b16 %v686
        %v726 = vunpack.c.l.b16 %v687
        %v727 = vunpack.c.l.b16 %v688
        %v728 = vunpack.c.l.b16 %v689
        %v729 = vunpack.c.l.b16 %v690
        %v730 = vunpack.c.l.b16 %v691
        %v731 = vunpack.c.l.b16 %v692
        %v732 = vunpack.c.l.b16 %v693
        %v733 = vunpack.c.l.b16 %v694
        %v734 = vunpack.c.l.b16 %v695
        %v735 = vunpack.c.l.b16 %v696
        %v736 = vunpack.c.l.b16 %v697
        %v737 = vunpack.c.l.b16 %v698
        %v738 = vunpack.c.l.b16 %v699
        %v739 = vunpack.c.l.b16 %v700
        %v740 = vpack.c.b16 %v725, %v724
        %v741 = vpack.c.b16 %v727, %v726
        %v742 = vpack.c.b16 %v729, %v728
        %v743 = vpack.c.b16 %v731, %v730
        %v744 = vpack.c.b16 %v733, %v732
        %v745 = vpack.c.b16 %v735, %v734
        %v746 = vpack.c.b16 %v737, %v736
        %v747 = vpack.c.b16 %v739, %v738
        %756 = vmatprep.subr.bf16.mxu0 0
        %757 = vmatpush1.bf16.msra.mxu0 %v747
        %758 = vmatprep.subr.bf16.mxu0 0
        %759 = vmatpush1.bf16.msra.mxu0 %v746
        %760 = vmatprep.subr.bf16.mxu0 0
        %761 = vmatpush1.bf16.msra.mxu0 %v745
        %762 = vmatprep.subr.bf16.mxu0 0
        %763 = vmatpush1.bf16.msra.mxu0 %v744
        %764 = vmatprep.subr.bf16.mxu0 0
        %765 = vmatpush1.bf16.msra.mxu0 %v743
        %766 = vmatprep.subr.bf16.mxu0 0
        %767 = vmatpush1.bf16.msra.mxu0 %v742
        %768 = vmatprep.subr.bf16.mxu0 0
        %769 = vmatpush1.bf16.msra.mxu0 %v741
        %770 = vmatprep.subr.bf16.mxu0 0
        %771 = vmatpush1.bf16.msra.mxu0 %v740
        %772 = vmatprep.subr.bf16.mxu0 0
        %773 = vmatpush2.bf16.msra.mxu0 0
        %774 = vmatprep.subr.bf16.mxu0 0
        %775 = vmatpush2.bf16.msra.mxu0 0
        %776 = vmatprep.subr.bf16.mxu0 0
        %777 = vmatpush2.bf16.msra.mxu0 0
        %778 = vmatprep.subr.bf16.mxu0 0
        %779 = vmatpush2.bf16.msra.mxu0 0
        %780 = vmatprep.subr.bf16.mxu0 0
        %781 = vmatpush2.bf16.msra.mxu0 0
        %782 = vmatprep.subr.bf16.mxu0 0
        %783 = vmatpush2.bf16.msra.mxu0 0
        %784 = vmatprep.subr.bf16.mxu0 0
        %785 = vmatpush2.bf16.msra.mxu0 0
        %786 = vmatprep.subr.bf16.mxu0 0
        %787 = vmatpush2.bf16.msra.mxu0 0
        %788 = vmatprep.mubr.bf16.mxu0 0
        %789 = vmatmul.mubr.bf16.gmra.mxu0 %v681
        %v790 = vpop.f32.mrf.mxu0
        %v791 = vadd.f32 %v706, %v790
        %v792 = vpop.f32.mrf.mxu0
        %v793 = vpop.f32.mrf.mxu0
        %v794 = vadd.f32 %v706, %v793
        %v795 = vpop.f32.mrf.mxu0
        %796 = vmatprep.mubr.bf16.mxu0 0
        %797 = vmatmul.mubr.bf16.gmra.mxu0 %v682
        %v798 = vpop.f32.mrf.mxu0
        %v799 = vadd.f32 %v706, %v798
        %v800 = vpop.f32.mrf.mxu0
        %v801 = vpop.f32.mrf.mxu0
        %v802 = vadd.f32 %v706, %v801
        %v803 = vpop.f32.mrf.mxu0
        %804 = vmatprep.mubr.bf16.mxu0 0
        %805 = vmatmul.mubr.bf16.gmra.mxu0 %v683
        %v806 = vpop.f32.mrf.mxu0
        %v807 = vadd.f32 %v706, %v806
        %v808 = vpop.f32.mrf.mxu0
        %v809 = vpop.f32.mrf.mxu0
        %v810 = vadd.f32 %v706, %v809
        %v811 = vpop.f32.mrf.mxu0
        %812 = vmatprep.mubr.bf16.mxu0 0
        %813 = vmatmul.mubr.bf16.gmra.mxu0 %v684
        %v814 = vpop.f32.mrf.mxu0
        %v815 = vadd.f32 %v706, %v814
        %v816 = vpop.f32.mrf.mxu0
        %v817 = vpop.f32.mrf.mxu0
        %v818 = vadd.f32 %v706, %v817
        %v819 = vpop.f32.mrf.mxu0
        %820 = vdwg.mxu0
        %v821 = vpack.c.bf16 %v794, %v791
        %v822 = vpack.c.bf16 %v802, %v799
        %v823 = vpack.c.bf16 %v810, %v807
        %v824 = vpack.c.bf16 %v818, %v815
        %v829 = vunpack.c.l.b16 %v821
        %v830 = vunpack.c.h.b16 %v821
        %v831 = vunpack.c.l.b16 %v822
        %v832 = vunpack.c.h.b16 %v822
        %v833 = vunpack.c.l.b16 %v823
        %v834 = vunpack.c.h.b16 %v823
        %v835 = vunpack.c.l.b16 %v824
        %v836 = vunpack.c.h.b16 %v824
        %v837 = vpack.c.b16 %v829, %v829
        %v838 = vpack.c.b16 %v830, %v830
        %v839 = vpack.c.b16 %v831, %v831
        %v840 = vpack.c.b16 %v832, %v832
        %v841 = vpack.c.b16 %v833, %v833
        %v842 = vpack.c.b16 %v834, %v834
        %v843 = vpack.c.b16 %v835, %v835
        %v844 = vpack.c.b16 %v836, %v836
        %853 = vst [vmem:[%s513] sm:$0xf] %v837
        %854 = vst [vmem:[%s513 + $0x4] sm:$0xf] %v838
        %855 = vst [vmem:[%s513 + $0x8] sm:$0xf] %v839
        %856 = vst [vmem:[%s513 + $0xc] sm:$0xf] %v840
        %857 = vst [vmem:[%s513 + $0x10] sm:$0xf] %v841
        %858 = vst [vmem:[%s513 + $0x14] sm:$0xf] %v842
        %859 = vst [vmem:[%s513 + $0x18] sm:$0xf] %v843
        %860 = vst [vmem:[%s513 + $0x1c] sm:$0xf] %v844
        %v861 = vld [vmem:[#allocation7] sm:$0xf]
        %v862 = vld [vmem:[#allocation7 + $0x4] sm:$0xf]
        %v863 = vld [vmem:[#allocation7 + $0x8] sm:$0xf]
        %v864 = vld [vmem:[#allocation7 + $0xc] sm:$0xf]
        %v865 = vld [vmem:[#allocation7 + $0x10] sm:$0xf]
        %v866 = vld [vmem:[#allocation7 + $0x14] sm:$0xf]
        %v867 = vld [vmem:[#allocation7 + $0x18] sm:$0xf]
        %v868 = vld [vmem:[#allocation7 + $0x1c] sm:$0xf]
        %v869 = vld [vmem:[#allocation7 + $0x20] sm:$0xf]
        %v870 = vld [vmem:[#allocation7 + $0x24] sm:$0xf]
        %v871 = vld [vmem:[#allocation7 + $0x28] sm:$0xf]
        %v872 = vld [vmem:[#allocation7 + $0x2c] sm:$0xf]
        %v873 = vld [vmem:[#allocation7 + $0x30] sm:$0xf]
        %v874 = vld [vmem:[#allocation7 + $0x34] sm:$0xf]
        %v875 = vld [vmem:[#allocation7 + $0x38] sm:$0xf]
        %v876 = vld [vmem:[#allocation7 + $0x3c] sm:$0xf]
        %v877 = vld [vmem:[%s6] sm:$0x1]
        %v879 = vlaneseq
        %v880 = vshrl.u32 %v879, 7
        %v881 = vsub.s32 0, %v880
        %v882 = vrot.slane %v877, %v881
        %v900 = vunpack.c.l.b16 %v861
        %v901 = vunpack.c.l.b16 %v862
        %v902 = vunpack.c.l.b16 %v863
        %v903 = vunpack.c.l.b16 %v864
        %v904 = vunpack.c.l.b16 %v865
        %v905 = vunpack.c.l.b16 %v866
        %v906 = vunpack.c.l.b16 %v867
        %v907 = vunpack.c.l.b16 %v868
        %v908 = vunpack.c.l.b16 %v869
        %v909 = vunpack.c.l.b16 %v870
        %v910 = vunpack.c.l.b16 %v871
        %v911 = vunpack.c.l.b16 %v872
        %v912 = vunpack.c.l.b16 %v873
        %v913 = vunpack.c.l.b16 %v874
        %v914 = vunpack.c.l.b16 %v875
        %v915 = vunpack.c.l.b16 %v876
        %v916 = vpack.c.b16 %v901, %v900
        %v917 = vpack.c.b16 %v903, %v902
        %v918 = vpack.c.b16 %v905, %v904
        %v919 = vpack.c.b16 %v907, %v906
        %v920 = vpack.c.b16 %v909, %v908
        %v921 = vpack.c.b16 %v911, %v910
        %v922 = vpack.c.b16 %v913, %v912
        %v923 = vpack.c.b16 %v915, %v914
        %932 = vmatprep.subr.bf16.mxu0 0
        %933 = vmatpush1.bf16.msra.mxu0 %v923
        %934 = vmatprep.subr.bf16.mxu0 0
        %935 = vmatpush1.bf16.msra.mxu0 %v922
        %936 = vmatprep.subr.bf16.mxu0 0
        %937 = vmatpush1.bf16.msra.mxu0 %v921
        %938 = vmatprep.subr.bf16.mxu0 0
        %939 = vmatpush1.bf16.msra.mxu0 %v920
        %940 = vmatprep.subr.bf16.mxu0 0
        %941 = vmatpush1.bf16.msra.mxu0 %v919
        %942 = vmatprep.subr.bf16.mxu0 0
        %943 = vmatpush1.bf16.msra.mxu0 %v918
        %944 = vmatprep.subr.bf16.mxu0 0
        %945 = vmatpush1.bf16.msra.mxu0 %v917
        %946 = vmatprep.subr.bf16.mxu0 0
        %947 = vmatpush1.bf16.msra.mxu0 %v916
        %948 = vmatprep.subr.bf16.mxu0 0
        %949 = vmatpush2.bf16.msra.mxu0 0
        %950 = vmatprep.subr.bf16.mxu0 0
        %951 = vmatpush2.bf16.msra.mxu0 0
        %952 = vmatprep.subr.bf16.mxu0 0
        %953 = vmatpush2.bf16.msra.mxu0 0
        %954 = vmatprep.subr.bf16.mxu0 0
        %955 = vmatpush2.bf16.msra.mxu0 0
        %956 = vmatprep.subr.bf16.mxu0 0
        %957 = vmatpush2.bf16.msra.mxu0 0
        %958 = vmatprep.subr.bf16.mxu0 0
        %959 = vmatpush2.bf16.msra.mxu0 0
        %960 = vmatprep.subr.bf16.mxu0 0
        %961 = vmatpush2.bf16.msra.mxu0 0
        %962 = vmatprep.subr.bf16.mxu0 0
        %963 = vmatpush2.bf16.msra.mxu0 0
        %964 = vmatprep.mubr.bf16.mxu0 0
        %965 = vmatmul.mubr.bf16.gmra.mxu0 %v681
        %v966 = vpop.f32.mrf.mxu0
        %v967 = vadd.f32 %v882, %v966
        %v968 = vpop.f32.mrf.mxu0
        %v969 = vpop.f32.mrf.mxu0
        %v970 = vadd.f32 %v882, %v969
        %v971 = vpop.f32.mrf.mxu0
        %972 = vmatprep.mubr.bf16.mxu0 0
        %973 = vmatmul.mubr.bf16.gmra.mxu0 %v682
        %v974 = vpop.f32.mrf.mxu0
        %v975 = vadd.f32 %v882, %v974
        %v976 = vpop.f32.mrf.mxu0
        %v977 = vpop.f32.mrf.mxu0
        %v978 = vadd.f32 %v882, %v977
        %v979 = vpop.f32.mrf.mxu0
        %980 = vmatprep.mubr.bf16.mxu0 0
        %981 = vmatmul.mubr.bf16.gmra.mxu0 %v683
        %v982 = vpop.f32.mrf.mxu0
        %v983 = vadd.f32 %v882, %v982
        %v984 = vpop.f32.mrf.mxu0
        %v985 = vpop.f32.mrf.mxu0
        %v986 = vadd.f32 %v882, %v985
        %v987 = vpop.f32.mrf.mxu0
        %988 = vmatprep.mubr.bf16.mxu0 0
        %989 = vmatmul.mubr.bf16.gmra.mxu0 %v684
        %v990 = vpop.f32.mrf.mxu0
        %v991 = vadd.f32 %v882, %v990
        %v992 = vpop.f32.mrf.mxu0
        %v993 = vpop.f32.mrf.mxu0
        %v994 = vadd.f32 %v882, %v993
        %v995 = vpop.f32.mrf.mxu0
        %996 = vdwg.mxu0
        %v997 = vpack.c.bf16 %v970, %v967
        %v998 = vpack.c.bf16 %v978, %v975
        %v999 = vpack.c.bf16 %v986, %v983
        %v1000 = vpack.c.bf16 %v994, %v991
        %v1005 = vunpack.c.l.b16 %v997
        %v1006 = vunpack.c.h.b16 %v997
        %v1007 = vunpack.c.l.b16 %v998
        %v1008 = vunpack.c.h.b16 %v998
        %v1009 = vunpack.c.l.b16 %v999
        %v1010 = vunpack.c.h.b16 %v999
        %v1011 = vunpack.c.l.b16 %v1000
        %v1012 = vunpack.c.h.b16 %v1000
        %v1013 = vpack.c.b16 %v1005, %v1005
        %v1014 = vpack.c.b16 %v1006, %v1006
        %v1015 = vpack.c.b16 %v1007, %v1007
        %v1016 = vpack.c.b16 %v1008, %v1008
        %v1017 = vpack.c.b16 %v1009, %v1009
        %v1018 = vpack.c.b16 %v1010, %v1010
        %v1019 = vpack.c.b16 %v1011, %v1011
        %v1020 = vpack.c.b16 %v1012, %v1012
        %1029 = vst [vmem:[%s520] sm:$0xf] %v1013
        %1030 = vst [vmem:[%s520 + $0x4] sm:$0xf] %v1014
        %1031 = vst [vmem:[%s520 + $0x8] sm:$0xf] %v1015
        %1032 = vst [vmem:[%s520 + $0xc] sm:$0xf] %v1016
        %1033 = vst [vmem:[%s520 + $0x10] sm:$0xf] %v1017
        %1034 = vst [vmem:[%s520 + $0x14] sm:$0xf] %v1018
        %1035 = vst [vmem:[%s520 + $0x18] sm:$0xf] %v1019
        %1036 = vst [vmem:[%s520 + $0x1c] sm:$0xf] %v1020
        %v1037 = vld [vmem:[#allocation8] sm:$0xf]
        %v1038 = vld [vmem:[#allocation8 + $0x4] sm:$0xf]
        %v1039 = vld [vmem:[#allocation8 + $0x8] sm:$0xf]
        %v1040 = vld [vmem:[#allocation8 + $0xc] sm:$0xf]
        %v1041 = vld [vmem:[#allocation8 + $0x10] sm:$0xf]
        %v1042 = vld [vmem:[#allocation8 + $0x14] sm:$0xf]
        %v1043 = vld [vmem:[#allocation8 + $0x18] sm:$0xf]
        %v1044 = vld [vmem:[#allocation8 + $0x1c] sm:$0xf]
        %v1045 = vld [vmem:[#allocation8 + $0x20] sm:$0xf]
        %v1046 = vld [vmem:[#allocation8 + $0x24] sm:$0xf]
        %v1047 = vld [vmem:[#allocation8 + $0x28] sm:$0xf]
        %v1048 = vld [vmem:[#allocation8 + $0x2c] sm:$0xf]
        %v1049 = vld [vmem:[#allocation8 + $0x30] sm:$0xf]
        %v1050 = vld [vmem:[#allocation8 + $0x34] sm:$0xf]
        %v1051 = vld [vmem:[#allocation8 + $0x38] sm:$0xf]
        %v1052 = vld [vmem:[#allocation8 + $0x3c] sm:$0xf]
        %v1053 = vld [vmem:[%s8] sm:$0x1]
        %v1055 = vlaneseq
        %v1056 = vshrl.u32 %v1055, 7
        %v1057 = vsub.s32 0, %v1056
        %v1058 = vrot.slane %v1053, %v1057
        %v1076 = vunpack.c.l.b16 %v1037
        %v1077 = vunpack.c.l.b16 %v1038
        %v1078 = vunpack.c.l.b16 %v1039
        %v1079 = vunpack.c.l.b16 %v1040
        %v1080 = vunpack.c.l.b16 %v1041
        %v1081 = vunpack.c.l.b16 %v1042
        %v1082 = vunpack.c.l.b16 %v1043
        %v1083 = vunpack.c.l.b16 %v1044
        %v1084 = vunpack.c.l.b16 %v1045
        %v1085 = vunpack.c.l.b16 %v1046
        %v1086 = vunpack.c.l.b16 %v1047
        %v1087 = vunpack.c.l.b16 %v1048
        %v1088 = vunpack.c.l.b16 %v1049
        %v1089 = vunpack.c.l.b16 %v1050
        %v1090 = vunpack.c.l.b16 %v1051
        %v1091 = vunpack.c.l.b16 %v1052
        %v1092 = vpack.c.b16 %v1077, %v1076
        %v1093 = vpack.c.b16 %v1079, %v1078
        %v1094 = vpack.c.b16 %v1081, %v1080
        %v1095 = vpack.c.b16 %v1083, %v1082
        %v1096 = vpack.c.b16 %v1085, %v1084
        %v1097 = vpack.c.b16 %v1087, %v1086
        %v1098 = vpack.c.b16 %v1089, %v1088
        %v1099 = vpack.c.b16 %v1091, %v1090
        %1108 = vmatprep.subr.bf16.mxu0 0
        %1109 = vmatpush1.bf16.msra.mxu0 %v1099
        %1110 = vmatprep.subr.bf16.mxu0 0
        %1111 = vmatpush1.bf16.msra.mxu0 %v1098
        %1112 = vmatprep.subr.bf16.mxu0 0
        %1113 = vmatpush1.bf16.msra.mxu0 %v1097
        %1114 = vmatprep.subr.bf16.mxu0 0
        %1115 = vmatpush1.bf16.msra.mxu0 %v1096
        %1116 = vmatprep.subr.bf16.mxu0 0
        %1117 = vmatpush1.bf16.msra.mxu0 %v1095
        %1118 = vmatprep.subr.bf16.mxu0 0
        %1119 = vmatpush1.bf16.msra.mxu0 %v1094
        %1120 = vmatprep.subr.bf16.mxu0 0
        %1121 = vmatpush1.bf16.msra.mxu0 %v1093
        %1122 = vmatprep.subr.bf16.mxu0 0
        %1123 = vmatpush1.bf16.msra.mxu0 %v1092
        %1124 = vmatprep.subr.bf16.mxu0 0
        %1125 = vmatpush2.bf16.msra.mxu0 0
        %1126 = vmatprep.subr.bf16.mxu0 0
        %1127 = vmatpush2.bf16.msra.mxu0 0
        %1128 = vmatprep.subr.bf16.mxu0 0
        %1129 = vmatpush2.bf16.msra.mxu0 0
        %1130 = vmatprep.subr.bf16.mxu0 0
        %1131 = vmatpush2.bf16.msra.mxu0 0
        %1132 = vmatprep.subr.bf16.mxu0 0
        %1133 = vmatpush2.bf16.msra.mxu0 0
        %1134 = vmatprep.subr.bf16.mxu0 0
        %1135 = vmatpush2.bf16.msra.mxu0 0
        %1136 = vmatprep.subr.bf16.mxu0 0
        %1137 = vmatpush2.bf16.msra.mxu0 0
        %1138 = vmatprep.subr.bf16.mxu0 0
        %1139 = vmatpush2.bf16.msra.mxu0 0
        %1140 = vmatprep.mubr.bf16.mxu0 0
        %1141 = vmatmul.mubr.bf16.gmra.mxu0 %v681
        %v1142 = vpop.f32.mrf.mxu0
        %v1143 = vadd.f32 %v1058, %v1142
        %v1144 = vpop.f32.mrf.mxu0
        %v1145 = vpop.f32.mrf.mxu0
        %v1146 = vadd.f32 %v1058, %v1145
        %v1147 = vpop.f32.mrf.mxu0
        %1148 = vmatprep.mubr.bf16.mxu0 0
        %1149 = vmatmul.mubr.bf16.gmra.mxu0 %v682
        %v1150 = vpop.f32.mrf.mxu0
        %v1151 = vadd.f32 %v1058, %v1150
        %v1152 = vpop.f32.mrf.mxu0
        %v1153 = vpop.f32.mrf.mxu0
        %v1154 = vadd.f32 %v1058, %v1153
        %v1155 = vpop.f32.mrf.mxu0
        %1156 = vmatprep.mubr.bf16.mxu0 0
        %1157 = vmatmul.mubr.bf16.gmra.mxu0 %v683
        %v1158 = vpop.f32.mrf.mxu0
        %v1159 = vadd.f32 %v1058, %v1158
        %v1160 = vpop.f32.mrf.mxu0
        %v1161 = vpop.f32.mrf.mxu0
        %v1162 = vadd.f32 %v1058, %v1161
        %v1163 = vpop.f32.mrf.mxu0
        %1164 = vmatprep.mubr.bf16.mxu0 0
        %1165 = vmatmul.mubr.bf16.gmra.mxu0 %v684
        %v1166 = vpop.f32.mrf.mxu0
        %v1167 = vadd.f32 %v1058, %v1166
        %v1168 = vpop.f32.mrf.mxu0
        %v1169 = vpop.f32.mrf.mxu0
        %v1170 = vadd.f32 %v1058, %v1169
        %v1171 = vpop.f32.mrf.mxu0
        %1172 = vdwg.mxu0
        %v1173 = vpack.c.bf16 %v1146, %v1143
        %v1174 = vpack.c.bf16 %v1154, %v1151
        %v1175 = vpack.c.bf16 %v1162, %v1159
        %v1176 = vpack.c.bf16 %v1170, %v1167
        %v1181 = vunpack.c.l.b16 %v1173
        %v1182 = vunpack.c.h.b16 %v1173
        %v1183 = vunpack.c.l.b16 %v1174
        %v1184 = vunpack.c.h.b16 %v1174
        %v1185 = vunpack.c.l.b16 %v1175
        %v1186 = vunpack.c.h.b16 %v1175
        %v1187 = vunpack.c.l.b16 %v1176
        %v1188 = vunpack.c.h.b16 %v1176
        %v1189 = vpack.c.b16 %v1181, %v1181
        %v1190 = vpack.c.b16 %v1182, %v1182
        %v1191 = vpack.c.b16 %v1183, %v1183
        %v1192 = vpack.c.b16 %v1184, %v1184
        %v1193 = vpack.c.b16 %v1185, %v1185
        %v1194 = vpack.c.b16 %v1186, %v1186
        %v1195 = vpack.c.b16 %v1187, %v1187
        %v1196 = vpack.c.b16 %v1188, %v1188
        %1205 = vst [vmem:[%s527] sm:$0xf] %v1189
        %1206 = vst [vmem:[%s527 + $0x4] sm:$0xf] %v1190
        %1207 = vst [vmem:[%s527 + $0x8] sm:$0xf] %v1191
        %1208 = vst [vmem:[%s527 + $0xc] sm:$0xf] %v1192
        %1209 = vst [vmem:[%s527 + $0x10] sm:$0xf] %v1193
        %1210 = vst [vmem:[%s527 + $0x14] sm:$0xf] %v1194
        %1211 = vst [vmem:[%s527 + $0x18] sm:$0xf] %v1195
        %1212 = vst [vmem:[%s527 + $0x1c] sm:$0xf] %v1196
        %s1213 = sand.u32 %s256, 1
        %s1214 = scalar_lea.sflag [#allocation4], %s1213
        %s1215 = sand.u32 %s256, 1
        %s1216 = smul.addr %s1215, 64
        %s1217 = scalar_lea.vmem [#allocation10], %s1216
        %s1218 = sand.u32 %s38, 1
        %s1219 = scalar_lea.sflag [#allocation12], %s1218
        %s1220 = sand.u32 %s284, 1
        %s1221 = smul.addr %s1220, 32
        %s1222 = scalar_lea.vmem [#allocation11], %s1221
        %s1223 = sand.u32 %s38, 1
        %s1224 = scalar_lea.sflag [#allocation12], %s1223
        %s1225 = sand.u32 %s312, 1
        %s1226 = smul.addr %s1225, 32
        %s1227 = scalar_lea.vmem [#allocation13], %s1226
        %s1228 = sand.u32 %s340, 1
        %s1229 = scalar_lea.sflag [#allocation15], %s1228
        %s1230 = sand.u32 %s340, 1
        %s1231 = smul.addr %s1230, 32
        %s1232 = scalar_lea.vmem [#allocation14], %s1231
        // Predicated region
        $region73: #{tpu_custom_call.1} parent=55 // pred_check
          %p1233 = pneg %p266
        $region74: #{tpu_custom_call.1} parent=55 // pred_check_branch
          %1235 = sbr.rel (%p1233) target = $region76
        $region75: #{tpu_custom_call.1} parent=55 // pred_region
          %s1236 = smul.u32 8, %s43
          %s1238 = ssub.s32 1024, 1024
          %1239 = vsyncadd %s1214, %s1238
          %s1240 = smul.addr %s42, 8
          %s1241 = sadd.s32 %s1236, %s1240
          %s1242 = smul.addr %s1241, 128
          %s1243 = scalar_lea.hbm %s9, %s1242
          %s1244 = sshll.u32 %s1217, 4
          %s1245 = int_to_ptr.vmem [resolvable:$true] %s1244
          %1250 = dma.vmem_to_hbm [thread:$0]  %s1245, 1024, %s1243, %s1214, 128, 128, 8
        $region76: #{tpu_custom_call.1} parent=55 // pred_fallthru
          _
        // Predicated region
        $region77: #{tpu_custom_call.1} parent=55 // pred_check
          %p1251 = pneg %p294
        $region78: #{tpu_custom_call.1} parent=55 // pred_check_branch
          %1253 = sbr.rel (%p1251) target = $region80
        $region79: #{tpu_custom_call.1} parent=55 // pred_region
          %s1254 = smul.u32 8, %s43
          %s1256 = ssub.s32 512, 512
          %1257 = vsyncadd %s1219, %s1256
          %s1258 = smul.addr %s42, 8
          %s1259 = sadd.s32 %s1254, %s1258
          %s1260 = smul.addr %s1259, 64
          %s1261 = scalar_lea.hbm %s10, %s1260
          %s1262 = sshll.u32 %s1222, 4
          %s1263 = int_to_ptr.vmem [resolvable:$true] %s1262
          %1268 = dma.vmem_to_hbm [thread:$0]  %s1263, 512, %s1261, %s1219, 64, 64, 4
        $region80: #{tpu_custom_call.1} parent=55 // pred_fallthru
          _
        // Predicated region
        $region81: #{tpu_custom_call.1} parent=55 // pred_check
          %p1269 = pneg %p322
        $region82: #{tpu_custom_call.1} parent=55 // pred_check_branch
          %1271 = sbr.rel (%p1269) target = $region84
        $region83: #{tpu_custom_call.1} parent=55 // pred_region
          %s1272 = smul.u32 8, %s43
          %s1274 = ssub.s32 512, 512
          %1275 = vsyncadd %s1224, %s1274
          %s1276 = smul.addr %s42, 8
          %s1277 = sadd.s32 %s1272, %s1276
          %s1278 = smul.addr %s1277, 64
          %s1279 = scalar_lea.hbm %s11, %s1278
          %s1280 = sshll.u32 %s1227, 4
          %s1281 = int_to_ptr.vmem [resolvable:$true] %s1280
          %1286 = dma.vmem_to_hbm [thread:$0]  %s1281, 512, %s1279, %s1224, 64, 64, 4
        $region84: #{tpu_custom_call.1} parent=55 // pred_fallthru
          _
        // Predicated region
        $region85: #{tpu_custom_call.1} parent=55 // pred_check
          %p1287 = pneg %p350
        $region86: #{tpu_custom_call.1} parent=55 // pred_check_branch
          %1289 = sbr.rel (%p1287) target = $region88
        $region87: #{tpu_custom_call.1} parent=55 // pred_region
          %s1290 = smul.u32 8, %s43
          %s1292 = ssub.s32 512, 512
          %1293 = vsyncadd %s1229, %s1292
          %s1294 = smul.addr %s42, 8
          %s1295 = sadd.s32 %s1290, %s1294
          %s1296 = smul.addr %s1295, 64
          %s1297 = scalar_lea.hbm %s12, %s1296
          %s1298 = sshll.u32 %s1232, 4
          %s1299 = int_to_ptr.vmem [resolvable:$true] %s1298
          %1304 = dma.vmem_to_hbm [thread:$0]  %s1299, 512, %s1297, %s1229, 64, 64, 4
        $region88: #{tpu_custom_call.1} parent=55 // pred_fallthru
          _
      $region56: #{tpu_custom_call.1} parent=5 // pred_fallthru
        _
      %p1305 = scmp.le.s32.totalorder 2, %s33
      // Predicated region
      $region89: #{tpu_custom_call.1} parent=5 // pred_check
        %p1306 = pneg %p1305
      $region90: #{tpu_custom_call.1} parent=5 // pred_check_branch
        %1308 = sbr.rel (%p1306) target = $region92
      $region91: #{tpu_custom_call.1} parent=5 // pred_region
        %s1309 = ssub.s32 %s33, 2
        // Predicated region
        $region93: #{tpu_custom_call.1} parent=91 // pred_check
          %p1310 = pneg %p272
        $region94: #{tpu_custom_call.1} parent=91 // pred_check_branch
          %1312 = sbr.rel (%p1310) target = $region96
        $region95: #{tpu_custom_call.1} parent=91 // pred_region
          %s1313 = sand.u32 %s257, 1
          %s1314 = scalar_lea.sflag [#allocation4], %s1313
          %s1315 = sand.u32 %s257, 1
          %s1316 = smul.addr %s1315, 64
          %s1317 = scalar_lea.vmem [#allocation10], %s1316
          %1318 = dma.done %s1314, 1024
        $region96: #{tpu_custom_call.1} parent=91 // pred_fallthru
          _
        // Predicated region
        $region97: #{tpu_custom_call.1} parent=91 // pred_check
          %p1319 = pneg %p300
        $region98: #{tpu_custom_call.1} parent=91 // pred_check_branch
          %1321 = sbr.rel (%p1319) target = $region100
        $region99: #{tpu_custom_call.1} parent=91 // pred_region
          %s1322 = sand.u32 %s39, 1
          %s1323 = scalar_lea.sflag [#allocation12], %s1322
          %s1324 = sand.u32 %s285, 1
          %s1325 = smul.addr %s1324, 32
          %s1326 = scalar_lea.vmem [#allocation11], %s1325
          %1327 = dma.done %s1323, 512
        $region100: #{tpu_custom_call.1} parent=91 // pred_fallthru
          _
        // Predicated region
        $region101: #{tpu_custom_call.1} parent=91 // pred_check
          %p1328 = pneg %p328
        $region102: #{tpu_custom_call.1} parent=91 // pred_check_branch
          %1330 = sbr.rel (%p1328) target = $region104
        $region103: #{tpu_custom_call.1} parent=91 // pred_region
          %s1331 = sand.u32 %s39, 1
          %s1332 = scalar_lea.sflag [#allocation12], %s1331
          %s1333 = sand.u32 %s313, 1
          %s1334 = smul.addr %s1333, 32
          %s1335 = scalar_lea.vmem [#allocation13], %s1334
          %1336 = dma.done %s1332, 512
        $region104: #{tpu_custom_call.1} parent=91 // pred_fallthru
          _
        // Predicated region
        $region105: #{tpu_custom_call.1} parent=91 // pred_check
          %p1337 = pneg %p356
        $region106: #{tpu_custom_call.1} parent=91 // pred_check_branch
          %1339 = sbr.rel (%p1337) target = $region108
        $region107: #{tpu_custom_call.1} parent=91 // pred_region
          %s1340 = sand.u32 %s341, 1
          %s1341 = scalar_lea.sflag [#allocation15], %s1340
          %s1342 = sand.u32 %s341, 1
          %s1343 = smul.addr %s1342, 32
          %s1344 = scalar_lea.vmem [#allocation14], %s1343
          %1345 = dma.done %s1341, 512
        $region108: #{tpu_custom_call.1} parent=91 // pred_fallthru
          _
      $region92: #{tpu_custom_call.1} parent=5 // pred_fallthru
        _
    $region6: #{tpu_custom_call.1} parent=1 // loop_footer
      %s37 = sadd.s32 1, %s33
    $region7: #{tpu_custom_call.1} parent=1 // loop_footer_branch
      %32 = sbr.rel target = $region3
    $region8: #{tpu_custom_call.1} parent=1 // loop_exit
      _
    %1346 = vsyncpa [#allocation3], 1
    %s1347 = scalar_lea.sflag [#allocation3], 1
    %1348 = vsyncpa %s1347, 1
    %1349 = vsyncpa [#allocation6], 1
    %1350 = vsyncpa [#allocation9], 1
    %1351 = vsyncpa [#allocation4], 1
    %s1352 = scalar_lea.sflag [#allocation4], 1
    %1353 = vsyncpa %s1352, 1
    %1354 = vsyncpa [#allocation12], 1
    %s1355 = scalar_lea.sflag [#allocation12], 1
    %1356 = vsyncpa %s1355, 1
    %1357 = vsyncpa [#allocation15], 1
    %s1358 = scalar_lea.sflag [#allocation15], 1
    %1359 = vsyncpa %s1358, 1

</llo_original>
